<compile_context>
chip_gen: v6e
topology: v6e:2x2x1
jax: 0.10.0
libtpu: 0.0.40
codegen_flags: <defaults>
</compile_context>

<pallas_src>
import functools
import math

import jax
import jax.numpy as jnp
from jax.experimental import pallas as pl
from jax.experimental.pallas import tpu as pltpu

_LANE = 128


def _mha_kernel(q_ref, k_ref, v_ref,
                wq_ref, bq_ref, wk_ref, bk_ref, wv_ref, bv_ref,
                wm_ref, bm_ref, o_ref, kp_ref, vp_ref,
                *, num_heads, head_dim, n_valid, attn_dots_bf16):
    H, hd = num_heads, head_dim
    scale = 1.0 / math.sqrt(hd)
    dot_dtype = jnp.bfloat16 if attn_dots_bf16 else jnp.float32

    # K/V projections: once per batch element (first q-tile), cached in VMEM scratch in the
    # lane-dense head-major layout (H, head_dim, Np).  N stays on the lane dim, so there is
    # no head_dim lane padding and no full-length XLU transpose (the store is reshape-only).
    @pl.when(pl.program_id(1) == 0)
    def _():
        k = k_ref[0]                                                     # (D, Np)
        v = v_ref[0]
        kp = jnp.dot(wk_ref[...], k, preferred_element_type=jnp.float32) + bk_ref[...]
        vp = jnp.dot(wv_ref[...], v, preferred_element_type=jnp.float32) + bv_ref[...]
        kp_ref[...] = kp.reshape(H, hd, kp.shape[-1])                    # (H, hd, Np)
        vp_ref[...] = vp.reshape(H, hd, vp.shape[-1])

    # Q projection for this query tile (channel-first standard matmul on the MXU).
    q = q_ref[0]                                                         # (D, tq)
    qp = jnp.dot(wq_ref[...], q, preferred_element_type=jnp.float32) + bq_ref[...]
    qp = qp * scale                               # fold 1/sqrt(head_dim) into Q (D*tq elems)
    tq = qp.shape[-1]
    # Small per-tile transpose (H, hd, tq) -> (H, tq, hd): the MXU streams the LHS with the
    # contraction on lanes, so this transpose is needed regardless; it replaces the previous
    # full-length (D, N) K/V transposes per batch element.
    qp3 = jnp.transpose(qp.reshape(H, hd, tq), (0, 2, 1))                # (H, tq, hd)

    kp3 = kp_ref[...]                                                    # (H, hd, Np)
    vp3 = vp_ref[...]

    # scores[h, q, k] = sum_d qp3[h, q, d] * kp3[h, d, k]  (canonical batched MXU matmul,
    # K scratch stays lane-dense).
    s = jnp.einsum('hqd,hdk->hqk', qp3.astype(dot_dtype), kp3.astype(dot_dtype),
                   preferred_element_type=jnp.float32)                   # (H, tq, Np)

    # Mask padded key columns (the sequence was padded to a lane multiple in the wrapper).
    if n_valid is not None:
        kidx = jax.lax.broadcasted_iota(jnp.int32, s.shape, 2)
        s = jnp.where(kidx < n_valid, s, jnp.float32(-1e30))

    m = jnp.max(s, axis=-1, keepdims=True)
    e = jnp.exp(s - m)
    denom = jnp.sum(e, axis=-1, keepdims=True)
    # approx=True would likely pass as well (denom >= 1) but is kept exact to hold the 1e-4
    # tolerance with margin; the (H, tq, 1) operand makes the cost negligible either way.
    p = e * pl.reciprocal(denom, approx=False)

    # ctx[h, d, q] = sum_k vp3[h, d, k] * p[h, q, k]: output is lane-dense (H, hd, tq), so
    # head reassembly below is a free reshape (no concat, no ctx transpose, no lane padding).
    ctx = jnp.einsum('hdk,hqk->hdq', vp3.astype(dot_dtype), p.astype(dot_dtype),
                     preferred_element_type=jnp.float32)                 # (H, hd, tq)

    x = ctx.reshape(H * hd, tq)                                          # (D, tq) head-major
    out = jnp.dot(wm_ref[...], x, preferred_element_type=jnp.float32) + bm_ref[...]
    o_ref[0] = out.astype(o_ref.dtype)


def _vmem_capacity_bytes():
    try:
        info = pltpu.get_tpu_info()
        return int(getattr(info, "vmem_capacity_bytes", 128 * 1024 * 1024))
    except Exception:
        return 128 * 1024 * 1024


def multi_headed_attention(query, key, value, params, num_heads, *, attn_dots_bf16=False):
    """query/key/value: (B, d_model, N) float32 (PyTorch Conv1d NCL layout) -> (B, d_model, N)."""
    wq, bq, wk, bk, wv, bv, wm, bm = params
    B, D, N = query.shape
    assert D % num_heads == 0
    head_dim = D // num_heads

    # new channel h*head_dim + d  <--  old channel d*num_heads + h  (PyTorch .view order)
    d_idx = jnp.arange(head_dim)
    h_idx = jnp.arange(num_heads)
    perm = (d_idx[None, :] * num_heads + h_idx[:, None]).reshape(-1)     # (D,), new -> old

    # Projections: output channels permuted to head-major order (rows of the Conv1d weight).
    wq_p, wk_p, wv_p = wq[perm, :], wk[perm, :], wv[perm, :]
    bq_p = bq[perm].reshape(D, 1)
    bk_p = bk[perm].reshape(D, 1)
    bv_p = bv[perm].reshape(D, 1)
    # Merge: input channels permuted to match the head-major channel order built in-kernel.
    wm_p = wm[:, perm]
    bm_c = bm.reshape(D, 1)

    # Pad the sequence to a lane multiple so every tile is (8,128)-aligned and pipelined;
    # padded key columns are masked inside the kernel, padded query columns sliced off below.
    n_pad = (-N) % _LANE
    Np = N + n_pad
    if n_pad:
        pad = ((0, 0), (0, 0), (0, n_pad))
        query_p = jnp.pad(query, pad)
        key_p = jnp.pad(key, pad)
        value_p = jnp.pad(value, pad)
    else:
        query_p, key_p, value_p = query, key, value

    # Generation-aware VMEM budget: ~100 MiB on 128-MiB parts (v5e/v6e), ~51 MiB on v7x.
    vmem_cap = _vmem_capacity_bytes()
    vmem_limit = max(min(int(vmem_cap * 0.8), 100 * 1024 * 1024), 32 * 1024 * 1024)

    # Query-tile size from the budget: keep the (H, tq, Np) scores/probs under ~1/4 of it.
    tq = _LANE
    for cand in (512, 256, 128):
        if Np % cand == 0 and num_heads * cand * Np * 4 <= vmem_limit // 4:
            tq = cand
            break
    nq = Np // tq
    # TODO(synk): when N grows so the (H, tq, N) scores or the (H, head_dim, N) K/V scratch no
    # longer fit the budget, add a KV-tile grid axis with an online-softmax (flash) accumulator.

    kernel = functools.partial(
        _mha_kernel, num_heads=num_heads, head_dim=head_dim,
        n_valid=(N if n_pad else None), attn_dots_bf16=attn_dots_bf16)

    # Raw K/V blocks are only consumed at qi==0; single-buffer them when VMEM is tight (v7x)
    # or the block is big, trading a small per-batch DMA bubble for half the footprint.
    single_buffer_kv = (vmem_cap <= 96 * 1024 * 1024) or (D * Np * 4 >= 2 * 1024 * 1024)

    def run(single_buffer_invariants):
        def invariant_spec(shape, index_map, single):
            if single_buffer_invariants and single:
                # Constant-index operands gain nothing from double buffering; Buffered(1)
                # frees one full VMEM copy of each weight/bias (and raw K/V when enabled).
                return pl.BlockSpec(shape, index_map, pipeline_mode=pl.Buffered(1))
            return pl.BlockSpec(shape, index_map)

        q_spec = pl.BlockSpec((1, D, tq), lambda b, qi: (b, 0, qi))
        kv_spec = invariant_spec((1, D, Np), lambda b, qi: (b, 0, 0), single_buffer_kv)
        w_spec = invariant_spec((D, D), lambda b, qi: (0, 0), True)
        bias_spec = invariant_spec((D, 1), lambda b, qi: (0, 0), True)

        return pl.pallas_call(
            kernel,
            out_shape=jax.ShapeDtypeStruct((B, D, Np), jnp.float32),
            grid_spec=pltpu.PrefetchScalarGridSpec(
                num_scalar_prefetch=0,
                grid=(B, nq),
                in_specs=[q_spec, kv_spec, kv_spec,
                          w_spec, bias_spec, w_spec, bias_spec, w_spec, bias_spec,
                          w_spec, bias_spec],
                out_specs=q_spec,
                scratch_shapes=[pltpu.VMEM((num_heads, head_dim, Np), jnp.float32),
                                pltpu.VMEM((num_heads, head_dim, Np), jnp.float32)],
            ),
            # Batch axis parallel (megacore on v7x); the q-tile axis must stay "arbitrary"
            # because the K/V projection scratch is filled at qi==0 and reused across tiles.
            compiler_params=pltpu.CompilerParams(
                dimension_semantics=("parallel", "arbitrary"),
                vmem_limit_bytes=vmem_limit),
        )(query_p, key_p, value_p, wq_p, bq_p, wk_p, bk_p, wv_p, bv_p, wm_p, bm_c)

    try:
        out = run(True)
    except Exception:
        # Fallback for Pallas builds without BlockSpec.pipeline_mode / Buffered(1) support.
        out = run(False)

    return out[:, :, :N] if n_pad else out


def _reference(query, key, value, params, num_heads):
    """Pure-JAX mirror of the PyTorch forward (for correctness check)."""
    wq, bq, wk, bk, wv, bv, wm, bm = params
    B, D, N = query.shape
    dim = D // num_heads

    def conv1x1(x, w, b):
        return jnp.einsum('oc,bcn->bon', w, x) + b[None, :, None]

    qp = conv1x1(query, wq, bq).reshape(B, dim, num_heads, N)
    kp = conv1x1(key, wk, bk).reshape(B, dim, num_heads, N)
    vp = conv1x1(value, wv, bv).reshape(B, dim, num_heads, N)
    scores = jnp.einsum('bdhn,bdhm->bhnm', qp, kp) / dim ** 0.5
    prob = jax.nn.softmax(scores, axis=-1)
    x = jnp.einsum('bhnm,bdhm->bdhn', prob, vp)
    return conv1x1(x.reshape(B, D, N), wm, bm)


if __name__ == "__main__":
    B, num_heads, d_model, N = 2, 4, 32, 8

    key0 = jax.random.PRNGKey(0)
    ks = jax.random.split(key0, 11)

    # deterministic parameter init (Conv1d(d_model, d_model, 1): weight (D, D), bias (D,))
    scale = 1.0 / math.sqrt(d_model)
    params = (
        jax.random.uniform(ks[0], (d_model, d_model), jnp.float32, -scale, scale),  # wq
        jax.random.uniform(ks[1], (d_model,), jnp.float32, -scale, scale),          # bq
        jax.random.uniform(ks[2], (d_model, d_model), jnp.float32, -scale, scale),  # wk
        jax.random.uniform(ks[3], (d_model,), jnp.float32, -scale, scale),          # bk
        jax.random.uniform(ks[4], (d_model, d_model), jnp.float32, -scale, scale),  # wv
        jax.random.uniform(ks[5], (d_model,), jnp.float32, -scale, scale),          # bv
        jax.random.uniform(ks[6], (d_model, d_model), jnp.float32, -scale, scale),  # wm
        jax.random.uniform(ks[7], (d_model,), jnp.float32, -scale, scale),          # bm
    )

    query = jax.random.normal(ks[8], (B, d_model, N), jnp.float32)
    key_t = jax.random.normal(ks[9], (B, d_model, N), jnp.float32)
    value = jax.random.normal(ks[10], (B, d_model, N), jnp.float32)

    out = multi_headed_attention(query, key_t, value, params, num_heads)
    out = jax.block_until_ready(out)

    ref = _reference(query, key_t, value, params, num_heads)
    assert out.shape == (B, d_model, N)
    assert jnp.allclose(out, ref, atol=1e-4, rtol=1e-4), float(jnp.max(jnp.abs(out - ref)))

    print("KERNEL_OK")
</pallas_src>

<mosaic_0001>
module attributes {stable_mosaic.version = 11 : i64} {
  func.func @_mha_kernel(%arg0: i32, %arg1: i32, %arg2: memref<1x32x128xf32, #tpu.memory_space<vmem>>, %arg3: memref<1x32x128xf32, #tpu.memory_space<vmem>>, %arg4: memref<1x32x128xf32, #tpu.memory_space<vmem>>, %arg5: memref<32x32xf32, #tpu.memory_space<vmem>>, %arg6: memref<32x1xf32, #tpu.memory_space<vmem>>, %arg7: memref<32x32xf32, #tpu.memory_space<vmem>>, %arg8: memref<32x1xf32, #tpu.memory_space<vmem>>, %arg9: memref<32x32xf32, #tpu.memory_space<vmem>>, %arg10: memref<32x1xf32, #tpu.memory_space<vmem>>, %arg11: memref<32x32xf32, #tpu.memory_space<vmem>>, %arg12: memref<32x1xf32, #tpu.memory_space<vmem>>, %arg13: memref<1x32x128xf32, #tpu.memory_space<vmem>>, %arg14: memref<4x8x128xf32, #tpu.memory_space<vmem>>, %arg15: memref<4x8x128xf32, #tpu.memory_space<vmem>>) attributes {dimension_semantics = [#tpu.dimension_semantics<parallel>, #tpu.dimension_semantics<arbitrary>], iteration_bounds = array<i64: 2, 1>, scalar_prefetch = 0 : i64, scratch_operands = 2 : i64, tpu.core_type = #tpu.core_type<tc>, window_params = [{transform_indices = @transform_0, window_bounds = array<i64: 1, 32, 128>}, {transform_indices = @transform_1, window_bounds = array<i64: 1, 32, 128>}, {transform_indices = @transform_2, window_bounds = array<i64: 1, 32, 128>}, {pipeline_mode = #tpu.pipeline_mode<synchronous>, transform_indices = @transform_3, window_bounds = array<i64: 32, 32>}, {pipeline_mode = #tpu.pipeline_mode<synchronous>, transform_indices = @transform_4, window_bounds = array<i64: 32, 1>}, {pipeline_mode = #tpu.pipeline_mode<synchronous>, transform_indices = @transform_5, window_bounds = array<i64: 32, 32>}, {pipeline_mode = #tpu.pipeline_mode<synchronous>, transform_indices = @transform_6, window_bounds = array<i64: 32, 1>}, {pipeline_mode = #tpu.pipeline_mode<synchronous>, transform_indices = @transform_7, window_bounds = array<i64: 32, 32>}, {pipeline_mode = #tpu.pipeline_mode<synchronous>, transform_indices = @transform_8, window_bounds = array<i64: 32, 1>}, {pipeline_mode = #tpu.pipeline_mode<synchronous>, transform_indices = @transform_9, window_bounds = array<i64: 32, 32>}, {pipeline_mode = #tpu.pipeline_mode<synchronous>, transform_indices = @transform_10, window_bounds = array<i64: 32, 1>}, {transform_indices = @transform_11, window_bounds = array<i64: 1, 32, 128>}]} {
    %c0_i32 = arith.constant 0 : i32
    %0 = arith.cmpi eq, %arg1, %c0_i32 : i32
    %1 = arith.extui %0 : i1 to i32
    %c0_i32_0 = arith.constant 0 : i32
    %2 = arith.cmpi ne, %1, %c0_i32_0 : i32
    scf.if %2 {
      %c0_27 = arith.constant 0 : index
      %c0_28 = arith.constant 0 : index
      %c0_29 = arith.constant 0 : index
      %42 = vector.load %arg3[%c0_27, %c0_28, %c0_29] : memref<1x32x128xf32, #tpu.memory_space<vmem>>, vector<1x32x128xf32>
      %43 = vector.shape_cast %42 : vector<1x32x128xf32> to vector<32x128xf32>
      %c0_30 = arith.constant 0 : index
      %c0_31 = arith.constant 0 : index
      %c0_32 = arith.constant 0 : index
      %44 = vector.load %arg4[%c0_30, %c0_31, %c0_32] : memref<1x32x128xf32, #tpu.memory_space<vmem>>, vector<1x32x128xf32>
      %45 = vector.shape_cast %44 : vector<1x32x128xf32> to vector<32x128xf32>
      %c0_33 = arith.constant 0 : index
      %c0_34 = arith.constant 0 : index
      %46 = vector.load %arg7[%c0_33, %c0_34] : memref<32x32xf32, #tpu.memory_space<vmem>>, vector<32x32xf32>
      %cst_35 = arith.constant dense<0.000000e+00> : vector<32x128xf32>
      %47 = tpu.matmul %46, %43, %cst_35 {dimension_numbers = #tpu.dot_dimension_numbers<[1], [0], [0], [1], [0, 0, 1, 1], [], []>} : vector<32x32xf32>, vector<32x128xf32>, vector<32x128xf32> -> vector<32x128xf32>
      %c0_36 = arith.constant 0 : index
      %c0_37 = arith.constant 0 : index
      %48 = vector.load %arg8[%c0_36, %c0_37] : memref<32x1xf32, #tpu.memory_space<vmem>>, vector<32x1xf32>
      %49 = vector.broadcast %48 : vector<32x1xf32> to vector<32x128xf32>
      %50 = arith.addf %47, %49 : vector<32x128xf32>
      %c0_38 = arith.constant 0 : index
      %c0_39 = arith.constant 0 : index
      %51 = vector.load %arg9[%c0_38, %c0_39] : memref<32x32xf32, #tpu.memory_space<vmem>>, vector<32x32xf32>
      %cst_40 = arith.constant dense<0.000000e+00> : vector<32x128xf32>
      %52 = tpu.matmul %51, %45, %cst_40 {dimension_numbers = #tpu.dot_dimension_numbers<[1], [0], [0], [1], [0, 0, 1, 1], [], []>} : vector<32x32xf32>, vector<32x128xf32>, vector<32x128xf32> -> vector<32x128xf32>
      %c0_41 = arith.constant 0 : index
      %c0_42 = arith.constant 0 : index
      %53 = vector.load %arg10[%c0_41, %c0_42] : memref<32x1xf32, #tpu.memory_space<vmem>>, vector<32x1xf32>
      %54 = vector.broadcast %53 : vector<32x1xf32> to vector<32x128xf32>
      %55 = arith.addf %52, %54 : vector<32x128xf32>
      %56 = vector.shape_cast %50 : vector<32x128xf32> to vector<4x8x128xf32>
      %c0_43 = arith.constant 0 : index
      %c0_44 = arith.constant 0 : index
      %c0_45 = arith.constant 0 : index
      %57 = vector.load %arg14[%c0_43, %c0_44, %c0_45] : memref<4x8x128xf32, #tpu.memory_space<vmem>>, vector<4x8x128xf32>
      tpu.vector_store %arg14[%c0_43, %c0_44, %c0_45], %56 {strides = array<i32>} : memref<4x8x128xf32, #tpu.memory_space<vmem>>, vector<4x8x128xf32>,
      %58 = vector.shape_cast %55 : vector<32x128xf32> to vector<4x8x128xf32>
      %c0_46 = arith.constant 0 : index
      %c0_47 = arith.constant 0 : index
      %c0_48 = arith.constant 0 : index
      %59 = vector.load %arg15[%c0_46, %c0_47, %c0_48] : memref<4x8x128xf32, #tpu.memory_space<vmem>>, vector<4x8x128xf32>
      tpu.vector_store %arg15[%c0_46, %c0_47, %c0_48], %58 {strides = array<i32>} : memref<4x8x128xf32, #tpu.memory_space<vmem>>, vector<4x8x128xf32>,
    } else {
    }
    %c0 = arith.constant 0 : index
    %c0_1 = arith.constant 0 : index
    %c0_2 = arith.constant 0 : index
    %3 = vector.load %arg2[%c0, %c0_1, %c0_2] : memref<1x32x128xf32, #tpu.memory_space<vmem>>, vector<1x32x128xf32>
    %4 = vector.shape_cast %3 : vector<1x32x128xf32> to vector<32x128xf32>
    %c0_3 = arith.constant 0 : index
    %c0_4 = arith.constant 0 : index
    %5 = vector.load %arg5[%c0_3, %c0_4] : memref<32x32xf32, #tpu.memory_space<vmem>>, vector<32x32xf32>
    %cst = arith.constant dense<0.000000e+00> : vector<32x128xf32>
    %6 = tpu.matmul %5, %4, %cst {dimension_numbers = #tpu.dot_dimension_numbers<[1], [0], [0], [1], [0, 0, 1, 1], [], []>} : vector<32x32xf32>, vector<32x128xf32>, vector<32x128xf32> -> vector<32x128xf32>
    %c0_5 = arith.constant 0 : index
    %c0_6 = arith.constant 0 : index
    %7 = vector.load %arg6[%c0_5, %c0_6] : memref<32x1xf32, #tpu.memory_space<vmem>>, vector<32x1xf32>
    %8 = vector.broadcast %7 : vector<32x1xf32> to vector<32x128xf32>
    %9 = arith.addf %6, %8 : vector<32x128xf32>
    %cst_7 = arith.constant 0.353553385 : f32
    %10 = vector.broadcast %cst_7 : f32 to vector<32x128xf32>
    %11 = arith.mulf %9, %10 : vector<32x128xf32>
    %12 = vector.shape_cast %11 : vector<32x128xf32> to vector<4x8x128xf32>
    %13 = tpu.transpose %12, [0, 2, 1] : vector<4x8x128xf32> -> vector<4x128x8xf32>
    %c0_8 = arith.constant 0 : index
    %c0_9 = arith.constant 0 : index
    %c0_10 = arith.constant 0 : index
    %14 = vector.load %arg14[%c0_8, %c0_9, %c0_10] : memref<4x8x128xf32, #tpu.memory_space<vmem>>, vector<4x8x128xf32>
    %c0_11 = arith.constant 0 : index
    %c0_12 = arith.constant 0 : index
    %c0_13 = arith.constant 0 : index
    %15 = vector.load %arg15[%c0_11, %c0_12, %c0_13] : memref<4x8x128xf32, #tpu.memory_space<vmem>>, vector<4x8x128xf32>
    "tpu.trace_start"() <{level = 10 : i32, message = "hqd,hdk->hqk"}> : () -> ()
    %cst_14 = arith.constant dense<0.000000e+00> : vector<4x128x128xf32>
    %16 = tpu.matmul %13, %14, %cst_14 {dimension_numbers = #tpu.dot_dimension_numbers<[2], [1], [1], [2], [0, 0, 0, 1, 1, 2], [0], [0]>} : vector<4x128x8xf32>, vector<4x8x128xf32>, vector<4x128x128xf32> -> vector<4x128x128xf32>
    "tpu.trace_stop"() : () -> ()
    %17 = tpu.iota {dimensions = array<i32: 2>} : vector<4x128x128xi32>
    %c8_i32 = arith.constant 8 : i32
    %18 = vector.broadcast %c8_i32 : i32 to vector<4x128x128xi32>
    %19 = arith.cmpi slt, %17, %18 : vector<4x128x128xi32>
    %cst_15 = arith.constant -1.000000e+30 : f32
    %20 = vector.broadcast %cst_15 : f32 to vector<4x128x128xf32>
    %21 = arith.select %19, %16, %20 : vector<4x128x128xi1>, vector<4x128x128xf32>
    %cst_16 = arith.constant dense<0xFF800000> : vector<4x128xf32>
    %22 = vector.multi_reduction <maximumf>, %21, %cst_16 [2] : vector<4x128x128xf32> to vector<4x128xf32>
    %23 = vector.shape_cast %22 : vector<4x128xf32> to vector<4x128x1xf32>
    %24 = vector.broadcast %23 : vector<4x128x1xf32> to vector<4x128x128xf32>
    %25 = arith.subf %21, %24 : vector<4x128x128xf32>
    %26 = math.exp %25 : vector<4x128x128xf32>
    %cst_17 = arith.constant dense<0.000000e+00> : vector<4x128xf32>
    %27 = vector.multi_reduction <add>, %26, %cst_17 [2] : vector<4x128x128xf32> to vector<4x128xf32>
    %28 = vector.shape_cast %27 : vector<4x128xf32> to vector<4x128x1xf32>
    %29 = tpu.reciprocal %28 : vector<4x128x1xf32> -> vector<4x128x1xf32>
    %30 = vector.broadcast %29 : vector<4x128x1xf32> to vector<4x128x128xf32>
    %31 = arith.mulf %26, %30 : vector<4x128x128xf32>
    "tpu.trace_start"() <{level = 10 : i32, message = "hdk,hqk->hdq"}> : () -> ()
    %cst_18 = arith.constant dense<0.000000e+00> : vector<4x8x128xf32>
    %32 = tpu.matmul %15, %31, %cst_18 {dimension_numbers = #tpu.dot_dimension_numbers<[2], [2], [1], [1], [0, 0, 0, 1, 1, 1], [0], [0]>} : vector<4x8x128xf32>, vector<4x128x128xf32>, vector<4x8x128xf32> -> vector<4x8x128xf32>
    "tpu.trace_stop"() : () -> ()
    %33 = vector.shape_cast %32 : vector<4x8x128xf32> to vector<32x128xf32>
    %c0_19 = arith.constant 0 : index
    %c0_20 = arith.constant 0 : index
    %34 = vector.load %arg11[%c0_19, %c0_20] : memref<32x32xf32, #tpu.memory_space<vmem>>, vector<32x32xf32>
    %cst_21 = arith.constant dense<0.000000e+00> : vector<32x128xf32>
    %35 = tpu.matmul %34, %33, %cst_21 {dimension_numbers = #tpu.dot_dimension_numbers<[1], [0], [0], [1], [0, 0, 1, 1], [], []>} : vector<32x32xf32>, vector<32x128xf32>, vector<32x128xf32> -> vector<32x128xf32>
    %c0_22 = arith.constant 0 : index
    %c0_23 = arith.constant 0 : index
    %36 = vector.load %arg12[%c0_22, %c0_23] : memref<32x1xf32, #tpu.memory_space<vmem>>, vector<32x1xf32>
    %37 = vector.broadcast %36 : vector<32x1xf32> to vector<32x128xf32>
    %38 = arith.addf %35, %37 : vector<32x128xf32>
    %c0_24 = arith.constant 0 : index
    %c0_25 = arith.constant 0 : index
    %c0_26 = arith.constant 0 : index
    %39 = vector.load %arg13[%c0_24, %c0_25, %c0_26] : memref<1x32x128xf32, #tpu.memory_space<vmem>>, vector<1x32x128xf32>
    %40 = vector.shape_cast %39 : vector<1x32x128xf32> to vector<32x128xf32>
    %41 = vector.shape_cast %38 : vector<32x128xf32> to vector<1x32x128xf32>
    tpu.vector_store %arg13[%c0_24, %c0_25, %c0_26], %41 {strides = array<i32>} : memref<1x32x128xf32, #tpu.memory_space<vmem>>, vector<1x32x128xf32>,
    return
  }
  func.func @transform_0(%arg0: i32, %arg1: i32) -> (i32, i32, i32) {
    %c0_i32 = arith.constant 0 : i32
    %c0_i32_0 = arith.constant 0 : i32
    return %arg0, %c0_i32, %arg1 : i32, i32, i32
  }
  func.func @transform_1(%arg0: i32, %arg1: i32) -> (i32, i32, i32) {
    %c0_i32 = arith.constant 0 : i32
    %c0_i32_0 = arith.constant 0 : i32
    %c0_i32_1 = arith.constant 0 : i32
    return %arg0, %c0_i32, %c0_i32_0 : i32, i32, i32
  }
  func.func @transform_2(%arg0: i32, %arg1: i32) -> (i32, i32, i32) {
    %c0_i32 = arith.constant 0 : i32
    %c0_i32_0 = arith.constant 0 : i32
    %c0_i32_1 = arith.constant 0 : i32
    return %arg0, %c0_i32, %c0_i32_0 : i32, i32, i32
  }
  func.func @transform_3(%arg0: i32, %arg1: i32) -> (i32, i32) {
    %c0_i32 = arith.constant 0 : i32
    %c0_i32_0 = arith.constant 0 : i32
    %c0_i32_1 = arith.constant 0 : i32
    return %c0_i32, %c0_i32_0 : i32, i32
  }
  func.func @transform_4(%arg0: i32, %arg1: i32) -> (i32, i32) {
    %c0_i32 = arith.constant 0 : i32
    %c0_i32_0 = arith.constant 0 : i32
    %c0_i32_1 = arith.constant 0 : i32
    return %c0_i32, %c0_i32_0 : i32, i32
  }
  func.func @transform_5(%arg0: i32, %arg1: i32) -> (i32, i32) {
    %c0_i32 = arith.constant 0 : i32
    %c0_i32_0 = arith.constant 0 : i32
    %c0_i32_1 = arith.constant 0 : i32
    return %c0_i32, %c0_i32_0 : i32, i32
  }
  func.func @transform_6(%arg0: i32, %arg1: i32) -> (i32, i32) {
    %c0_i32 = arith.constant 0 : i32
    %c0_i32_0 = arith.constant 0 : i32
    %c0_i32_1 = arith.constant 0 : i32
    return %c0_i32, %c0_i32_0 : i32, i32
  }
  func.func @transform_7(%arg0: i32, %arg1: i32) -> (i32, i32) {
    %c0_i32 = arith.constant 0 : i32
    %c0_i32_0 = arith.constant 0 : i32
    %c0_i32_1 = arith.constant 0 : i32
    return %c0_i32, %c0_i32_0 : i32, i32
  }
  func.func @transform_8(%arg0: i32, %arg1: i32) -> (i32, i32) {
    %c0_i32 = arith.constant 0 : i32
    %c0_i32_0 = arith.constant 0 : i32
    %c0_i32_1 = arith.constant 0 : i32
    return %c0_i32, %c0_i32_0 : i32, i32
  }
  func.func @transform_9(%arg0: i32, %arg1: i32) -> (i32, i32) {
    %c0_i32 = arith.constant 0 : i32
    %c0_i32_0 = arith.constant 0 : i32
    %c0_i32_1 = arith.constant 0 : i32
    return %c0_i32, %c0_i32_0 : i32, i32
  }
  func.func @transform_10(%arg0: i32, %arg1: i32) -> (i32, i32) {
    %c0_i32 = arith.constant 0 : i32
    %c0_i32_0 = arith.constant 0 : i32
    %c0_i32_1 = arith.constant 0 : i32
    return %c0_i32, %c0_i32_0 : i32, i32
  }
  func.func @transform_11(%arg0: i32, %arg1: i32) -> (i32, i32, i32) {
    %c0_i32 = arith.constant 0 : i32
    %c0_i32_0 = arith.constant 0 : i32
    return %arg0, %c0_i32, %arg1 : i32, i32, i32
  }
}

module attributes {stable_mosaic.version = 11 : i64} {
  func.func @_mha_kernel(%arg0: i32, %arg1: i32, %arg2: memref<1x32x128xf32, #tpu.memory_space<vmem>>, %arg3: memref<1x32x128xf32, #tpu.memory_space<vmem>>, %arg4: memref<1x32x128xf32, #tpu.memory_space<vmem>>, %arg5: memref<32x32xf32, #tpu.memory_space<vmem>>, %arg6: memref<32x1xf32, #tpu.memory_space<vmem>>, %arg7: memref<32x32xf32, #tpu.memory_space<vmem>>, %arg8: memref<32x1xf32, #tpu.memory_space<vmem>>, %arg9: memref<32x32xf32, #tpu.memory_space<vmem>>, %arg10: memref<32x1xf32, #tpu.memory_space<vmem>>, %arg11: memref<32x32xf32, #tpu.memory_space<vmem>>, %arg12: memref<32x1xf32, #tpu.memory_space<vmem>>, %arg13: memref<1x32x128xf32, #tpu.memory_space<vmem>>, %arg14: memref<4x8x128xf32, #tpu.memory_space<vmem>>, %arg15: memref<4x8x128xf32, #tpu.memory_space<vmem>>) attributes {dimension_semantics = [#tpu.dimension_semantics<parallel>, #tpu.dimension_semantics<arbitrary>], iteration_bounds = array<i64: 2, 1>, scalar_prefetch = 0 : i64, scratch_operands = 2 : i64, tpu.core_type = #tpu.core_type<tc>, window_params = [{transform_indices = @transform_0, window_bounds = array<i64: 1, 32, 128>}, {transform_indices = @transform_1, window_bounds = array<i64: 1, 32, 128>}, {transform_indices = @transform_2, window_bounds = array<i64: 1, 32, 128>}, {pipeline_mode = #tpu.pipeline_mode<synchronous>, transform_indices = @transform_3, window_bounds = array<i64: 32, 32>}, {pipeline_mode = #tpu.pipeline_mode<synchronous>, transform_indices = @transform_4, window_bounds = array<i64: 32, 1>}, {pipeline_mode = #tpu.pipeline_mode<synchronous>, transform_indices = @transform_5, window_bounds = array<i64: 32, 32>}, {pipeline_mode = #tpu.pipeline_mode<synchronous>, transform_indices = @transform_6, window_bounds = array<i64: 32, 1>}, {pipeline_mode = #tpu.pipeline_mode<synchronous>, transform_indices = @transform_7, window_bounds = array<i64: 32, 32>}, {pipeline_mode = #tpu.pipeline_mode<synchronous>, transform_indices = @transform_8, window_bounds = array<i64: 32, 1>}, {pipeline_mode = #tpu.pipeline_mode<synchronous>, transform_indices = @transform_9, window_bounds = array<i64: 32, 32>}, {pipeline_mode = #tpu.pipeline_mode<synchronous>, transform_indices = @transform_10, window_bounds = array<i64: 32, 1>}, {transform_indices = @transform_11, window_bounds = array<i64: 1, 32, 128>}]} {
    %c0_i32 = arith.constant 0 : i32
    %0 = arith.cmpi eq, %arg1, %c0_i32 : i32
    %1 = arith.extui %0 : i1 to i32
    %c0_i32_0 = arith.constant 0 : i32
    %2 = arith.cmpi ne, %1, %c0_i32_0 : i32
    scf.if %2 {
      %c0_27 = arith.constant 0 : index
      %c0_28 = arith.constant 0 : index
      %c0_29 = arith.constant 0 : index
      %42 = vector.load %arg3[%c0_27, %c0_28, %c0_29] : memref<1x32x128xf32, #tpu.memory_space<vmem>>, vector<1x32x128xf32>
      %43 = vector.shape_cast %42 : vector<1x32x128xf32> to vector<32x128xf32>
      %c0_30 = arith.constant 0 : index
      %c0_31 = arith.constant 0 : index
      %c0_32 = arith.constant 0 : index
      %44 = vector.load %arg4[%c0_30, %c0_31, %c0_32] : memref<1x32x128xf32, #tpu.memory_space<vmem>>, vector<1x32x128xf32>
      %45 = vector.shape_cast %44 : vector<1x32x128xf32> to vector<32x128xf32>
      %c0_33 = arith.constant 0 : index
      %c0_34 = arith.constant 0 : index
      %46 = vector.load %arg7[%c0_33, %c0_34] : memref<32x32xf32, #tpu.memory_space<vmem>>, vector<32x32xf32>
      %cst_35 = arith.constant dense<0.000000e+00> : vector<32x128xf32>
      %47 = tpu.matmul %46, %43, %cst_35 {dimension_numbers = #tpu.dot_dimension_numbers<[1], [0], [0], [1], [0, 0, 1, 1], [], []>} : vector<32x32xf32>, vector<32x128xf32>, vector<32x128xf32> -> vector<32x128xf32>
      %c0_36 = arith.constant 0 : index
      %c0_37 = arith.constant 0 : index
      %48 = vector.load %arg8[%c0_36, %c0_37] : memref<32x1xf32, #tpu.memory_space<vmem>>, vector<32x1xf32>
      %49 = vector.broadcast %48 : vector<32x1xf32> to vector<32x128xf32>
      %50 = arith.addf %47, %49 : vector<32x128xf32>
      %c0_38 = arith.constant 0 : index
      %c0_39 = arith.constant 0 : index
      %51 = vector.load %arg9[%c0_38, %c0_39] : memref<32x32xf32, #tpu.memory_space<vmem>>, vector<32x32xf32>
      %cst_40 = arith.constant dense<0.000000e+00> : vector<32x128xf32>
      %52 = tpu.matmul %51, %45, %cst_40 {dimension_numbers = #tpu.dot_dimension_numbers<[1], [0], [0], [1], [0, 0, 1, 1], [], []>} : vector<32x32xf32>, vector<32x128xf32>, vector<32x128xf32> -> vector<32x128xf32>
      %c0_41 = arith.constant 0 : index
      %c0_42 = arith.constant 0 : index
      %53 = vector.load %arg10[%c0_41, %c0_42] : memref<32x1xf32, #tpu.memory_space<vmem>>, vector<32x1xf32>
      %54 = vector.broadcast %53 : vector<32x1xf32> to vector<32x128xf32>
      %55 = arith.addf %52, %54 : vector<32x128xf32>
      %56 = vector.shape_cast %50 : vector<32x128xf32> to vector<4x8x128xf32>
      %c0_43 = arith.constant 0 : index
      %c0_44 = arith.constant 0 : index
      %c0_45 = arith.constant 0 : index
      %57 = vector.load %arg14[%c0_43, %c0_44, %c0_45] : memref<4x8x128xf32, #tpu.memory_space<vmem>>, vector<4x8x128xf32>
      tpu.vector_store %arg14[%c0_43, %c0_44, %c0_45], %56 {strides = array<i32>} : memref<4x8x128xf32, #tpu.memory_space<vmem>>, vector<4x8x128xf32>,
      %58 = vector.shape_cast %55 : vector<32x128xf32> to vector<4x8x128xf32>
      %c0_46 = arith.constant 0 : index
      %c0_47 = arith.constant 0 : index
      %c0_48 = arith.constant 0 : index
      %59 = vector.load %arg15[%c0_46, %c0_47, %c0_48] : memref<4x8x128xf32, #tpu.memory_space<vmem>>, vector<4x8x128xf32>
      tpu.vector_store %arg15[%c0_46, %c0_47, %c0_48], %58 {strides = array<i32>} : memref<4x8x128xf32, #tpu.memory_space<vmem>>, vector<4x8x128xf32>,
    } else {
    }
    %c0 = arith.constant 0 : index
    %c0_1 = arith.constant 0 : index
    %c0_2 = arith.constant 0 : index
    %3 = vector.load %arg2[%c0, %c0_1, %c0_2] : memref<1x32x128xf32, #tpu.memory_space<vmem>>, vector<1x32x128xf32>
    %4 = vector.shape_cast %3 : vector<1x32x128xf32> to vector<32x128xf32>
    %c0_3 = arith.constant 0 : index
    %c0_4 = arith.constant 0 : index
    %5 = vector.load %arg5[%c0_3, %c0_4] : memref<32x32xf32, #tpu.memory_space<vmem>>, vector<32x32xf32>
    %cst = arith.constant dense<0.000000e+00> : vector<32x128xf32>
    %6 = tpu.matmul %5, %4, %cst {dimension_numbers = #tpu.dot_dimension_numbers<[1], [0], [0], [1], [0, 0, 1, 1], [], []>} : vector<32x32xf32>, vector<32x128xf32>, vector<32x128xf32> -> vector<32x128xf32>
    %c0_5 = arith.constant 0 : index
    %c0_6 = arith.constant 0 : index
    %7 = vector.load %arg6[%c0_5, %c0_6] : memref<32x1xf32, #tpu.memory_space<vmem>>, vector<32x1xf32>
    %8 = vector.broadcast %7 : vector<32x1xf32> to vector<32x128xf32>
    %9 = arith.addf %6, %8 : vector<32x128xf32>
    %cst_7 = arith.constant 0.353553385 : f32
    %10 = vector.broadcast %cst_7 : f32 to vector<32x128xf32>
    %11 = arith.mulf %9, %10 : vector<32x128xf32>
    %12 = vector.shape_cast %11 : vector<32x128xf32> to vector<4x8x128xf32>
    %13 = tpu.transpose %12, [0, 2, 1] : vector<4x8x128xf32> -> vector<4x128x8xf32>
    %c0_8 = arith.constant 0 : index
    %c0_9 = arith.constant 0 : index
    %c0_10 = arith.constant 0 : index
    %14 = vector.load %arg14[%c0_8, %c0_9, %c0_10] : memref<4x8x128xf32, #tpu.memory_space<vmem>>, vector<4x8x128xf32>
    %c0_11 = arith.constant 0 : index
    %c0_12 = arith.constant 0 : index
    %c0_13 = arith.constant 0 : index
    %15 = vector.load %arg15[%c0_11, %c0_12, %c0_13] : memref<4x8x128xf32, #tpu.memory_space<vmem>>, vector<4x8x128xf32>
    "tpu.trace_start"() <{level = 10 : i32, message = "hqd,hdk->hqk"}> : () -> ()
    %cst_14 = arith.constant dense<0.000000e+00> : vector<4x128x128xf32>
    %16 = tpu.matmul %13, %14, %cst_14 {dimension_numbers = #tpu.dot_dimension_numbers<[2], [1], [1], [2], [0, 0, 0, 1, 1, 2], [0], [0]>} : vector<4x128x8xf32>, vector<4x8x128xf32>, vector<4x128x128xf32> -> vector<4x128x128xf32>
    "tpu.trace_stop"() : () -> ()
    %17 = tpu.iota {dimensions = array<i32: 2>} : vector<4x128x128xi32>
    %c8_i32 = arith.constant 8 : i32
    %18 = vector.broadcast %c8_i32 : i32 to vector<4x128x128xi32>
    %19 = arith.cmpi slt, %17, %18 : vector<4x128x128xi32>
    %cst_15 = arith.constant -1.000000e+30 : f32
    %20 = vector.broadcast %cst_15 : f32 to vector<4x128x128xf32>
    %21 = arith.select %19, %16, %20 : vector<4x128x128xi1>, vector<4x128x128xf32>
    %cst_16 = arith.constant dense<0xFF800000> : vector<4x128xf32>
    %22 = vector.multi_reduction <maximumf>, %21, %cst_16 [2] : vector<4x128x128xf32> to vector<4x128xf32>
    %23 = vector.shape_cast %22 : vector<4x128xf32> to vector<4x128x1xf32>
    %24 = vector.broadcast %23 : vector<4x128x1xf32> to vector<4x128x128xf32>
    %25 = arith.subf %21, %24 : vector<4x128x128xf32>
    %26 = math.exp %25 : vector<4x128x128xf32>
    %cst_17 = arith.constant dense<0.000000e+00> : vector<4x128xf32>
    %27 = vector.multi_reduction <add>, %26, %cst_17 [2] : vector<4x128x128xf32> to vector<4x128xf32>
    %28 = vector.shape_cast %27 : vector<4x128xf32> to vector<4x128x1xf32>
    %29 = tpu.reciprocal %28 : vector<4x128x1xf32> -> vector<4x128x1xf32>
    %30 = vector.broadcast %29 : vector<4x128x1xf32> to vector<4x128x128xf32>
    %31 = arith.mulf %26, %30 : vector<4x128x128xf32>
    "tpu.trace_start"() <{level = 10 : i32, message = "hdk,hqk->hdq"}> : () -> ()
    %cst_18 = arith.constant dense<0.000000e+00> : vector<4x8x128xf32>
    %32 = tpu.matmul %15, %31, %cst_18 {dimension_numbers = #tpu.dot_dimension_numbers<[2], [2], [1], [1], [0, 0, 0, 1, 1, 1], [0], [0]>} : vector<4x8x128xf32>, vector<4x128x128xf32>, vector<4x8x128xf32> -> vector<4x8x128xf32>
    "tpu.trace_stop"() : () -> ()
    %33 = vector.shape_cast %32 : vector<4x8x128xf32> to vector<32x128xf32>
    %c0_19 = arith.constant 0 : index
    %c0_20 = arith.constant 0 : index
    %34 = vector.load %arg11[%c0_19, %c0_20] : memref<32x32xf32, #tpu.memory_space<vmem>>, vector<32x32xf32>
    %cst_21 = arith.constant dense<0.000000e+00> : vector<32x128xf32>
    %35 = tpu.matmul %34, %33, %cst_21 {dimension_numbers = #tpu.dot_dimension_numbers<[1], [0], [0], [1], [0, 0, 1, 1], [], []>} : vector<32x32xf32>, vector<32x128xf32>, vector<32x128xf32> -> vector<32x128xf32>
    %c0_22 = arith.constant 0 : index
    %c0_23 = arith.constant 0 : index
    %36 = vector.load %arg12[%c0_22, %c0_23] : memref<32x1xf32, #tpu.memory_space<vmem>>, vector<32x1xf32>
    %37 = vector.broadcast %36 : vector<32x1xf32> to vector<32x128xf32>
    %38 = arith.addf %35, %37 : vector<32x128xf32>
    %c0_24 = arith.constant 0 : index
    %c0_25 = arith.constant 0 : index
    %c0_26 = arith.constant 0 : index
    %39 = vector.load %arg13[%c0_24, %c0_25, %c0_26] : memref<1x32x128xf32, #tpu.memory_space<vmem>>, vector<1x32x128xf32>
    %40 = vector.shape_cast %39 : vector<1x32x128xf32> to vector<32x128xf32>
    %41 = vector.shape_cast %38 : vector<32x128xf32> to vector<1x32x128xf32>
    tpu.vector_store %arg13[%c0_24, %c0_25, %c0_26], %41 {strides = array<i32>} : memref<1x32x128xf32, #tpu.memory_space<vmem>>, vector<1x32x128xf32>,
    return
  }
  func.func @transform_0(%arg0: i32, %arg1: i32) -> (i32, i32, i32) {
    %c0_i32 = arith.constant 0 : i32
    %c0_i32_0 = arith.constant 0 : i32
    return %arg0, %c0_i32, %arg1 : i32, i32, i32
  }
  func.func @transform_1(%arg0: i32, %arg1: i32) -> (i32, i32, i32) {
    %c0_i32 = arith.constant 0 : i32
    %c0_i32_0 = arith.constant 0 : i32
    %c0_i32_1 = arith.constant 0 : i32
    return %arg0, %c0_i32, %c0_i32_0 : i32, i32, i32
  }
  func.func @transform_2(%arg0: i32, %arg1: i32) -> (i32, i32, i32) {
    %c0_i32 = arith.constant 0 : i32
    %c0_i32_0 = arith.constant 0 : i32
    %c0_i32_1 = arith.constant 0 : i32
    return %arg0, %c0_i32, %c0_i32_0 : i32, i32, i32
  }
  func.func @transform_3(%arg0: i32, %arg1: i32) -> (i32, i32) {
    %c0_i32 = arith.constant 0 : i32
    %c0_i32_0 = arith.constant 0 : i32
    %c0_i32_1 = arith.constant 0 : i32
    return %c0_i32, %c0_i32_0 : i32, i32
  }
  func.func @transform_4(%arg0: i32, %arg1: i32) -> (i32, i32) {
    %c0_i32 = arith.constant 0 : i32
    %c0_i32_0 = arith.constant 0 : i32
    %c0_i32_1 = arith.constant 0 : i32
    return %c0_i32, %c0_i32_0 : i32, i32
  }
  func.func @transform_5(%arg0: i32, %arg1: i32) -> (i32, i32) {
    %c0_i32 = arith.constant 0 : i32
    %c0_i32_0 = arith.constant 0 : i32
    %c0_i32_1 = arith.constant 0 : i32
    return %c0_i32, %c0_i32_0 : i32, i32
  }
  func.func @transform_6(%arg0: i32, %arg1: i32) -> (i32, i32) {
    %c0_i32 = arith.constant 0 : i32
    %c0_i32_0 = arith.constant 0 : i32
    %c0_i32_1 = arith.constant 0 : i32
    return %c0_i32, %c0_i32_0 : i32, i32
  }
  func.func @transform_7(%arg0: i32, %arg1: i32) -> (i32, i32) {
    %c0_i32 = arith.constant 0 : i32
    %c0_i32_0 = arith.constant 0 : i32
    %c0_i32_1 = arith.constant 0 : i32
    return %c0_i32, %c0_i32_0 : i32, i32
  }
  func.func @transform_8(%arg0: i32, %arg1: i32) -> (i32, i32) {
    %c0_i32 = arith.constant 0 : i32
    %c0_i32_0 = arith.constant 0 : i32
    %c0_i32_1 = arith.constant 0 : i32
    return %c0_i32, %c0_i32_0 : i32, i32
  }
  func.func @transform_9(%arg0: i32, %arg1: i32) -> (i32, i32) {
    %c0_i32 = arith.constant 0 : i32
    %c0_i32_0 = arith.constant 0 : i32
    %c0_i32_1 = arith.constant 0 : i32
    return %c0_i32, %c0_i32_0 : i32, i32
  }
  func.func @transform_10(%arg0: i32, %arg1: i32) -> (i32, i32) {
    %c0_i32 = arith.constant 0 : i32
    %c0_i32_0 = arith.constant 0 : i32
    %c0_i32_1 = arith.constant 0 : i32
    return %c0_i32, %c0_i32_0 : i32, i32
  }
  func.func @transform_11(%arg0: i32, %arg1: i32) -> (i32, i32, i32) {
    %c0_i32 = arith.constant 0 : i32
    %c0_i32_0 = arith.constant 0 : i32
    return %arg0, %c0_i32, %arg1 : i32, i32, i32
  }
}

</mosaic_0001>

<llo_original>
// kernel: tpu_custom_call.1
$region0: #{tpu_custom_call.1}
  #allocation0 [shape = 'u32[]', space=smem, size = 0x4, offset = 0x4, fixed_abs, tag = 'smem constant byte address 0x4 - core index']
  #allocation1 [shape = 'u32[144,128]{1,0:T(1,128)}', space=vmem, size = 0x12000, scoped, tag = 'internal scratch']
  #allocation2 [shape = 'f32[4,8,128]{2,1,0:T(8,128)}', space=vmem, size = 0x4000, scoped, tag = 'scratch operand']
  #allocation3 [shape = 'f32[4,8,128]{2,1,0:T(8,128)}', space=vmem, size = 0x4000, scoped, tag = 'scratch operand']
  %s0 = inlined_call_operand.vmem [shape: f32[2,32,128], index: 0, kind: input, shape index: {}]
  %s1 = inlined_call_operand.vmem [shape: f32[2,32,128], index: 1, kind: input, shape index: {}]
  %s2 = inlined_call_operand.hbm [shape: f32[2,32,128], index: 2, kind: input, shape index: {}]
  %s3 = inlined_call_operand.hbm [shape: f32[32,32], index: 3, kind: input, shape index: {}]
  %s4 = inlined_call_operand.vmem [shape: f32[32,1], index: 4, kind: input, shape index: {}]
  %s5 = inlined_call_operand.hbm [shape: f32[32,32], index: 5, kind: input, shape index: {}]
  %s6 = inlined_call_operand.vmem [shape: f32[32,1], index: 6, kind: input, shape index: {}]
  %s7 = inlined_call_operand.hbm [shape: f32[32,32], index: 7, kind: input, shape index: {}]
  %s8 = inlined_call_operand.vmem [shape: f32[32,1], index: 8, kind: input, shape index: {}]
  %s9 = inlined_call_operand.hbm [shape: f32[32,32], index: 9, kind: input, shape index: {}]
  %s10 = inlined_call_operand.vmem [shape: f32[32,1], index: 10, kind: input, shape index: {}]
  %s11 = inlined_call_operand.hbm [shape: f32[2,32,128], index: 11, kind: output, shape index: {}]
  %s12 = sld [smem:[#allocation0]]
  $region101: #{tpu_custom_call.1} parent=0
    _
  %s14 = ssub.s32 1, %s12
  %s15 = scalar_select 0, %s14, %s12
  $region1: #{tpu_custom_call.1} parent=0
    #allocation4 [shape = 'u8[32768]{0}', space=vmem, size = 0x8000, scoped, tag = 'input window, operand 2']
    #allocation5 [shape = 's32[2]{0}', space=sflag, size = 0x8, scoped, tag = 'scoped memory for tpu_custom_call.1']
    #allocation6 [shape = 's32[2]{0}', space=sflag, size = 0x8, scoped, tag = 'scoped memory for tpu_custom_call.1']
    #allocation7 [shape = 'u8[16384]{0}', space=vmem, size = 0x4000, scoped, tag = 'input window, operand 3, single buffered']
    #allocation8 [shape = 's32[1]{0}', space=sflag, size = 0x4, scoped, tag = 'scoped memory for tpu_custom_call.1']
    #allocation9 [shape = 'u8[16384]{0}', space=vmem, size = 0x4000, scoped, tag = 'input window, operand 5, single buffered']
    #allocation10 [shape = 'u8[16384]{0}', space=vmem, size = 0x4000, scoped, tag = 'input window, operand 7, single buffered']
    #allocation11 [shape = 's32[1]{0}', space=sflag, size = 0x4, scoped, tag = 'scoped memory for tpu_custom_call.1']
    #allocation12 [shape = 'u8[16384]{0}', space=vmem, size = 0x4000, scoped, tag = 'input window, operand 9, single buffered']
    #allocation13 [shape = 'u8[32768]{0}', space=vmem, size = 0x8000, scoped, tag = 'output window, operand 0']
    %16 = vsyncpa [#allocation5], 0
    %s17 = scalar_lea.sflag [#allocation5], 1
    %18 = vsyncpa %s17, 0
    %19 = vsyncpa [#allocation8], 0
    %20 = vsyncpa [#allocation11], 0
    %21 = vsyncpa [#allocation6], 0
    %s22 = scalar_lea.sflag [#allocation6], 1
    %23 = vsyncpa %s22, 0
    loop: start=0, step=1, limit=4
    $region2: #{tpu_custom_call.1} parent=1 // loop_pre_header
      _
    $region3: #{tpu_custom_call.1} parent=1 // loop_header
      %s25 = sphi 0, %s29
      %p26 = scmp.ge.s32.totalorder %s25, 4
      %s32 = sphi 0, %s44
      %s33 = sphi 0, %s40
      %s34 = sphi 0, %s32
      %s35 = sphi 0, %s33
      %s36 = sphi 0, %s34
      %s37 = sphi 0, %s35
      %s49 = sphi 0, %s51
      %s52 = sphi 0, %s49
      %s53 = sphi 0, %s52
      %s69 = sphi 0, %s53
      %s75 = sphi 0, %s77
      %s78 = sphi 0, %s75
      %s79 = sphi 0, %s78
      %s95 = sphi 0, %s79
      %s101 = sphi 0, %s103
      %s104 = sphi 0, %s101
      %s105 = sphi 0, %s104
      %s121 = sphi 0, %s105
      %s125 = sphi 0, %s125
      %s127 = sphi 0, %s125
      %s128 = sphi 0, %s127
      %s142 = sphi 0, %s128
      %s146 = sphi 0, %s146
      %s148 = sphi 0, %s146
      %s149 = sphi 0, %s148
      %s163 = sphi 0, %s149
      %s167 = sphi 0, %s167
      %s169 = sphi 0, %s167
      %s170 = sphi 0, %s169
      %s184 = sphi 0, %s170
      %s188 = sphi 0, %s188
      %s190 = sphi 0, %s188
      %s191 = sphi 0, %s190
      %s205 = sphi 0, %s191
      %s209 = sphi 0, %s209
      %s211 = sphi 0, %s209
      %s212 = sphi 0, %s211
      %s226 = sphi 0, %s212
      %s230 = sphi 0, %s230
      %s232 = sphi 0, %s230
      %s233 = sphi 0, %s232
      %s247 = sphi 0, %s233
      %s251 = sphi 0, %s251
      %s253 = sphi 0, %s251
      %s254 = sphi 0, %s253
      %s268 = sphi 0, %s254
      %s272 = sphi 0, %s272
      %s274 = sphi 0, %s272
      %s275 = sphi 0, %s274
      %s289 = sphi 0, %s275
      %s297 = sphi 0, %s299
      %s300 = sphi 0, %s297
      %s301 = sphi 0, %s300
      %s317 = sphi 0, %s301
    $region4: #{tpu_custom_call.1} parent=1 // loop_header_branch
      %28 = sbr.rel (%p26) target = $region8
    $region5: #{tpu_custom_call.1} parent=1 // loop_body
      %s30 = ssub.s32 %s25, 1
      %s31 = ssub.s32 %s25, 2
      %s38 = sadd.s32 1, %s33
      %p39 = scmp.ge.s32.totalorder %s38, 1
      %s40 = scalar_select %p39, 0, %s38
      %s41 = sadd.s32 1, %s32
      %s42 = scalar_select %p39, %s41, %s32
      %p43 = scmp.ge.s32.totalorder %s42, 2
      %s44 = scalar_select %p43, 0, %s42
      %s45 = ssub.s32 %s32, %s44
      %s46 = ssub.s32 %s33, %s40
      %s47 = sor.u32 %s45, %s46
      %p48 = scmp.eq.s32.totalorder %s47, 0
      %s50 = sadd.s32 %s49, 1
      %s51 = scalar_select %p48, %s49, %s50
      %p54 = pneg %p48
      %p55 = scmp.eq.s32.totalorder %s25, 1
      %p56 = por %p54, %p55
      %p57 = scmp.ne.s32.totalorder %s49, %s52
      %p58 = scmp.eq.s32.totalorder %s25, 0
      %p59 = por %p57, %p58
      %p60 = scmp.ne.s32.totalorder %s49, %s52
      %p61 = scmp.eq.s32.totalorder %s30, 1
      %p62 = por %p60, %p61
      %p63 = scmp.ne.s32.totalorder %s52, %s53
      %p64 = scmp.eq.s32.totalorder %s30, 0
      %p65 = por %p63, %p64
      %p66 = scmp.ne.s32.totalorder %s52, %s53
      %p67 = scmp.eq.s32.totalorder %s31, 1
      %p68 = por %p66, %p67
      %p70 = scmp.ne.s32.totalorder %s53, %s69
      %p71 = scmp.eq.s32.totalorder %s31, 0
      %p72 = por %p70, %p71
      %s73 = ssub.s32 %s32, %s44
      %p74 = scmp.eq.s32.totalorder %s73, 0
      %s76 = sadd.s32 %s75, 1
      %s77 = scalar_select %p74, %s75, %s76
      %p80 = pneg %p74
      %p81 = scmp.eq.s32.totalorder %s25, 1
      %p82 = por %p80, %p81
      %p83 = scmp.ne.s32.totalorder %s75, %s78
      %p84 = scmp.eq.s32.totalorder %s25, 0
      %p85 = por %p83, %p84
      %p86 = scmp.ne.s32.totalorder %s75, %s78
      %p87 = scmp.eq.s32.totalorder %s30, 1
      %p88 = por %p86, %p87
      %p89 = scmp.ne.s32.totalorder %s78, %s79
      %p90 = scmp.eq.s32.totalorder %s30, 0
      %p91 = por %p89, %p90
      %p92 = scmp.ne.s32.totalorder %s78, %s79
      %p93 = scmp.eq.s32.totalorder %s31, 1
      %p94 = por %p92, %p93
      %p96 = scmp.ne.s32.totalorder %s79, %s95
      %p97 = scmp.eq.s32.totalorder %s31, 0
      %p98 = por %p96, %p97
      %s99 = ssub.s32 %s32, %s44
      %p100 = scmp.eq.s32.totalorder %s99, 0
      %s102 = sadd.s32 %s101, 1
      %s103 = scalar_select %p100, %s101, %s102
      %p106 = pneg %p100
      %p107 = scmp.eq.s32.totalorder %s25, 1
      %p108 = por %p106, %p107
      %p109 = scmp.ne.s32.totalorder %s101, %s104
      %p110 = scmp.eq.s32.totalorder %s25, 0
      %p111 = por %p109, %p110
      %p112 = scmp.ne.s32.totalorder %s101, %s104
      %p113 = scmp.eq.s32.totalorder %s30, 1
      %p114 = por %p112, %p113
      %p115 = scmp.ne.s32.totalorder %s104, %s105
      %p116 = scmp.eq.s32.totalorder %s30, 0
      %p117 = por %p115, %p116
      %p118 = scmp.ne.s32.totalorder %s104, %s105
      %p119 = scmp.eq.s32.totalorder %s31, 1
      %p120 = por %p118, %p119
      %p122 = scmp.ne.s32.totalorder %s105, %s121
      %p123 = scmp.eq.s32.totalorder %s31, 0
      %p124 = por %p122, %p123
      %s126 = sadd.s32 %s125, 1
      %p129 = scmp.eq.s32.totalorder %s25, 1
      %p130 = scmp.ne.s32.totalorder %s125, %s127
      %p131 = scmp.eq.s32.totalorder %s25, 0
      %p132 = por %p130, %p131
      %p133 = scmp.ne.s32.totalorder %s125, %s127
      %p134 = scmp.eq.s32.totalorder %s30, 1
      %p135 = por %p133, %p134
      %p136 = scmp.ne.s32.totalorder %s127, %s128
      %p137 = scmp.eq.s32.totalorder %s30, 0
      %p138 = por %p136, %p137
      %p139 = scmp.ne.s32.totalorder %s127, %s128
      %p140 = scmp.eq.s32.totalorder %s31, 1
      %p141 = por %p139, %p140
      %p143 = scmp.ne.s32.totalorder %s128, %s142
      %p144 = scmp.eq.s32.totalorder %s31, 0
      %p145 = por %p143, %p144
      %s147 = sadd.s32 %s146, 1
      %p150 = scmp.eq.s32.totalorder %s25, 1
      %p151 = scmp.ne.s32.totalorder %s146, %s148
      %p152 = scmp.eq.s32.totalorder %s25, 0
      %p153 = por %p151, %p152
      %p154 = scmp.ne.s32.totalorder %s146, %s148
      %p155 = scmp.eq.s32.totalorder %s30, 1
      %p156 = por %p154, %p155
      %p157 = scmp.ne.s32.totalorder %s148, %s149
      %p158 = scmp.eq.s32.totalorder %s30, 0
      %p159 = por %p157, %p158
      %p160 = scmp.ne.s32.totalorder %s148, %s149
      %p161 = scmp.eq.s32.totalorder %s31, 1
      %p162 = por %p160, %p161
      %p164 = scmp.ne.s32.totalorder %s149, %s163
      %p165 = scmp.eq.s32.totalorder %s31, 0
      %p166 = por %p164, %p165
      %s168 = sadd.s32 %s167, 1
      %p171 = scmp.eq.s32.totalorder %s25, 1
      %p172 = scmp.ne.s32.totalorder %s167, %s169
      %p173 = scmp.eq.s32.totalorder %s25, 0
      %p174 = por %p172, %p173
      %p175 = scmp.ne.s32.totalorder %s167, %s169
      %p176 = scmp.eq.s32.totalorder %s30, 1
      %p177 = por %p175, %p176
      %p178 = scmp.ne.s32.totalorder %s169, %s170
      %p179 = scmp.eq.s32.totalorder %s30, 0
      %p180 = por %p178, %p179
      %p181 = scmp.ne.s32.totalorder %s169, %s170
      %p182 = scmp.eq.s32.totalorder %s31, 1
      %p183 = por %p181, %p182
      %p185 = scmp.ne.s32.totalorder %s170, %s184
      %p186 = scmp.eq.s32.totalorder %s31, 0
      %p187 = por %p185, %p186
      %s189 = sadd.s32 %s188, 1
      %p192 = scmp.eq.s32.totalorder %s25, 1
      %p193 = scmp.ne.s32.totalorder %s188, %s190
      %p194 = scmp.eq.s32.totalorder %s25, 0
      %p195 = por %p193, %p194
      %p196 = scmp.ne.s32.totalorder %s188, %s190
      %p197 = scmp.eq.s32.totalorder %s30, 1
      %p198 = por %p196, %p197
      %p199 = scmp.ne.s32.totalorder %s190, %s191
      %p200 = scmp.eq.s32.totalorder %s30, 0
      %p201 = por %p199, %p200
      %p202 = scmp.ne.s32.totalorder %s190, %s191
      %p203 = scmp.eq.s32.totalorder %s31, 1
      %p204 = por %p202, %p203
      %p206 = scmp.ne.s32.totalorder %s191, %s205
      %p207 = scmp.eq.s32.totalorder %s31, 0
      %p208 = por %p206, %p207
      %s210 = sadd.s32 %s209, 1
      %p213 = scmp.eq.s32.totalorder %s25, 1
      %p214 = scmp.ne.s32.totalorder %s209, %s211
      %p215 = scmp.eq.s32.totalorder %s25, 0
      %p216 = por %p214, %p215
      %p217 = scmp.ne.s32.totalorder %s209, %s211
      %p218 = scmp.eq.s32.totalorder %s30, 1
      %p219 = por %p217, %p218
      %p220 = scmp.ne.s32.totalorder %s211, %s212
      %p221 = scmp.eq.s32.totalorder %s30, 0
      %p222 = por %p220, %p221
      %p223 = scmp.ne.s32.totalorder %s211, %s212
      %p224 = scmp.eq.s32.totalorder %s31, 1
      %p225 = por %p223, %p224
      %p227 = scmp.ne.s32.totalorder %s212, %s226
      %p228 = scmp.eq.s32.totalorder %s31, 0
      %p229 = por %p227, %p228
      %s231 = sadd.s32 %s230, 1
      %p234 = scmp.eq.s32.totalorder %s25, 1
      %p235 = scmp.ne.s32.totalorder %s230, %s232
      %p236 = scmp.eq.s32.totalorder %s25, 0
      %p237 = por %p235, %p236
      %p238 = scmp.ne.s32.totalorder %s230, %s232
      %p239 = scmp.eq.s32.totalorder %s30, 1
      %p240 = por %p238, %p239
      %p241 = scmp.ne.s32.totalorder %s232, %s233
      %p242 = scmp.eq.s32.totalorder %s30, 0
      %p243 = por %p241, %p242
      %p244 = scmp.ne.s32.totalorder %s232, %s233
      %p245 = scmp.eq.s32.totalorder %s31, 1
      %p246 = por %p244, %p245
      %p248 = scmp.ne.s32.totalorder %s233, %s247
      %p249 = scmp.eq.s32.totalorder %s31, 0
      %p250 = por %p248, %p249
      %s252 = sadd.s32 %s251, 1
      %p255 = scmp.eq.s32.totalorder %s25, 1
      %p256 = scmp.ne.s32.totalorder %s251, %s253
      %p257 = scmp.eq.s32.totalorder %s25, 0
      %p258 = por %p256, %p257
      %p259 = scmp.ne.s32.totalorder %s251, %s253
      %p260 = scmp.eq.s32.totalorder %s30, 1
      %p261 = por %p259, %p260
      %p262 = scmp.ne.s32.totalorder %s253, %s254
      %p263 = scmp.eq.s32.totalorder %s30, 0
      %p264 = por %p262, %p263
      %p265 = scmp.ne.s32.totalorder %s253, %s254
      %p266 = scmp.eq.s32.totalorder %s31, 1
      %p267 = por %p265, %p266
      %p269 = scmp.ne.s32.totalorder %s254, %s268
      %p270 = scmp.eq.s32.totalorder %s31, 0
      %p271 = por %p269, %p270
      %s273 = sadd.s32 %s272, 1
      %p276 = scmp.eq.s32.totalorder %s25, 1
      %p277 = scmp.ne.s32.totalorder %s272, %s274
      %p278 = scmp.eq.s32.totalorder %s25, 0
      %p279 = por %p277, %p278
      %p280 = scmp.ne.s32.totalorder %s272, %s274
      %p281 = scmp.eq.s32.totalorder %s30, 1
      %p282 = por %p280, %p281
      %p283 = scmp.ne.s32.totalorder %s274, %s275
      %p284 = scmp.eq.s32.totalorder %s30, 0
      %p285 = por %p283, %p284
      %p286 = scmp.ne.s32.totalorder %s274, %s275
      %p287 = scmp.eq.s32.totalorder %s31, 1
      %p288 = por %p286, %p287
      %p290 = scmp.ne.s32.totalorder %s275, %s289
      %p291 = scmp.eq.s32.totalorder %s31, 0
      %p292 = por %p290, %p291
      %s293 = ssub.s32 %s32, %s44
      %s294 = ssub.s32 %s33, %s40
      %s295 = sor.u32 %s293, %s294
      %p296 = scmp.eq.s32.totalorder %s295, 0
      %s298 = sadd.s32 %s297, 1
      %s299 = scalar_select %p296, %s297, %s298
      %p302 = pneg %p296
      %p303 = scmp.eq.s32.totalorder %s25, 1
      %p304 = por %p302, %p303
      %p305 = scmp.ne.s32.totalorder %s297, %s300
      %p306 = scmp.eq.s32.totalorder %s25, 0
      %p307 = por %p305, %p306
      %p308 = scmp.ne.s32.totalorder %s297, %s300
      %p309 = scmp.eq.s32.totalorder %s30, 1
      %p310 = por %p308, %p309
      %p311 = scmp.ne.s32.totalorder %s300, %s301
      %p312 = scmp.eq.s32.totalorder %s30, 0
      %p313 = por %p311, %p312
      %p314 = scmp.ne.s32.totalorder %s300, %s301
      %p315 = scmp.eq.s32.totalorder %s31, 1
      %p316 = por %p314, %p315
      %p318 = scmp.ne.s32.totalorder %s301, %s317
      %p319 = scmp.eq.s32.totalorder %s31, 0
      %p320 = por %p318, %p319
      %p321 = scmp.le.s32.totalorder 1, %s25
      %p322 = scmp.lt.s32.totalorder %s25, 3
      %p323 = pnand %p321, %p322
      %p324 = pneg %p323
      // Predicated region
      $region9: #{tpu_custom_call.1} parent=5 // pred_check
        _
      $region10: #{tpu_custom_call.1} parent=5 // pred_check_branch
        %326 = sbr.rel (%p323) target = $region12
      $region11: #{tpu_custom_call.1} parent=5 // pred_region
        %s327 = ssub.s32 %s25, 1
        // Predicated region
        $region13: #{tpu_custom_call.1} parent=11 // pred_check
          %p328 = pneg %p138
        $region14: #{tpu_custom_call.1} parent=11 // pred_check_branch
          %330 = sbr.rel (%p328) target = $region16
        $region15: #{tpu_custom_call.1} parent=11 // pred_region
          %s332 = ssub.s32 512, 512
          %333 = vsyncadd [#allocation8], %s332
          %s334 = sshll.u32 [#allocation7], 4
          %s335 = int_to_ptr.vmem [resolvable:$true] %s334
          %340 = dma.hbm_to_vmem [thread:$0]  %s3, 512, %s335, [#allocation8], 128, 128, 8
        $region16: #{tpu_custom_call.1} parent=11 // pred_fallthru
          _
        // Predicated region
        $region17: #{tpu_custom_call.1} parent=11 // pred_check
          %p341 = pneg %p159
        $region18: #{tpu_custom_call.1} parent=11 // pred_check_branch
          %343 = sbr.rel (%p341) target = $region20
        $region19: #{tpu_custom_call.1} parent=11 // pred_region
          _
        $region20: #{tpu_custom_call.1} parent=11 // pred_fallthru
          _
        // Predicated region
        $region21: #{tpu_custom_call.1} parent=11 // pred_check
          %p344 = pneg %p180
        $region22: #{tpu_custom_call.1} parent=11 // pred_check_branch
          %346 = sbr.rel (%p344) target = $region24
        $region23: #{tpu_custom_call.1} parent=11 // pred_region
          %s348 = ssub.s32 512, 512
          %349 = vsyncadd [#allocation8], %s348
          %s350 = sshll.u32 [#allocation9], 4
          %s351 = int_to_ptr.vmem [resolvable:$true] %s350
          %356 = dma.hbm_to_vmem [thread:$0]  %s5, 512, %s351, [#allocation8], 128, 128, 8
        $region24: #{tpu_custom_call.1} parent=11 // pred_fallthru
          _
        // Predicated region
        $region25: #{tpu_custom_call.1} parent=11 // pred_check
          %p357 = pneg %p201
        $region26: #{tpu_custom_call.1} parent=11 // pred_check_branch
          %359 = sbr.rel (%p357) target = $region28
        $region27: #{tpu_custom_call.1} parent=11 // pred_region
          _
        $region28: #{tpu_custom_call.1} parent=11 // pred_fallthru
          _
        // Predicated region
        $region29: #{tpu_custom_call.1} parent=11 // pred_check
          %p360 = pneg %p222
        $region30: #{tpu_custom_call.1} parent=11 // pred_check_branch
          %362 = sbr.rel (%p360) target = $region32
        $region31: #{tpu_custom_call.1} parent=11 // pred_region
          %s364 = ssub.s32 512, 512
          %365 = vsyncadd [#allocation11], %s364
          %s366 = sshll.u32 [#allocation10], 4
          %s367 = int_to_ptr.vmem [resolvable:$true] %s366
          %372 = dma.hbm_to_vmem [thread:$0]  %s7, 512, %s367, [#allocation11], 128, 128, 8
        $region32: #{tpu_custom_call.1} parent=11 // pred_fallthru
          _
        // Predicated region
        $region33: #{tpu_custom_call.1} parent=11 // pred_check
          %p373 = pneg %p243
        $region34: #{tpu_custom_call.1} parent=11 // pred_check_branch
          %375 = sbr.rel (%p373) target = $region36
        $region35: #{tpu_custom_call.1} parent=11 // pred_region
          _
        $region36: #{tpu_custom_call.1} parent=11 // pred_fallthru
          _
        // Predicated region
        $region37: #{tpu_custom_call.1} parent=11 // pred_check
          %p376 = pneg %p264
        $region38: #{tpu_custom_call.1} parent=11 // pred_check_branch
          %378 = sbr.rel (%p376) target = $region40
        $region39: #{tpu_custom_call.1} parent=11 // pred_region
          %s380 = ssub.s32 512, 512
          %381 = vsyncadd [#allocation11], %s380
          %s382 = sshll.u32 [#allocation12], 4
          %s383 = int_to_ptr.vmem [resolvable:$true] %s382
          %388 = dma.hbm_to_vmem [thread:$0]  %s9, 512, %s383, [#allocation11], 128, 128, 8
        $region40: #{tpu_custom_call.1} parent=11 // pred_fallthru
          _
        // Predicated region
        $region41: #{tpu_custom_call.1} parent=11 // pred_check
          %p389 = pneg %p285
        $region42: #{tpu_custom_call.1} parent=11 // pred_check_branch
          %391 = sbr.rel (%p389) target = $region44
        $region43: #{tpu_custom_call.1} parent=11 // pred_region
          _
        $region44: #{tpu_custom_call.1} parent=11 // pred_fallthru
          _
      $region12: #{tpu_custom_call.1} parent=5 // pred_fallthru
        _
      %p392 = scmp.lt.s32.totalorder %s25, 2
      // Predicated region
      $region45: #{tpu_custom_call.1} parent=5 // pred_check
        %p393 = pneg %p392
      $region46: #{tpu_custom_call.1} parent=5 // pred_check_branch
        %395 = sbr.rel (%p393) target = $region48
      $region47: #{tpu_custom_call.1} parent=5 // pred_region
        // Predicated region
        $region49: #{tpu_custom_call.1} parent=47 // pred_check
          %p396 = pneg %p59
        $region50: #{tpu_custom_call.1} parent=47 // pred_check_branch
          %398 = sbr.rel (%p396) target = $region52
        $region51: #{tpu_custom_call.1} parent=47 // pred_region
          %p399 = scmp.lt.s32.totalorder %s32, 1
          %s400 = scalar_select %p399, %s32, 1
          %p401 = scmp.lt.s32.totalorder %s33, 0
          %s402 = scalar_select %p401, %s33, 0
          %s403 = smul.addr %s400, 4
          %s404 = sadd.s32 %s402, %s403
          %s405 = smul.addr %s404, 8
          %s406 = scalar_lea.vmem %s0, %s405
        $region52: #{tpu_custom_call.1} parent=47 // pred_fallthru
          _
        // Predicated region
        $region53: #{tpu_custom_call.1} parent=47 // pred_check
          %p407 = pneg %p85
        $region54: #{tpu_custom_call.1} parent=47 // pred_check_branch
          %409 = sbr.rel (%p407) target = $region56
        $region55: #{tpu_custom_call.1} parent=47 // pred_region
          %p410 = scmp.lt.s32.totalorder %s32, 1
          %s411 = scalar_select %p410, %s32, 1
          %s412 = smul.addr %s411, 4
          %s413 = smul.addr %s412, 8
          %s414 = scalar_lea.vmem %s1, %s413
        $region56: #{tpu_custom_call.1} parent=47 // pred_fallthru
          _
        // Predicated region
        $region57: #{tpu_custom_call.1} parent=47 // pred_check
          %p415 = pneg %p111
        $region58: #{tpu_custom_call.1} parent=47 // pred_check_branch
          %417 = sbr.rel (%p415) target = $region60
        $region59: #{tpu_custom_call.1} parent=47 // pred_region
          %s418 = sand.u32 %s101, 1
          %s419 = scalar_lea.sflag [#allocation5], %s418
          %s420 = sand.u32 %s101, 1
          %s421 = smul.addr %s420, 32
          %s422 = scalar_lea.vmem [#allocation4], %s421
          %s424 = ssub.s32 512, 512
          %425 = vsyncadd %s419, %s424
          %s426 = smul.addr %s32, 4
          %s427 = smul.addr %s426, 128
          %s428 = scalar_lea.hbm %s2, %s427
          %s429 = sshll.u32 %s422, 4
          %s430 = int_to_ptr.vmem [resolvable:$true] %s429
          %435 = dma.hbm_to_vmem [thread:$0]  %s428, 512, %s430, %s419, 128, 128, 8
        $region60: #{tpu_custom_call.1} parent=47 // pred_fallthru
          _
      $region48: #{tpu_custom_call.1} parent=5 // pred_fallthru
        _
      %p436 = scmp.le.s32.totalorder 1, %s25
      %p437 = scmp.lt.s32.totalorder %s25, 3
      %p438 = pnand %p436, %p437
      %p439 = pneg %p438
      // Predicated region
      $region61: #{tpu_custom_call.1} parent=5 // pred_check
        _
      $region62: #{tpu_custom_call.1} parent=5 // pred_check_branch
        %441 = sbr.rel (%p438) target = $region64
      $region63: #{tpu_custom_call.1} parent=5 // pred_region
        %s442 = ssub.s32 %s25, 1
        %s443 = sand.u32 %s104, 1
        %s444 = scalar_lea.sflag [#allocation5], %s443
        %s445 = sand.u32 %s104, 1
        %s446 = smul.addr %s445, 32
        %s447 = scalar_lea.vmem [#allocation4], %s446
        // Predicated region
        $region65: #{tpu_custom_call.1} parent=63 // pred_check
          %p448 = pneg %p117
        $region66: #{tpu_custom_call.1} parent=63 // pred_check_branch
          %450 = sbr.rel (%p448) target = $region68
        $region67: #{tpu_custom_call.1} parent=63 // pred_region
          %451 = dma.done %s444, 512
        $region68: #{tpu_custom_call.1} parent=63 // pred_fallthru
          _
        // Predicated region
        $region69: #{tpu_custom_call.1} parent=63 // pred_check
          %p452 = pneg %p138
        $region70: #{tpu_custom_call.1} parent=63 // pred_check_branch
          %454 = sbr.rel (%p452) target = $region72
        $region71: #{tpu_custom_call.1} parent=63 // pred_region
          %455 = dma.done [#allocation8], 512
        $region72: #{tpu_custom_call.1} parent=63 // pred_fallthru
          _
        // Predicated region
        $region73: #{tpu_custom_call.1} parent=63 // pred_check
          %p456 = pneg %p180
        $region74: #{tpu_custom_call.1} parent=63 // pred_check_branch
          %458 = sbr.rel (%p456) target = $region76
        $region75: #{tpu_custom_call.1} parent=63 // pred_region
          %459 = dma.done [#allocation8], 512
        $region76: #{tpu_custom_call.1} parent=63 // pred_fallthru
          _
        // Predicated region
        $region77: #{tpu_custom_call.1} parent=63 // pred_check
          %p460 = pneg %p222
        $region78: #{tpu_custom_call.1} parent=63 // pred_check_branch
          %462 = sbr.rel (%p460) target = $region80
        $region79: #{tpu_custom_call.1} parent=63 // pred_region
          %463 = dma.done [#allocation11], 512
        $region80: #{tpu_custom_call.1} parent=63 // pred_fallthru
          _
        // Predicated region
        $region81: #{tpu_custom_call.1} parent=63 // pred_check
          %p464 = pneg %p264
        $region82: #{tpu_custom_call.1} parent=63 // pred_check_branch
          %466 = sbr.rel (%p464) target = $region84
        $region83: #{tpu_custom_call.1} parent=63 // pred_region
          %467 = dma.done [#allocation11], 512
        $region84: #{tpu_custom_call.1} parent=63 // pred_fallthru
          _
        %p468 = scmp.lt.s32.totalorder %s34, 1
        %s469 = scalar_select %p468, %s34, 1
        %p470 = scmp.lt.s32.totalorder %s35, 0
        %s471 = scalar_select %p470, %s35, 0
        %s472 = smul.addr %s469, 4
        %s473 = sadd.s32 %s471, %s472
        %s474 = smul.addr %s473, 8
        %s475 = scalar_lea.vmem %s0, %s474
        %p476 = pneg %p65
        %p477 = pneg %p62
        %p478 = scmp.lt.s32.totalorder %s34, 1
        %s479 = scalar_select %p478, %s34, 1
        %s480 = smul.addr %s479, 4
        %s481 = smul.addr %s480, 8
        %s482 = scalar_lea.vmem %s1, %s481
        %p483 = pneg %p91
        %p484 = pneg %p88
        %s485 = sand.u32 %s104, 1
        %s486 = scalar_lea.sflag [#allocation5], %s485
        %s487 = sand.u32 %s104, 1
        %s488 = smul.addr %s487, 32
        %s489 = scalar_lea.vmem [#allocation4], %s488
        %p490 = pneg %p117
        %p491 = pneg %p114
        %p492 = pneg %p138
        %p493 = pneg %p135
        %p494 = pneg %p159
        %p495 = pneg %p156
        %p496 = pneg %p180
        %p497 = pneg %p177
        %p498 = pneg %p201
        %p499 = pneg %p198
        %p500 = pneg %p222
        %p501 = pneg %p219
        %p502 = pneg %p243
        %p503 = pneg %p240
        %p504 = pneg %p264
        %p505 = pneg %p261
        %p506 = pneg %p285
        %p507 = pneg %p282
        %p508 = pneg %p313
        %p509 = pneg %p310
        %s510 = sand.u32 %s300, 1
        %s511 = scalar_lea.sflag [#allocation6], %s510
        %s512 = sand.u32 %s300, 1
        %s513 = smul.addr %s512, 32
        %s514 = scalar_lea.vmem [#allocation13], %s513
        %p515 = scmp.lt.s32.totalorder %s34, 1
        %s516 = scalar_select %p515, %s34, 1
        %p517 = scmp.lt.s32.totalorder %s35, 0
        %s518 = scalar_select %p517, %s35, 0
        %s519 = smul.addr %s516, 4
        %s520 = sadd.s32 %s518, %s519
        %s521 = smul.addr %s520, 8
        %s522 = scalar_lea.vmem %s0, %s521
        %p523 = scmp.lt.s32.totalorder %s34, 1
        %s524 = scalar_select %p523, %s34, 1
        %s525 = smul.addr %s524, 4
        %s526 = smul.addr %s525, 8
        %s527 = scalar_lea.vmem %s1, %s526
        %p528 = scmp.eq.s32.totalorder %s35, 0
        // Predicated region
        $region85: #{tpu_custom_call.1} parent=63 // pred_check
          %p529 = pneg %p528
        $region86: #{tpu_custom_call.1} parent=63 // pred_check_branch
          %531 = sbr.rel (%p529) target = $region88
        $region87: #{tpu_custom_call.1} parent=63 // pred_region
          %v532 = vld [vmem:[%s527] sm:$0xff]
          %v533 = vld [vmem:[%s527 + $0x8] sm:$0xff]
          %v534 = vld [vmem:[%s527 + $0x10] sm:$0xff]
          %v535 = vld [vmem:[%s527 + $0x18] sm:$0xff]
          %v536 = vld [vmem:[%s447] sm:$0xff]
          %v537 = vld [vmem:[%s447 + $0x8] sm:$0xff]
          %v538 = vld [vmem:[%s447 + $0x10] sm:$0xff]
          %v539 = vld [vmem:[%s447 + $0x18] sm:$0xff]
          %v540 = vld [vmem:[#allocation9] sm:$0xff]
          %v541 = vld [vmem:[#allocation9 + $0x8] sm:$0xff]
          %v542 = vld [vmem:[#allocation9 + $0x10] sm:$0xff]
          %v543 = vld [vmem:[#allocation9 + $0x18] sm:$0xff]
          %v544 = vld [vmem:[%s6] sm:$0xff]
          %v545 = vld [vmem:[%s6 + $0x8] sm:$0xff]
          %v546 = vld [vmem:[%s6 + $0x10] sm:$0xff]
          %v547 = vld [vmem:[%s6 + $0x18] sm:$0xff]
          %549 = vset.pattern.permute.xlu0 0
          %550 = vperm.xlu0 %549, %v544
          %v551 = vpop.permute.xlu0 %550
          %554 = vset.pattern.permute.xlu0 0
          %555 = vperm.xlu0 %554, %v545
          %v556 = vpop.permute.xlu0 %555
          %559 = vset.pattern.permute.xlu0 0
          %560 = vperm.xlu0 %559, %v546
          %v561 = vpop.permute.xlu0 %560
          %564 = vset.pattern.permute.xlu0 0
          %565 = vperm.xlu0 %564, %v547
          %v566 = vpop.permute.xlu0 %565
          %vm568 = vcmask 261120
          %v570 = vsel %vm568, %v540, 0
          %v573 = vsel %vm568, %v541, 0
          %v576 = vsel %vm568, %v542, 0
          %v579 = vsel %vm568, %v543, 0
          %581 = vmatprep.subr.mxu0 0.0
          %582 = vmatpush1.msra.mxu0 0.0
          %583 = vmatprep.subr.mxu0 0.0
          %584 = vmatpush1.msra.mxu0 0.0
          %585 = vmatprep.subr.mxu0 0.0
          %586 = vmatpush1.msra.mxu0 0.0
          %587 = vmatprep.subr.mxu0 0.0
          %588 = vmatpush1.msra.mxu0 0.0
          %589 = vmatprep.subr.mxu0 0.0
          %590 = vmatpush1.msra.mxu0 0.0
          %591 = vmatprep.subr.mxu0 0.0
          %592 = vmatpush1.msra.mxu0 0.0
          %593 = vmatprep.subr.mxu0 0.0
          %594 = vmatpush1.msra.mxu0 0.0
          %595 = vmatprep.subr.mxu0 0.0
          %596 = vmatpush1.msra.mxu0 0.0
          %597 = vmatprep.subr.mxu0 0.0
          %598 = vmatpush1.msra.mxu0 0.0
          %599 = vmatprep.subr.mxu0 0.0
          %600 = vmatpush1.msra.mxu0 0.0
          %601 = vmatprep.subr.mxu0 0.0
          %602 = vmatpush1.msra.mxu0 0.0
          %603 = vmatprep.subr.mxu0 0.0
          %604 = vmatpush1.msra.mxu0 0.0
          %605 = vmatprep.subr.mxu0 0.0
          %606 = vmatpush1.msra.mxu0 %v535
          %607 = vmatprep.subr.mxu0 0.0
          %608 = vmatpush1.msra.mxu0 %v534
          %609 = vmatprep.subr.mxu0 0.0
          %610 = vmatpush1.msra.mxu0 %v533
          %611 = vmatprep.subr.mxu0 0.0
          %612 = vmatpush1.msra.mxu0 %v532
          %613 = vmatprep.subr.mxu0 0.0
          %614 = vmatpush2.msra.mxu0 0.0
          %615 = vmatprep.subr.mxu0 0.0
          %616 = vmatpush2.msra.mxu0 0.0
          %617 = vmatprep.subr.mxu0 0.0
          %618 = vmatpush2.msra.mxu0 0.0
          %619 = vmatprep.subr.mxu0 0.0
          %620 = vmatpush2.msra.mxu0 0.0
          %621 = vmatprep.subr.mxu0 0.0
          %622 = vmatpush2.msra.mxu0 0.0
          %623 = vmatprep.subr.mxu0 0.0
          %624 = vmatpush2.msra.mxu0 0.0
          %625 = vmatprep.subr.mxu0 0.0
          %626 = vmatpush2.msra.mxu0 0.0
          %627 = vmatprep.subr.mxu0 0.0
          %628 = vmatpush2.msra.mxu0 0.0
          %629 = vmatprep.subr.mxu0 0.0
          %630 = vmatpush2.msra.mxu0 0.0
          %631 = vmatprep.subr.mxu0 0.0
          %632 = vmatpush2.msra.mxu0 0.0
          %633 = vmatprep.subr.mxu0 0.0
          %634 = vmatpush2.msra.mxu0 0.0
          %635 = vmatprep.subr.mxu0 0.0
          %636 = vmatpush2.msra.mxu0 0.0
          %637 = vmatprep.subr.mxu0 0.0
          %638 = vmatpush2.msra.mxu0 0.0
          %639 = vmatprep.subr.mxu0 0.0
          %640 = vmatpush2.msra.mxu0 0.0
          %641 = vmatprep.subr.mxu0 0.0
          %642 = vmatpush2.msra.mxu0 0.0
          %643 = vmatprep.subr.mxu0 0.0
          %644 = vmatpush2.msra.mxu0 0.0
          %645 = vmatprep.mubr.f32.mxu0 0.0
          %646 = vmatmul.mubr.f32.gmra.mxu0 %v570
          %v647 = vpop.f32.mrf.mxu0
          %v648 = vadd.f32 %v551, %v647
          %v649 = vpop.f32.mrf.mxu0
          %650 = vmatprep.mubr.f32.mxu0 0.0
          %651 = vmatmul.mubr.f32.gmra.mxu0 %v573
          %v652 = vpop.f32.mrf.mxu0
          %v653 = vadd.f32 %v556, %v652
          %v654 = vpop.f32.mrf.mxu0
          %655 = vmatprep.mubr.f32.mxu0 0.0
          %656 = vmatmul.mubr.f32.gmra.mxu0 %v576
          %v657 = vpop.f32.mrf.mxu0
          %v658 = vadd.f32 %v561, %v657
          %v659 = vpop.f32.mrf.mxu0
          %660 = vmatprep.mubr.f32.mxu0 0.0
          %661 = vmatmul.mubr.f32.gmra.mxu0 %v579
          %v662 = vpop.f32.mrf.mxu0
          %v663 = vadd.f32 %v566, %v662
          %v664 = vpop.f32.mrf.mxu0
          %665 = vdwg.mxu0
          %v666 = vld [vmem:[#allocation10] sm:$0xff]
          %v667 = vld [vmem:[#allocation10 + $0x8] sm:$0xff]
          %v668 = vld [vmem:[#allocation10 + $0x10] sm:$0xff]
          %v669 = vld [vmem:[#allocation10 + $0x18] sm:$0xff]
          %v670 = vld [vmem:[%s8] sm:$0xff]
          %v671 = vld [vmem:[%s8 + $0x8] sm:$0xff]
          %v672 = vld [vmem:[%s8 + $0x10] sm:$0xff]
          %v673 = vld [vmem:[%s8 + $0x18] sm:$0xff]
          %675 = vset.pattern.permute.xlu0 0
          %676 = vperm.xlu0 %675, %v670
          %v677 = vpop.permute.xlu0 %676
          %680 = vset.pattern.permute.xlu0 0
          %681 = vperm.xlu0 %680, %v671
          %v682 = vpop.permute.xlu0 %681
          %685 = vset.pattern.permute.xlu0 0
          %686 = vperm.xlu0 %685, %v672
          %v687 = vpop.permute.xlu0 %686
          %690 = vset.pattern.permute.xlu0 0
          %691 = vperm.xlu0 %690, %v673
          %v692 = vpop.permute.xlu0 %691
          %v695 = vsel %vm568, %v666, 0
          %v698 = vsel %vm568, %v667, 0
          %v701 = vsel %vm568, %v668, 0
          %v704 = vsel %vm568, %v669, 0
          %706 = vmatprep.subr.mxu0 0.0
          %707 = vmatpush1.msra.mxu0 0.0
          %708 = vmatprep.subr.mxu0 0.0
          %709 = vmatpush1.msra.mxu0 0.0
          %710 = vmatprep.subr.mxu0 0.0
          %711 = vmatpush1.msra.mxu0 0.0
          %712 = vmatprep.subr.mxu0 0.0
          %713 = vmatpush1.msra.mxu0 0.0
          %714 = vmatprep.subr.mxu0 0.0
          %715 = vmatpush1.msra.mxu0 0.0
          %716 = vmatprep.subr.mxu0 0.0
          %717 = vmatpush1.msra.mxu0 0.0
          %718 = vmatprep.subr.mxu0 0.0
          %719 = vmatpush1.msra.mxu0 0.0
          %720 = vmatprep.subr.mxu0 0.0
          %721 = vmatpush1.msra.mxu0 0.0
          %722 = vmatprep.subr.mxu0 0.0
          %723 = vmatpush1.msra.mxu0 0.0
          %724 = vmatprep.subr.mxu0 0.0
          %725 = vmatpush1.msra.mxu0 0.0
          %726 = vmatprep.subr.mxu0 0.0
          %727 = vmatpush1.msra.mxu0 0.0
          %728 = vmatprep.subr.mxu0 0.0
          %729 = vmatpush1.msra.mxu0 0.0
          %730 = vmatprep.subr.mxu0 0.0
          %731 = vmatpush1.msra.mxu0 %v539
          %732 = vmatprep.subr.mxu0 0.0
          %733 = vmatpush1.msra.mxu0 %v538
          %734 = vmatprep.subr.mxu0 0.0
          %735 = vmatpush1.msra.mxu0 %v537
          %736 = vmatprep.subr.mxu0 0.0
          %737 = vmatpush1.msra.mxu0 %v536
          %738 = vmatprep.subr.mxu0 0.0
          %739 = vmatpush2.msra.mxu0 0.0
          %740 = vmatprep.subr.mxu0 0.0
          %741 = vmatpush2.msra.mxu0 0.0
          %742 = vmatprep.subr.mxu0 0.0
          %743 = vmatpush2.msra.mxu0 0.0
          %744 = vmatprep.subr.mxu0 0.0
          %745 = vmatpush2.msra.mxu0 0.0
          %746 = vmatprep.subr.mxu0 0.0
          %747 = vmatpush2.msra.mxu0 0.0
          %748 = vmatprep.subr.mxu0 0.0
          %749 = vmatpush2.msra.mxu0 0.0
          %750 = vmatprep.subr.mxu0 0.0
          %751 = vmatpush2.msra.mxu0 0.0
          %752 = vmatprep.subr.mxu0 0.0
          %753 = vmatpush2.msra.mxu0 0.0
          %754 = vmatprep.subr.mxu0 0.0
          %755 = vmatpush2.msra.mxu0 0.0
          %756 = vmatprep.subr.mxu0 0.0
          %757 = vmatpush2.msra.mxu0 0.0
          %758 = vmatprep.subr.mxu0 0.0
          %759 = vmatpush2.msra.mxu0 0.0
          %760 = vmatprep.subr.mxu0 0.0
          %761 = vmatpush2.msra.mxu0 0.0
          %762 = vmatprep.subr.mxu0 0.0
          %763 = vmatpush2.msra.mxu0 0.0
          %764 = vmatprep.subr.mxu0 0.0
          %765 = vmatpush2.msra.mxu0 0.0
          %766 = vmatprep.subr.mxu0 0.0
          %767 = vmatpush2.msra.mxu0 0.0
          %768 = vmatprep.subr.mxu0 0.0
          %769 = vmatpush2.msra.mxu0 0.0
          %770 = vmatprep.mubr.f32.mxu0 0.0
          %771 = vmatmul.mubr.f32.gmra.mxu0 %v695
          %v772 = vpop.f32.mrf.mxu0
          %v773 = vadd.f32 %v677, %v772
          %v774 = vpop.f32.mrf.mxu0
          %775 = vmatprep.mubr.f32.mxu0 0.0
          %776 = vmatmul.mubr.f32.gmra.mxu0 %v698
          %v777 = vpop.f32.mrf.mxu0
          %v778 = vadd.f32 %v682, %v777
          %v779 = vpop.f32.mrf.mxu0
          %780 = vmatprep.mubr.f32.mxu0 0.0
          %781 = vmatmul.mubr.f32.gmra.mxu0 %v701
          %v782 = vpop.f32.mrf.mxu0
          %v783 = vadd.f32 %v687, %v782
          %v784 = vpop.f32.mrf.mxu0
          %785 = vmatprep.mubr.f32.mxu0 0.0
          %786 = vmatmul.mubr.f32.gmra.mxu0 %v704
          %v787 = vpop.f32.mrf.mxu0
          %v788 = vadd.f32 %v692, %v787
          %v789 = vpop.f32.mrf.mxu0
          %790 = vdwg.mxu0
          %791 = vst [vmem:[#allocation2] sm:$0xff] %v648
          %792 = vst [vmem:[#allocation2 + $0x8] sm:$0xff] %v653
          %793 = vst [vmem:[#allocation2 + $0x10] sm:$0xff] %v658
          %794 = vst [vmem:[#allocation2 + $0x18] sm:$0xff] %v663
          %795 = vst [vmem:[#allocation3] sm:$0xff] %v773
          %796 = vst [vmem:[#allocation3 + $0x8] sm:$0xff] %v778
          %797 = vst [vmem:[#allocation3 + $0x10] sm:$0xff] %v783
          %798 = vst [vmem:[#allocation3 + $0x18] sm:$0xff] %v788
        $region88: #{tpu_custom_call.1} parent=63 // pred_fallthru
          _
        %v799 = vld [vmem:[%s522] sm:$0xff]
        %v800 = vld [vmem:[%s522 + $0x8] sm:$0xff]
        %v801 = vld [vmem:[%s522 + $0x10] sm:$0xff]
        %v802 = vld [vmem:[%s522 + $0x18] sm:$0xff]
        %v803 = vld [vmem:[#allocation7] sm:$0xff]
        %v804 = vld [vmem:[#allocation7 + $0x8] sm:$0xff]
        %v805 = vld [vmem:[#allocation7 + $0x10] sm:$0xff]
        %v806 = vld [vmem:[#allocation7 + $0x18] sm:$0xff]
        %v807 = vld [vmem:[%s4] sm:$0xff]
        %v808 = vld [vmem:[%s4 + $0x8] sm:$0xff]
        %v809 = vld [vmem:[%s4 + $0x10] sm:$0xff]
        %v810 = vld [vmem:[%s4 + $0x18] sm:$0xff]
        %812 = vset.pattern.permute.xlu0 0
        %813 = vperm.xlu0 %812, %v807
        %v814 = vpop.permute.xlu0 %813
        %817 = vset.pattern.permute.xlu0 0
        %818 = vperm.xlu0 %817, %v808
        %v819 = vpop.permute.xlu0 %818
        %822 = vset.pattern.permute.xlu0 0
        %823 = vperm.xlu0 %822, %v809
        %v824 = vpop.permute.xlu0 %823
        %827 = vset.pattern.permute.xlu0 0
        %828 = vperm.xlu0 %827, %v810
        %v829 = vpop.permute.xlu0 %828
        %vm831 = vcmask 261120
        %v833 = vsel %vm831, %v803, 0
        %v836 = vsel %vm831, %v804, 0
        %v839 = vsel %vm831, %v805, 0
        %v842 = vsel %vm831, %v806, 0
        %844 = vmatprep.subr.mxu0 0.0
        %845 = vmatpush1.msra.mxu0 0.0
        %846 = vmatprep.subr.mxu0 0.0
        %847 = vmatpush1.msra.mxu0 0.0
        %848 = vmatprep.subr.mxu0 0.0
        %849 = vmatpush1.msra.mxu0 0.0
        %850 = vmatprep.subr.mxu0 0.0
        %851 = vmatpush1.msra.mxu0 0.0
        %852 = vmatprep.subr.mxu0 0.0
        %853 = vmatpush1.msra.mxu0 0.0
        %854 = vmatprep.subr.mxu0 0.0
        %855 = vmatpush1.msra.mxu0 0.0
        %856 = vmatprep.subr.mxu0 0.0
        %857 = vmatpush1.msra.mxu0 0.0
        %858 = vmatprep.subr.mxu0 0.0
        %859 = vmatpush1.msra.mxu0 0.0
        %860 = vmatprep.subr.mxu0 0.0
        %861 = vmatpush1.msra.mxu0 0.0
        %862 = vmatprep.subr.mxu0 0.0
        %863 = vmatpush1.msra.mxu0 0.0
        %864 = vmatprep.subr.mxu0 0.0
        %865 = vmatpush1.msra.mxu0 0.0
        %866 = vmatprep.subr.mxu0 0.0
        %867 = vmatpush1.msra.mxu0 0.0
        %868 = vmatprep.subr.mxu0 0.0
        %869 = vmatpush1.msra.mxu0 %v802
        %870 = vmatprep.subr.mxu0 0.0
        %871 = vmatpush1.msra.mxu0 %v801
        %872 = vmatprep.subr.mxu0 0.0
        %873 = vmatpush1.msra.mxu0 %v800
        %874 = vmatprep.subr.mxu0 0.0
        %875 = vmatpush1.msra.mxu0 %v799
        %876 = vmatprep.subr.mxu0 0.0
        %877 = vmatpush2.msra.mxu0 0.0
        %878 = vmatprep.subr.mxu0 0.0
        %879 = vmatpush2.msra.mxu0 0.0
        %880 = vmatprep.subr.mxu0 0.0
        %881 = vmatpush2.msra.mxu0 0.0
        %882 = vmatprep.subr.mxu0 0.0
        %883 = vmatpush2.msra.mxu0 0.0
        %884 = vmatprep.subr.mxu0 0.0
        %885 = vmatpush2.msra.mxu0 0.0
        %886 = vmatprep.subr.mxu0 0.0
        %887 = vmatpush2.msra.mxu0 0.0
        %888 = vmatprep.subr.mxu0 0.0
        %889 = vmatpush2.msra.mxu0 0.0
        %890 = vmatprep.subr.mxu0 0.0
        %891 = vmatpush2.msra.mxu0 0.0
        %892 = vmatprep.subr.mxu0 0.0
        %893 = vmatpush2.msra.mxu0 0.0
        %894 = vmatprep.subr.mxu0 0.0
        %895 = vmatpush2.msra.mxu0 0.0
        %896 = vmatprep.subr.mxu0 0.0
        %897 = vmatpush2.msra.mxu0 0.0
        %898 = vmatprep.subr.mxu0 0.0
        %899 = vmatpush2.msra.mxu0 0.0
        %900 = vmatprep.subr.mxu0 0.0
        %901 = vmatpush2.msra.mxu0 0.0
        %902 = vmatprep.subr.mxu0 0.0
        %903 = vmatpush2.msra.mxu0 0.0
        %904 = vmatprep.subr.mxu0 0.0
        %905 = vmatpush2.msra.mxu0 0.0
        %906 = vmatprep.subr.mxu0 0.0
        %907 = vmatpush2.msra.mxu0 0.0
        %908 = vmatprep.mubr.f32.mxu0 0.0
        %909 = vmatmul.mubr.f32.gmra.mxu0 %v833
        %v910 = vpop.f32.mrf.mxu0
        %v911 = vadd.f32 %v814, %v910
        %v912 = vpop.f32.mrf.mxu0
        %913 = vmatprep.mubr.f32.mxu0 0.0
        %914 = vmatmul.mubr.f32.gmra.mxu0 %v836
        %v915 = vpop.f32.mrf.mxu0
        %v916 = vadd.f32 %v819, %v915
        %v917 = vpop.f32.mrf.mxu0
        %918 = vmatprep.mubr.f32.mxu0 0.0
        %919 = vmatmul.mubr.f32.gmra.mxu0 %v839
        %v920 = vpop.f32.mrf.mxu0
        %v921 = vadd.f32 %v824, %v920
        %v922 = vpop.f32.mrf.mxu0
        %923 = vmatprep.mubr.f32.mxu0 0.0
        %924 = vmatmul.mubr.f32.gmra.mxu0 %v842
        %v925 = vpop.f32.mrf.mxu0
        %v926 = vadd.f32 %v829, %v925
        %v927 = vpop.f32.mrf.mxu0
        %928 = vdwg.mxu0
        %v929 = vmul.f32 %v911, 0.35355338
        %v930 = vmul.f32 %v916, 0.35355338
        %v931 = vmul.f32 %v921, 0.35355338
        %v932 = vmul.f32 %v926, 0.35355338
        %933 = vxpose.xlu0.b32.start [1/16] %v929, 128
        %934 = vxpose.xlu0.b32.cont [2/16] 0.0, 128
        %935 = vxpose.xlu0.b32.cont [3/16] 0.0, 128
        %936 = vxpose.xlu0.b32.cont [4/16] 0.0, 128
        %937 = vxpose.xlu0.b32.cont [5/16] 0.0, 128
        %938 = vxpose.xlu0.b32.cont [6/16] 0.0, 128
        %939 = vxpose.xlu0.b32.cont [7/16] 0.0, 128
        %940 = vxpose.xlu0.b32.cont [8/16] 0.0, 128
        %941 = vxpose.xlu0.b32.cont [9/16] 0.0, 128
        %942 = vxpose.xlu0.b32.cont [10/16] 0.0, 128
        %943 = vxpose.xlu0.b32.cont [11/16] 0.0, 128
        %944 = vxpose.xlu0.b32.cont [12/16] 0.0, 128
        %945 = vxpose.xlu0.b32.cont [13/16] 0.0, 128
        %946 = vxpose.xlu0.b32.cont [14/16] 0.0, 128
        %947 = vxpose.xlu0.b32.cont [15/16] 0.0, 128
        %948 = vxpose.xlu0.b32.end [16/16] 0.0, 128
        %v949 = vpop.trf.xlu0
        %v950 = vpop.trf.xlu0
        %v951 = vpop.trf.xlu0
        %v952 = vpop.trf.xlu0
        %v953 = vpop.trf.xlu0
        %v954 = vpop.trf.xlu0
        %v955 = vpop.trf.xlu0
        %v956 = vpop.trf.xlu0
        %v957 = vpop.trf.xlu0
        %v958 = vpop.trf.xlu0
        %v959 = vpop.trf.xlu0
        %v960 = vpop.trf.xlu0
        %v961 = vpop.trf.xlu0
        %v962 = vpop.trf.xlu0
        %v963 = vpop.trf.xlu0
        %v964 = vpop.trf.xlu0
        %965 = vxpose.xlu0.b32.start [1/16] %v930, 128
        %966 = vxpose.xlu0.b32.cont [2/16] 0.0, 128
        %967 = vxpose.xlu0.b32.cont [3/16] 0.0, 128
        %968 = vxpose.xlu0.b32.cont [4/16] 0.0, 128
        %969 = vxpose.xlu0.b32.cont [5/16] 0.0, 128
        %970 = vxpose.xlu0.b32.cont [6/16] 0.0, 128
        %971 = vxpose.xlu0.b32.cont [7/16] 0.0, 128
        %972 = vxpose.xlu0.b32.cont [8/16] 0.0, 128
        %973 = vxpose.xlu0.b32.cont [9/16] 0.0, 128
        %974 = vxpose.xlu0.b32.cont [10/16] 0.0, 128
        %975 = vxpose.xlu0.b32.cont [11/16] 0.0, 128
        %976 = vxpose.xlu0.b32.cont [12/16] 0.0, 128
        %977 = vxpose.xlu0.b32.cont [13/16] 0.0, 128
        %978 = vxpose.xlu0.b32.cont [14/16] 0.0, 128
        %979 = vxpose.xlu0.b32.cont [15/16] 0.0, 128
        %980 = vxpose.xlu0.b32.end [16/16] 0.0, 128
        %v981 = vpop.trf.xlu0
        %v982 = vpop.trf.xlu0
        %v983 = vpop.trf.xlu0
        %v984 = vpop.trf.xlu0
        %v985 = vpop.trf.xlu0
        %v986 = vpop.trf.xlu0
        %v987 = vpop.trf.xlu0
        %v988 = vpop.trf.xlu0
        %v989 = vpop.trf.xlu0
        %v990 = vpop.trf.xlu0
        %v991 = vpop.trf.xlu0
        %v992 = vpop.trf.xlu0
        %v993 = vpop.trf.xlu0
        %v994 = vpop.trf.xlu0
        %v995 = vpop.trf.xlu0
        %v996 = vpop.trf.xlu0
        %997 = vxpose.xlu0.b32.start [1/16] %v931, 128
        %998 = vxpose.xlu0.b32.cont [2/16] 0.0, 128
        %999 = vxpose.xlu0.b32.cont [3/16] 0.0, 128
        %1000 = vxpose.xlu0.b32.cont [4/16] 0.0, 128
        %1001 = vxpose.xlu0.b32.cont [5/16] 0.0, 128
        %1002 = vxpose.xlu0.b32.cont [6/16] 0.0, 128
        %1003 = vxpose.xlu0.b32.cont [7/16] 0.0, 128
        %1004 = vxpose.xlu0.b32.cont [8/16] 0.0, 128
        %1005 = vxpose.xlu0.b32.cont [9/16] 0.0, 128
        %1006 = vxpose.xlu0.b32.cont [10/16] 0.0, 128
        %1007 = vxpose.xlu0.b32.cont [11/16] 0.0, 128
        %1008 = vxpose.xlu0.b32.cont [12/16] 0.0, 128
        %1009 = vxpose.xlu0.b32.cont [13/16] 0.0, 128
        %1010 = vxpose.xlu0.b32.cont [14/16] 0.0, 128
        %1011 = vxpose.xlu0.b32.cont [15/16] 0.0, 128
        %1012 = vxpose.xlu0.b32.end [16/16] 0.0, 128
        %v1013 = vpop.trf.xlu0
        %v1014 = vpop.trf.xlu0
        %v1015 = vpop.trf.xlu0
        %v1016 = vpop.trf.xlu0
        %v1017 = vpop.trf.xlu0
        %v1018 = vpop.trf.xlu0
        %v1019 = vpop.trf.xlu0
        %v1020 = vpop.trf.xlu0
        %v1021 = vpop.trf.xlu0
        %v1022 = vpop.trf.xlu0
        %v1023 = vpop.trf.xlu0
        %v1024 = vpop.trf.xlu0
        %v1025 = vpop.trf.xlu0
        %v1026 = vpop.trf.xlu0
        %v1027 = vpop.trf.xlu0
        %v1028 = vpop.trf.xlu0
        %1029 = vxpose.xlu0.b32.start [1/16] %v932, 128
        %1030 = vxpose.xlu0.b32.cont [2/16] 0.0, 128
        %1031 = vxpose.xlu0.b32.cont [3/16] 0.0, 128
        %1032 = vxpose.xlu0.b32.cont [4/16] 0.0, 128
        %1033 = vxpose.xlu0.b32.cont [5/16] 0.0, 128
        %1034 = vxpose.xlu0.b32.cont [6/16] 0.0, 128
        %1035 = vxpose.xlu0.b32.cont [7/16] 0.0, 128
        %1036 = vxpose.xlu0.b32.cont [8/16] 0.0, 128
        %1037 = vxpose.xlu0.b32.cont [9/16] 0.0, 128
        %1038 = vxpose.xlu0.b32.cont [10/16] 0.0, 128
        %1039 = vxpose.xlu0.b32.cont [11/16] 0.0, 128
        %1040 = vxpose.xlu0.b32.cont [12/16] 0.0, 128
        %1041 = vxpose.xlu0.b32.cont [13/16] 0.0, 128
        %1042 = vxpose.xlu0.b32.cont [14/16] 0.0, 128
        %1043 = vxpose.xlu0.b32.cont [15/16] 0.0, 128
        %1044 = vxpose.xlu0.b32.end [16/16] 0.0, 128
        %v1045 = vpop.trf.xlu0
        %v1046 = vpop.trf.xlu0
        %v1047 = vpop.trf.xlu0
        %v1048 = vpop.trf.xlu0
        %v1049 = vpop.trf.xlu0
        %v1050 = vpop.trf.xlu0
        %v1051 = vpop.trf.xlu0
        %v1052 = vpop.trf.xlu0
        %v1053 = vpop.trf.xlu0
        %v1054 = vpop.trf.xlu0
        %v1055 = vpop.trf.xlu0
        %v1056 = vpop.trf.xlu0
        %v1057 = vpop.trf.xlu0
        %v1058 = vpop.trf.xlu0
        %v1059 = vpop.trf.xlu0
        %v1060 = vpop.trf.xlu0
        %v1061 = vld [vmem:[#allocation2] sm:$0xff]
        %v1062 = vld [vmem:[#allocation2 + $0x8] sm:$0xff]
        %v1063 = vld [vmem:[#allocation2 + $0x10] sm:$0xff]
        %v1064 = vld [vmem:[#allocation2 + $0x18] sm:$0xff]
        %v1065 = vld [vmem:[#allocation3] sm:$0xff]
        %v1066 = vld [vmem:[#allocation3 + $0x8] sm:$0xff]
        %v1067 = vld [vmem:[#allocation3 + $0x10] sm:$0xff]
        %v1068 = vld [vmem:[#allocation3 + $0x18] sm:$0xff]
        %vm1069 = vcmask 64512
        %v1071 = vsel %vm1069, %v949, 0
        %v1074 = vsel %vm1069, %v950, 0
        %v1077 = vsel %vm1069, %v951, 0
        %v1080 = vsel %vm1069, %v952, 0
        %v1083 = vsel %vm1069, %v953, 0
        %v1086 = vsel %vm1069, %v954, 0
        %v1089 = vsel %vm1069, %v955, 0
        %v1092 = vsel %vm1069, %v956, 0
        %v1095 = vsel %vm1069, %v957, 0
        %v1098 = vsel %vm1069, %v958, 0
        %v1101 = vsel %vm1069, %v959, 0
        %v1104 = vsel %vm1069, %v960, 0
        %v1107 = vsel %vm1069, %v961, 0
        %v1110 = vsel %vm1069, %v962, 0
        %v1113 = vsel %vm1069, %v963, 0
        %v1116 = vsel %vm1069, %v964, 0
        %1118 = vmatprep.subr.mxu0 0.0
        %1119 = vmatpush1.msra.mxu0 0.0
        %1120 = vmatprep.subr.mxu0 0.0
        %1121 = vmatpush1.msra.mxu0 0.0
        %1122 = vmatprep.subr.mxu0 0.0
        %1123 = vmatpush1.msra.mxu0 0.0
        %1124 = vmatprep.subr.mxu0 0.0
        %1125 = vmatpush1.msra.mxu0 0.0
        %1126 = vmatprep.subr.mxu0 0.0
        %1127 = vmatpush1.msra.mxu0 0.0
        %1128 = vmatprep.subr.mxu0 0.0
        %1129 = vmatpush1.msra.mxu0 0.0
        %1130 = vmatprep.subr.mxu0 0.0
        %1131 = vmatpush1.msra.mxu0 0.0
        %1132 = vmatprep.subr.mxu0 0.0
        %1133 = vmatpush1.msra.mxu0 0.0
        %1134 = vmatprep.subr.mxu0 0.0
        %1135 = vmatpush1.msra.mxu0 0.0
        %1136 = vmatprep.subr.mxu0 0.0
        %1137 = vmatpush1.msra.mxu0 0.0
        %1138 = vmatprep.subr.mxu0 0.0
        %1139 = vmatpush1.msra.mxu0 0.0
        %1140 = vmatprep.subr.mxu0 0.0
        %1141 = vmatpush1.msra.mxu0 0.0
        %1142 = vmatprep.subr.mxu0 0.0
        %1143 = vmatpush1.msra.mxu0 0.0
        %1144 = vmatprep.subr.mxu0 0.0
        %1145 = vmatpush1.msra.mxu0 0.0
        %1146 = vmatprep.subr.mxu0 0.0
        %1147 = vmatpush1.msra.mxu0 0.0
        %1148 = vmatprep.subr.mxu0 0.0
        %1149 = vmatpush1.msra.mxu0 %v1061
        %1150 = vmatprep.subr.mxu0 0.0
        %1151 = vmatpush2.msra.mxu0 0.0
        %1152 = vmatprep.subr.mxu0 0.0
        %1153 = vmatpush2.msra.mxu0 0.0
        %1154 = vmatprep.subr.mxu0 0.0
        %1155 = vmatpush2.msra.mxu0 0.0
        %1156 = vmatprep.subr.mxu0 0.0
        %1157 = vmatpush2.msra.mxu0 0.0
        %1158 = vmatprep.subr.mxu0 0.0
        %1159 = vmatpush2.msra.mxu0 0.0
        %1160 = vmatprep.subr.mxu0 0.0
        %1161 = vmatpush2.msra.mxu0 0.0
        %1162 = vmatprep.subr.mxu0 0.0
        %1163 = vmatpush2.msra.mxu0 0.0
        %1164 = vmatprep.subr.mxu0 0.0
        %1165 = vmatpush2.msra.mxu0 0.0
        %1166 = vmatprep.subr.mxu0 0.0
        %1167 = vmatpush2.msra.mxu0 0.0
        %1168 = vmatprep.subr.mxu0 0.0
        %1169 = vmatpush2.msra.mxu0 0.0
        %1170 = vmatprep.subr.mxu0 0.0
        %1171 = vmatpush2.msra.mxu0 0.0
        %1172 = vmatprep.subr.mxu0 0.0
        %1173 = vmatpush2.msra.mxu0 0.0
        %1174 = vmatprep.subr.mxu0 0.0
        %1175 = vmatpush2.msra.mxu0 0.0
        %1176 = vmatprep.subr.mxu0 0.0
        %1177 = vmatpush2.msra.mxu0 0.0
        %1178 = vmatprep.subr.mxu0 0.0
        %1179 = vmatpush2.msra.mxu0 0.0
        %1180 = vmatprep.subr.mxu0 0.0
        %1181 = vmatpush2.msra.mxu0 0.0
        %1182 = vmatprep.mubr.f32.mxu0 0.0
        %1183 = vmatmul.mubr.f32.gmra.mxu0 %v1071
        %v1184 = vpop.f32.mrf.mxu0
        %v1185 = vadd.f32 0.0, %v1184
        %v1186 = vpop.f32.mrf.mxu0
        %1187 = vmatprep.mubr.f32.mxu0 0.0
        %1188 = vmatmul.mubr.f32.gmra.mxu0 %v1074
        %v1189 = vpop.f32.mrf.mxu0
        %v1190 = vadd.f32 0.0, %v1189
        %v1191 = vpop.f32.mrf.mxu0
        %1192 = vmatprep.mubr.f32.mxu0 0.0
        %1193 = vmatmul.mubr.f32.gmra.mxu0 %v1077
        %v1194 = vpop.f32.mrf.mxu0
        %v1195 = vadd.f32 0.0, %v1194
        %v1196 = vpop.f32.mrf.mxu0
        %1197 = vmatprep.mubr.f32.mxu0 0.0
        %1198 = vmatmul.mubr.f32.gmra.mxu0 %v1080
        %v1199 = vpop.f32.mrf.mxu0
        %v1200 = vadd.f32 0.0, %v1199
        %v1201 = vpop.f32.mrf.mxu0
        %1202 = vmatprep.mubr.f32.mxu0 0.0
        %1203 = vmatmul.mubr.f32.gmra.mxu0 %v1083
        %v1204 = vpop.f32.mrf.mxu0
        %v1205 = vadd.f32 0.0, %v1204
        %v1206 = vpop.f32.mrf.mxu0
        %1207 = vmatprep.mubr.f32.mxu0 0.0
        %1208 = vmatmul.mubr.f32.gmra.mxu0 %v1086
        %v1209 = vpop.f32.mrf.mxu0
        %v1210 = vadd.f32 0.0, %v1209
        %v1211 = vpop.f32.mrf.mxu0
        %1212 = vmatprep.mubr.f32.mxu0 0.0
        %1213 = vmatmul.mubr.f32.gmra.mxu0 %v1089
        %v1214 = vpop.f32.mrf.mxu0
        %v1215 = vadd.f32 0.0, %v1214
        %v1216 = vpop.f32.mrf.mxu0
        %1217 = vmatprep.mubr.f32.mxu0 0.0
        %1218 = vmatmul.mubr.f32.gmra.mxu0 %v1092
        %v1219 = vpop.f32.mrf.mxu0
        %v1220 = vadd.f32 0.0, %v1219
        %v1221 = vpop.f32.mrf.mxu0
        %1222 = vmatprep.mubr.f32.mxu0 0.0
        %1223 = vmatmul.mubr.f32.gmra.mxu0 %v1095
        %v1224 = vpop.f32.mrf.mxu0
        %v1225 = vadd.f32 0.0, %v1224
        %v1226 = vpop.f32.mrf.mxu0
        %1227 = vmatprep.mubr.f32.mxu0 0.0
        %1228 = vmatmul.mubr.f32.gmra.mxu0 %v1098
        %v1229 = vpop.f32.mrf.mxu0
        %v1230 = vadd.f32 0.0, %v1229
        %v1231 = vpop.f32.mrf.mxu0
        %1232 = vmatprep.mubr.f32.mxu0 0.0
        %1233 = vmatmul.mubr.f32.gmra.mxu0 %v1101
        %v1234 = vpop.f32.mrf.mxu0
        %v1235 = vadd.f32 0.0, %v1234
        %v1236 = vpop.f32.mrf.mxu0
        %1237 = vmatprep.mubr.f32.mxu0 0.0
        %1238 = vmatmul.mubr.f32.gmra.mxu0 %v1104
        %v1239 = vpop.f32.mrf.mxu0
        %v1240 = vadd.f32 0.0, %v1239
        %v1241 = vpop.f32.mrf.mxu0
        %1242 = vmatprep.mubr.f32.mxu0 0.0
        %1243 = vmatmul.mubr.f32.gmra.mxu0 %v1107
        %v1244 = vpop.f32.mrf.mxu0
        %v1245 = vadd.f32 0.0, %v1244
        %v1246 = vpop.f32.mrf.mxu0
        %1247 = vmatprep.mubr.f32.mxu0 0.0
        %1248 = vmatmul.mubr.f32.gmra.mxu0 %v1110
        %v1249 = vpop.f32.mrf.mxu0
        %v1250 = vadd.f32 0.0, %v1249
        %v1251 = vpop.f32.mrf.mxu0
        %1252 = vmatprep.mubr.f32.mxu0 0.0
        %1253 = vmatmul.mubr.f32.gmra.mxu0 %v1113
        %v1254 = vpop.f32.mrf.mxu0
        %v1255 = vadd.f32 0.0, %v1254
        %v1256 = vpop.f32.mrf.mxu0
        %1257 = vmatprep.mubr.f32.mxu0 0.0
        %1258 = vmatmul.mubr.f32.gmra.mxu0 %v1116
        %v1259 = vpop.f32.mrf.mxu0
        %v1260 = vadd.f32 0.0, %v1259
        %v1261 = vpop.f32.mrf.mxu0
        %1262 = vdwg.mxu0
        %v1264 = vsel %vm1069, %v981, 0
        %v1267 = vsel %vm1069, %v982, 0
        %v1270 = vsel %vm1069, %v983, 0
        %v1273 = vsel %vm1069, %v984, 0
        %v1276 = vsel %vm1069, %v985, 0
        %v1279 = vsel %vm1069, %v986, 0
        %v1282 = vsel %vm1069, %v987, 0
        %v1285 = vsel %vm1069, %v988, 0
        %v1288 = vsel %vm1069, %v989, 0
        %v1291 = vsel %vm1069, %v990, 0
        %v1294 = vsel %vm1069, %v991, 0
        %v1297 = vsel %vm1069, %v992, 0
        %v1300 = vsel %vm1069, %v993, 0
        %v1303 = vsel %vm1069, %v994, 0
        %v1306 = vsel %vm1069, %v995, 0
        %v1309 = vsel %vm1069, %v996, 0
        %1311 = vmatprep.subr.mxu0 0.0
        %1312 = vmatpush1.msra.mxu0 0.0
        %1313 = vmatprep.subr.mxu0 0.0
        %1314 = vmatpush1.msra.mxu0 0.0
        %1315 = vmatprep.subr.mxu0 0.0
        %1316 = vmatpush1.msra.mxu0 0.0
        %1317 = vmatprep.subr.mxu0 0.0
        %1318 = vmatpush1.msra.mxu0 0.0
        %1319 = vmatprep.subr.mxu0 0.0
        %1320 = vmatpush1.msra.mxu0 0.0
        %1321 = vmatprep.subr.mxu0 0.0
        %1322 = vmatpush1.msra.mxu0 0.0
        %1323 = vmatprep.subr.mxu0 0.0
        %1324 = vmatpush1.msra.mxu0 0.0
        %1325 = vmatprep.subr.mxu0 0.0
        %1326 = vmatpush1.msra.mxu0 0.0
        %1327 = vmatprep.subr.mxu0 0.0
        %1328 = vmatpush1.msra.mxu0 0.0
        %1329 = vmatprep.subr.mxu0 0.0
        %1330 = vmatpush1.msra.mxu0 0.0
        %1331 = vmatprep.subr.mxu0 0.0
        %1332 = vmatpush1.msra.mxu0 0.0
        %1333 = vmatprep.subr.mxu0 0.0
        %1334 = vmatpush1.msra.mxu0 0.0
        %1335 = vmatprep.subr.mxu0 0.0
        %1336 = vmatpush1.msra.mxu0 0.0
        %1337 = vmatprep.subr.mxu0 0.0
        %1338 = vmatpush1.msra.mxu0 0.0
        %1339 = vmatprep.subr.mxu0 0.0
        %1340 = vmatpush1.msra.mxu0 0.0
        %1341 = vmatprep.subr.mxu0 0.0
        %1342 = vmatpush1.msra.mxu0 %v1062
        %1343 = vmatprep.subr.mxu0 0.0
        %1344 = vmatpush2.msra.mxu0 0.0
        %1345 = vmatprep.subr.mxu0 0.0
        %1346 = vmatpush2.msra.mxu0 0.0
        %1347 = vmatprep.subr.mxu0 0.0
        %1348 = vmatpush2.msra.mxu0 0.0
        %1349 = vmatprep.subr.mxu0 0.0
        %1350 = vmatpush2.msra.mxu0 0.0
        %1351 = vmatprep.subr.mxu0 0.0
        %1352 = vmatpush2.msra.mxu0 0.0
        %1353 = vmatprep.subr.mxu0 0.0
        %1354 = vmatpush2.msra.mxu0 0.0
        %1355 = vmatprep.subr.mxu0 0.0
        %1356 = vmatpush2.msra.mxu0 0.0
        %1357 = vmatprep.subr.mxu0 0.0
        %1358 = vmatpush2.msra.mxu0 0.0
        %1359 = vmatprep.subr.mxu0 0.0
        %1360 = vmatpush2.msra.mxu0 0.0
        %1361 = vmatprep.subr.mxu0 0.0
        %1362 = vmatpush2.msra.mxu0 0.0
        %1363 = vmatprep.subr.mxu0 0.0
        %1364 = vmatpush2.msra.mxu0 0.0
        %1365 = vmatprep.subr.mxu0 0.0
        %1366 = vmatpush2.msra.mxu0 0.0
        %1367 = vmatprep.subr.mxu0 0.0
        %1368 = vmatpush2.msra.mxu0 0.0
        %1369 = vmatprep.subr.mxu0 0.0
        %1370 = vmatpush2.msra.mxu0 0.0
        %1371 = vmatprep.subr.mxu0 0.0
        %1372 = vmatpush2.msra.mxu0 0.0
        %1373 = vmatprep.subr.mxu0 0.0
        %1374 = vmatpush2.msra.mxu0 0.0
        %1375 = vmatprep.mubr.f32.mxu0 0.0
        %1376 = vmatmul.mubr.f32.gmra.mxu0 %v1264
        %v1377 = vpop.f32.mrf.mxu0
        %v1378 = vadd.f32 0.0, %v1377
        %v1379 = vpop.f32.mrf.mxu0
        %1380 = vmatprep.mubr.f32.mxu0 0.0
        %1381 = vmatmul.mubr.f32.gmra.mxu0 %v1267
        %v1382 = vpop.f32.mrf.mxu0
        %v1383 = vadd.f32 0.0, %v1382
        %v1384 = vpop.f32.mrf.mxu0
        %1385 = vmatprep.mubr.f32.mxu0 0.0
        %1386 = vmatmul.mubr.f32.gmra.mxu0 %v1270
        %v1387 = vpop.f32.mrf.mxu0
        %v1388 = vadd.f32 0.0, %v1387
        %v1389 = vpop.f32.mrf.mxu0
        %1390 = vmatprep.mubr.f32.mxu0 0.0
        %1391 = vmatmul.mubr.f32.gmra.mxu0 %v1273
        %v1392 = vpop.f32.mrf.mxu0
        %v1393 = vadd.f32 0.0, %v1392
        %v1394 = vpop.f32.mrf.mxu0
        %1395 = vmatprep.mubr.f32.mxu0 0.0
        %1396 = vmatmul.mubr.f32.gmra.mxu0 %v1276
        %v1397 = vpop.f32.mrf.mxu0
        %v1398 = vadd.f32 0.0, %v1397
        %v1399 = vpop.f32.mrf.mxu0
        %1400 = vmatprep.mubr.f32.mxu0 0.0
        %1401 = vmatmul.mubr.f32.gmra.mxu0 %v1279
        %v1402 = vpop.f32.mrf.mxu0
        %v1403 = vadd.f32 0.0, %v1402
        %v1404 = vpop.f32.mrf.mxu0
        %1405 = vmatprep.mubr.f32.mxu0 0.0
        %1406 = vmatmul.mubr.f32.gmra.mxu0 %v1282
        %v1407 = vpop.f32.mrf.mxu0
        %v1408 = vadd.f32 0.0, %v1407
        %v1409 = vpop.f32.mrf.mxu0
        %1410 = vmatprep.mubr.f32.mxu0 0.0
        %1411 = vmatmul.mubr.f32.gmra.mxu0 %v1285
        %v1412 = vpop.f32.mrf.mxu0
        %v1413 = vadd.f32 0.0, %v1412
        %v1414 = vpop.f32.mrf.mxu0
        %1415 = vmatprep.mubr.f32.mxu0 0.0
        %1416 = vmatmul.mubr.f32.gmra.mxu0 %v1288
        %v1417 = vpop.f32.mrf.mxu0
        %v1418 = vadd.f32 0.0, %v1417
        %v1419 = vpop.f32.mrf.mxu0
        %1420 = vmatprep.mubr.f32.mxu0 0.0
        %1421 = vmatmul.mubr.f32.gmra.mxu0 %v1291
        %v1422 = vpop.f32.mrf.mxu0
        %v1423 = vadd.f32 0.0, %v1422
        %v1424 = vpop.f32.mrf.mxu0
        %1425 = vmatprep.mubr.f32.mxu0 0.0
        %1426 = vmatmul.mubr.f32.gmra.mxu0 %v1294
        %v1427 = vpop.f32.mrf.mxu0
        %v1428 = vadd.f32 0.0, %v1427
        %v1429 = vpop.f32.mrf.mxu0
        %1430 = vmatprep.mubr.f32.mxu0 0.0
        %1431 = vmatmul.mubr.f32.gmra.mxu0 %v1297
        %v1432 = vpop.f32.mrf.mxu0
        %v1433 = vadd.f32 0.0, %v1432
        %v1434 = vpop.f32.mrf.mxu0
        %1435 = vmatprep.mubr.f32.mxu0 0.0
        %1436 = vmatmul.mubr.f32.gmra.mxu0 %v1300
        %v1437 = vpop.f32.mrf.mxu0
        %v1438 = vadd.f32 0.0, %v1437
        %v1439 = vpop.f32.mrf.mxu0
        %1440 = vmatprep.mubr.f32.mxu0 0.0
        %1441 = vmatmul.mubr.f32.gmra.mxu0 %v1303
        %v1442 = vpop.f32.mrf.mxu0
        %v1443 = vadd.f32 0.0, %v1442
        %v1444 = vpop.f32.mrf.mxu0
        %1445 = vmatprep.mubr.f32.mxu0 0.0
        %1446 = vmatmul.mubr.f32.gmra.mxu0 %v1306
        %v1447 = vpop.f32.mrf.mxu0
        %v1448 = vadd.f32 0.0, %v1447
        %v1449 = vpop.f32.mrf.mxu0
        %1450 = vmatprep.mubr.f32.mxu0 0.0
        %1451 = vmatmul.mubr.f32.gmra.mxu0 %v1309
        %v1452 = vpop.f32.mrf.mxu0
        %v1453 = vadd.f32 0.0, %v1452
        %v1454 = vpop.f32.mrf.mxu0
        %1455 = vdwg.mxu0
        %v1457 = vsel %vm1069, %v1013, 0
        %v1460 = vsel %vm1069, %v1014, 0
        %v1463 = vsel %vm1069, %v1015, 0
        %v1466 = vsel %vm1069, %v1016, 0
        %v1469 = vsel %vm1069, %v1017, 0
        %v1472 = vsel %vm1069, %v1018, 0
        %v1475 = vsel %vm1069, %v1019, 0
        %v1478 = vsel %vm1069, %v1020, 0
        %v1481 = vsel %vm1069, %v1021, 0
        %v1484 = vsel %vm1069, %v1022, 0
        %v1487 = vsel %vm1069, %v1023, 0
        %v1490 = vsel %vm1069, %v1024, 0
        %v1493 = vsel %vm1069, %v1025, 0
        %v1496 = vsel %vm1069, %v1026, 0
        %v1499 = vsel %vm1069, %v1027, 0
        %v1502 = vsel %vm1069, %v1028, 0
        %1504 = vmatprep.subr.mxu0 0.0
        %1505 = vmatpush1.msra.mxu0 0.0
        %1506 = vmatprep.subr.mxu0 0.0
        %1507 = vmatpush1.msra.mxu0 0.0
        %1508 = vmatprep.subr.mxu0 0.0
        %1509 = vmatpush1.msra.mxu0 0.0
        %1510 = vmatprep.subr.mxu0 0.0
        %1511 = vmatpush1.msra.mxu0 0.0
        %1512 = vmatprep.subr.mxu0 0.0
        %1513 = vmatpush1.msra.mxu0 0.0
        %1514 = vmatprep.subr.mxu0 0.0
        %1515 = vmatpush1.msra.mxu0 0.0
        %1516 = vmatprep.subr.mxu0 0.0
        %1517 = vmatpush1.msra.mxu0 0.0
        %1518 = vmatprep.subr.mxu0 0.0
        %1519 = vmatpush1.msra.mxu0 0.0
        %1520 = vmatprep.subr.mxu0 0.0
        %1521 = vmatpush1.msra.mxu0 0.0
        %1522 = vmatprep.subr.mxu0 0.0
        %1523 = vmatpush1.msra.mxu0 0.0
        %1524 = vmatprep.subr.mxu0 0.0
        %1525 = vmatpush1.msra.mxu0 0.0
        %1526 = vmatprep.subr.mxu0 0.0
        %1527 = vmatpush1.msra.mxu0 0.0
        %1528 = vmatprep.subr.mxu0 0.0
        %1529 = vmatpush1.msra.mxu0 0.0
        %1530 = vmatprep.subr.mxu0 0.0
        %1531 = vmatpush1.msra.mxu0 0.0
        %1532 = vmatprep.subr.mxu0 0.0
        %1533 = vmatpush1.msra.mxu0 0.0
        %1534 = vmatprep.subr.mxu0 0.0
        %1535 = vmatpush1.msra.mxu0 %v1063
        %1536 = vmatprep.subr.mxu0 0.0
        %1537 = vmatpush2.msra.mxu0 0.0
        %1538 = vmatprep.subr.mxu0 0.0
        %1539 = vmatpush2.msra.mxu0 0.0
        %1540 = vmatprep.subr.mxu0 0.0
        %1541 = vmatpush2.msra.mxu0 0.0
        %1542 = vmatprep.subr.mxu0 0.0
        %1543 = vmatpush2.msra.mxu0 0.0
        %1544 = vmatprep.subr.mxu0 0.0
        %1545 = vmatpush2.msra.mxu0 0.0
        %1546 = vmatprep.subr.mxu0 0.0
        %1547 = vmatpush2.msra.mxu0 0.0
        %1548 = vmatprep.subr.mxu0 0.0
        %1549 = vmatpush2.msra.mxu0 0.0
        %1550 = vmatprep.subr.mxu0 0.0
        %1551 = vmatpush2.msra.mxu0 0.0
        %1552 = vmatprep.subr.mxu0 0.0
        %1553 = vmatpush2.msra.mxu0 0.0
        %1554 = vmatprep.subr.mxu0 0.0
        %1555 = vmatpush2.msra.mxu0 0.0
        %1556 = vmatprep.subr.mxu0 0.0
        %1557 = vmatpush2.msra.mxu0 0.0
        %1558 = vmatprep.subr.mxu0 0.0
        %1559 = vmatpush2.msra.mxu0 0.0
        %1560 = vmatprep.subr.mxu0 0.0
        %1561 = vmatpush2.msra.mxu0 0.0
        %1562 = vmatprep.subr.mxu0 0.0
        %1563 = vmatpush2.msra.mxu0 0.0
        %1564 = vmatprep.subr.mxu0 0.0
        %1565 = vmatpush2.msra.mxu0 0.0
        %1566 = vmatprep.subr.mxu0 0.0
        %1567 = vmatpush2.msra.mxu0 0.0
        %1568 = vmatprep.mubr.f32.mxu0 0.0
        %1569 = vmatmul.mubr.f32.gmra.mxu0 %v1457
        %v1570 = vpop.f32.mrf.mxu0
        %v1571 = vadd.f32 0.0, %v1570
        %v1572 = vpop.f32.mrf.mxu0
        %1573 = vmatprep.mubr.f32.mxu0 0.0
        %1574 = vmatmul.mubr.f32.gmra.mxu0 %v1460
        %v1575 = vpop.f32.mrf.mxu0
        %v1576 = vadd.f32 0.0, %v1575
        %v1577 = vpop.f32.mrf.mxu0
        %1578 = vmatprep.mubr.f32.mxu0 0.0
        %1579 = vmatmul.mubr.f32.gmra.mxu0 %v1463
        %v1580 = vpop.f32.mrf.mxu0
        %v1581 = vadd.f32 0.0, %v1580
        %v1582 = vpop.f32.mrf.mxu0
        %1583 = vmatprep.mubr.f32.mxu0 0.0
        %1584 = vmatmul.mubr.f32.gmra.mxu0 %v1466
        %v1585 = vpop.f32.mrf.mxu0
        %v1586 = vadd.f32 0.0, %v1585
        %v1587 = vpop.f32.mrf.mxu0
        %1588 = vmatprep.mubr.f32.mxu0 0.0
        %1589 = vmatmul.mubr.f32.gmra.mxu0 %v1469
        %v1590 = vpop.f32.mrf.mxu0
        %v1591 = vadd.f32 0.0, %v1590
        %v1592 = vpop.f32.mrf.mxu0
        %1593 = vmatprep.mubr.f32.mxu0 0.0
        %1594 = vmatmul.mubr.f32.gmra.mxu0 %v1472
        %v1595 = vpop.f32.mrf.mxu0
        %v1596 = vadd.f32 0.0, %v1595
        %v1597 = vpop.f32.mrf.mxu0
        %1598 = vmatprep.mubr.f32.mxu0 0.0
        %1599 = vmatmul.mubr.f32.gmra.mxu0 %v1475
        %v1600 = vpop.f32.mrf.mxu0
        %v1601 = vadd.f32 0.0, %v1600
        %v1602 = vpop.f32.mrf.mxu0
        %1603 = vmatprep.mubr.f32.mxu0 0.0
        %1604 = vmatmul.mubr.f32.gmra.mxu0 %v1478
        %v1605 = vpop.f32.mrf.mxu0
        %v1606 = vadd.f32 0.0, %v1605
        %v1607 = vpop.f32.mrf.mxu0
        %1608 = vmatprep.mubr.f32.mxu0 0.0
        %1609 = vmatmul.mubr.f32.gmra.mxu0 %v1481
        %v1610 = vpop.f32.mrf.mxu0
        %v1611 = vadd.f32 0.0, %v1610
        %v1612 = vpop.f32.mrf.mxu0
        %1613 = vmatprep.mubr.f32.mxu0 0.0
        %1614 = vmatmul.mubr.f32.gmra.mxu0 %v1484
        %v1615 = vpop.f32.mrf.mxu0
        %v1616 = vadd.f32 0.0, %v1615
        %v1617 = vpop.f32.mrf.mxu0
        %1618 = vmatprep.mubr.f32.mxu0 0.0
        %1619 = vmatmul.mubr.f32.gmra.mxu0 %v1487
        %v1620 = vpop.f32.mrf.mxu0
        %v1621 = vadd.f32 0.0, %v1620
        %v1622 = vpop.f32.mrf.mxu0
        %1623 = vmatprep.mubr.f32.mxu0 0.0
        %1624 = vmatmul.mubr.f32.gmra.mxu0 %v1490
        %v1625 = vpop.f32.mrf.mxu0
        %v1626 = vadd.f32 0.0, %v1625
        %v1627 = vpop.f32.mrf.mxu0
        %1628 = vmatprep.mubr.f32.mxu0 0.0
        %1629 = vmatmul.mubr.f32.gmra.mxu0 %v1493
        %v1630 = vpop.f32.mrf.mxu0
        %v1631 = vadd.f32 0.0, %v1630
        %v1632 = vpop.f32.mrf.mxu0
        %1633 = vmatprep.mubr.f32.mxu0 0.0
        %1634 = vmatmul.mubr.f32.gmra.mxu0 %v1496
        %v1635 = vpop.f32.mrf.mxu0
        %v1636 = vadd.f32 0.0, %v1635
        %v1637 = vpop.f32.mrf.mxu0
        %1638 = vmatprep.mubr.f32.mxu0 0.0
        %1639 = vmatmul.mubr.f32.gmra.mxu0 %v1499
        %v1640 = vpop.f32.mrf.mxu0
        %v1641 = vadd.f32 0.0, %v1640
        %v1642 = vpop.f32.mrf.mxu0
        %1643 = vmatprep.mubr.f32.mxu0 0.0
        %1644 = vmatmul.mubr.f32.gmra.mxu0 %v1502
        %v1645 = vpop.f32.mrf.mxu0
        %v1646 = vadd.f32 0.0, %v1645
        %v1647 = vpop.f32.mrf.mxu0
        %1648 = vdwg.mxu0
        %v1650 = vsel %vm1069, %v1045, 0
        %v1653 = vsel %vm1069, %v1046, 0
        %v1656 = vsel %vm1069, %v1047, 0
        %v1659 = vsel %vm1069, %v1048, 0
        %v1662 = vsel %vm1069, %v1049, 0
        %v1665 = vsel %vm1069, %v1050, 0
        %v1668 = vsel %vm1069, %v1051, 0
        %v1671 = vsel %vm1069, %v1052, 0
        %v1674 = vsel %vm1069, %v1053, 0
        %v1677 = vsel %vm1069, %v1054, 0
        %v1680 = vsel %vm1069, %v1055, 0
        %v1683 = vsel %vm1069, %v1056, 0
        %v1686 = vsel %vm1069, %v1057, 0
        %v1689 = vsel %vm1069, %v1058, 0
        %v1692 = vsel %vm1069, %v1059, 0
        %v1695 = vsel %vm1069, %v1060, 0
        %1697 = vmatprep.subr.mxu0 0.0
        %1698 = vmatpush1.msra.mxu0 0.0
        %1699 = vmatprep.subr.mxu0 0.0
        %1700 = vmatpush1.msra.mxu0 0.0
        %1701 = vmatprep.subr.mxu0 0.0
        %1702 = vmatpush1.msra.mxu0 0.0
        %1703 = vmatprep.subr.mxu0 0.0
        %1704 = vmatpush1.msra.mxu0 0.0
        %1705 = vmatprep.subr.mxu0 0.0
        %1706 = vmatpush1.msra.mxu0 0.0
        %1707 = vmatprep.subr.mxu0 0.0
        %1708 = vmatpush1.msra.mxu0 0.0
        %1709 = vmatprep.subr.mxu0 0.0
        %1710 = vmatpush1.msra.mxu0 0.0
        %1711 = vmatprep.subr.mxu0 0.0
        %1712 = vmatpush1.msra.mxu0 0.0
        %1713 = vmatprep.subr.mxu0 0.0
        %1714 = vmatpush1.msra.mxu0 0.0
        %1715 = vmatprep.subr.mxu0 0.0
        %1716 = vmatpush1.msra.mxu0 0.0
        %1717 = vmatprep.subr.mxu0 0.0
        %1718 = vmatpush1.msra.mxu0 0.0
        %1719 = vmatprep.subr.mxu0 0.0
        %1720 = vmatpush1.msra.mxu0 0.0
        %1721 = vmatprep.subr.mxu0 0.0
        %1722 = vmatpush1.msra.mxu0 0.0
        %1723 = vmatprep.subr.mxu0 0.0
        %1724 = vmatpush1.msra.mxu0 0.0
        %1725 = vmatprep.subr.mxu0 0.0
        %1726 = vmatpush1.msra.mxu0 0.0
        %1727 = vmatprep.subr.mxu0 0.0
        %1728 = vmatpush1.msra.mxu0 %v1064
        %1729 = vmatprep.subr.mxu0 0.0
        %1730 = vmatpush2.msra.mxu0 0.0
        %1731 = vmatprep.subr.mxu0 0.0
        %1732 = vmatpush2.msra.mxu0 0.0
        %1733 = vmatprep.subr.mxu0 0.0
        %1734 = vmatpush2.msra.mxu0 0.0
        %1735 = vmatprep.subr.mxu0 0.0
        %1736 = vmatpush2.msra.mxu0 0.0
        %1737 = vmatprep.subr.mxu0 0.0
        %1738 = vmatpush2.msra.mxu0 0.0
        %1739 = vmatprep.subr.mxu0 0.0
        %1740 = vmatpush2.msra.mxu0 0.0
        %1741 = vmatprep.subr.mxu0 0.0
        %1742 = vmatpush2.msra.mxu0 0.0
        %1743 = vmatprep.subr.mxu0 0.0
        %1744 = vmatpush2.msra.mxu0 0.0
        %1745 = vmatprep.subr.mxu0 0.0
        %1746 = vmatpush2.msra.mxu0 0.0
        %1747 = vmatprep.subr.mxu0 0.0
        %1748 = vmatpush2.msra.mxu0 0.0
        %1749 = vmatprep.subr.mxu0 0.0
        %1750 = vmatpush2.msra.mxu0 0.0
        %1751 = vmatprep.subr.mxu0 0.0
        %1752 = vmatpush2.msra.mxu0 0.0
        %1753 = vmatprep.subr.mxu0 0.0
        %1754 = vmatpush2.msra.mxu0 0.0
        %1755 = vmatprep.subr.mxu0 0.0
        %1756 = vmatpush2.msra.mxu0 0.0
        %1757 = vmatprep.subr.mxu0 0.0
        %1758 = vmatpush2.msra.mxu0 0.0
        %1759 = vmatprep.subr.mxu0 0.0
        %1760 = vmatpush2.msra.mxu0 0.0
        %1761 = vmatprep.mubr.f32.mxu0 0.0
        %1762 = vmatmul.mubr.f32.gmra.mxu0 %v1650
        %v1763 = vpop.f32.mrf.mxu0
        %v1764 = vadd.f32 0.0, %v1763
        %v1765 = vpop.f32.mrf.mxu0
        %1766 = vmatprep.mubr.f32.mxu0 0.0
        %1767 = vmatmul.mubr.f32.gmra.mxu0 %v1653
        %v1768 = vpop.f32.mrf.mxu0
        %v1769 = vadd.f32 0.0, %v1768
        %v1770 = vpop.f32.mrf.mxu0
        %1771 = vmatprep.mubr.f32.mxu0 0.0
        %1772 = vmatmul.mubr.f32.gmra.mxu0 %v1656
        %v1773 = vpop.f32.mrf.mxu0
        %v1774 = vadd.f32 0.0, %v1773
        %v1775 = vpop.f32.mrf.mxu0
        %1776 = vmatprep.mubr.f32.mxu0 0.0
        %1777 = vmatmul.mubr.f32.gmra.mxu0 %v1659
        %v1778 = vpop.f32.mrf.mxu0
        %v1779 = vadd.f32 0.0, %v1778
        %v1780 = vpop.f32.mrf.mxu0
        %1781 = vmatprep.mubr.f32.mxu0 0.0
        %1782 = vmatmul.mubr.f32.gmra.mxu0 %v1662
        %v1783 = vpop.f32.mrf.mxu0
        %v1784 = vadd.f32 0.0, %v1783
        %v1785 = vpop.f32.mrf.mxu0
        %1786 = vmatprep.mubr.f32.mxu0 0.0
        %1787 = vmatmul.mubr.f32.gmra.mxu0 %v1665
        %v1788 = vpop.f32.mrf.mxu0
        %v1789 = vadd.f32 0.0, %v1788
        %v1790 = vpop.f32.mrf.mxu0
        %1791 = vmatprep.mubr.f32.mxu0 0.0
        %1792 = vmatmul.mubr.f32.gmra.mxu0 %v1668
        %v1793 = vpop.f32.mrf.mxu0
        %v1794 = vadd.f32 0.0, %v1793
        %v1795 = vpop.f32.mrf.mxu0
        %1796 = vmatprep.mubr.f32.mxu0 0.0
        %1797 = vmatmul.mubr.f32.gmra.mxu0 %v1671
        %v1798 = vpop.f32.mrf.mxu0
        %v1799 = vadd.f32 0.0, %v1798
        %v1800 = vpop.f32.mrf.mxu0
        %1801 = vmatprep.mubr.f32.mxu0 0.0
        %1802 = vmatmul.mubr.f32.gmra.mxu0 %v1674
        %v1803 = vpop.f32.mrf.mxu0
        %v1804 = vadd.f32 0.0, %v1803
        %v1805 = vpop.f32.mrf.mxu0
        %1806 = vmatprep.mubr.f32.mxu0 0.0
        %1807 = vmatmul.mubr.f32.gmra.mxu0 %v1677
        %v1808 = vpop.f32.mrf.mxu0
        %v1809 = vadd.f32 0.0, %v1808
        %v1810 = vpop.f32.mrf.mxu0
        %1811 = vmatprep.mubr.f32.mxu0 0.0
        %1812 = vmatmul.mubr.f32.gmra.mxu0 %v1680
        %v1813 = vpop.f32.mrf.mxu0
        %v1814 = vadd.f32 0.0, %v1813
        %v1815 = vpop.f32.mrf.mxu0
        %1816 = vmatprep.mubr.f32.mxu0 0.0
        %1817 = vmatmul.mubr.f32.gmra.mxu0 %v1683
        %v1818 = vpop.f32.mrf.mxu0
        %v1819 = vadd.f32 0.0, %v1818
        %v1820 = vpop.f32.mrf.mxu0
        %1821 = vmatprep.mubr.f32.mxu0 0.0
        %1822 = vmatmul.mubr.f32.gmra.mxu0 %v1686
        %v1823 = vpop.f32.mrf.mxu0
        %v1824 = vadd.f32 0.0, %v1823
        %v1825 = vpop.f32.mrf.mxu0
        %1826 = vmatprep.mubr.f32.mxu0 0.0
        %1827 = vmatmul.mubr.f32.gmra.mxu0 %v1689
        %v1828 = vpop.f32.mrf.mxu0
        %v1829 = vadd.f32 0.0, %v1828
        %v1830 = vpop.f32.mrf.mxu0
        %1831 = vmatprep.mubr.f32.mxu0 0.0
        %1832 = vmatmul.mubr.f32.gmra.mxu0 %v1692
        %v1833 = vpop.f32.mrf.mxu0
        %v1834 = vadd.f32 0.0, %v1833
        %v1835 = vpop.f32.mrf.mxu0
        %1836 = vmatprep.mubr.f32.mxu0 0.0
        %1837 = vmatmul.mubr.f32.gmra.mxu0 %v1695
        %v1838 = vpop.f32.mrf.mxu0
        %v1839 = vadd.f32 0.0, %v1838
        %v1840 = vpop.f32.mrf.mxu0
        %1841 = vdwg.mxu0
        %v1842 = vlaneseq
        %v1843 = vand.u32 %v1842, 127
        %vm1844 = vcmp.lt.s32.totalorder %v1843, 8
        %v1845 = vsel %vm1844, %v1185, -1e+30
        %v1846 = vsel %vm1844, %v1190, -1e+30
        %v1847 = vsel %vm1844, %v1195, -1e+30
        %v1848 = vsel %vm1844, %v1200, -1e+30
        %v1849 = vsel %vm1844, %v1205, -1e+30
        %v1850 = vsel %vm1844, %v1210, -1e+30
        %v1851 = vsel %vm1844, %v1215, -1e+30
        %v1852 = vsel %vm1844, %v1220, -1e+30
        %v1853 = vsel %vm1844, %v1225, -1e+30
        %v1854 = vsel %vm1844, %v1230, -1e+30
        %v1855 = vsel %vm1844, %v1235, -1e+30
        %v1856 = vsel %vm1844, %v1240, -1e+30
        %v1857 = vsel %vm1844, %v1245, -1e+30
        %v1858 = vsel %vm1844, %v1250, -1e+30
        %v1859 = vsel %vm1844, %v1255, -1e+30
        %v1860 = vsel %vm1844, %v1260, -1e+30
        %v1861 = vsel %vm1844, %v1378, -1e+30
        %v1862 = vsel %vm1844, %v1383, -1e+30
        %v1863 = vsel %vm1844, %v1388, -1e+30
        %v1864 = vsel %vm1844, %v1393, -1e+30
        %v1865 = vsel %vm1844, %v1398, -1e+30
        %v1866 = vsel %vm1844, %v1403, -1e+30
        %v1867 = vsel %vm1844, %v1408, -1e+30
        %v1868 = vsel %vm1844, %v1413, -1e+30
        %v1869 = vsel %vm1844, %v1418, -1e+30
        %v1870 = vsel %vm1844, %v1423, -1e+30
        %v1871 = vsel %vm1844, %v1428, -1e+30
        %v1872 = vsel %vm1844, %v1433, -1e+30
        %v1873 = vsel %vm1844, %v1438, -1e+30
        %v1874 = vsel %vm1844, %v1443, -1e+30
        %v1875 = vsel %vm1844, %v1448, -1e+30
        %v1876 = vsel %vm1844, %v1453, -1e+30
        %v1877 = vsel %vm1844, %v1571, -1e+30
        %v1878 = vsel %vm1844, %v1576, -1e+30
        %v1879 = vsel %vm1844, %v1581, -1e+30
        %v1880 = vsel %vm1844, %v1586, -1e+30
        %v1881 = vsel %vm1844, %v1591, -1e+30
        %v1882 = vsel %vm1844, %v1596, -1e+30
        %v1883 = vsel %vm1844, %v1601, -1e+30
        %v1884 = vsel %vm1844, %v1606, -1e+30
        %v1885 = vsel %vm1844, %v1611, -1e+30
        %v1886 = vsel %vm1844, %v1616, -1e+30
        %v1887 = vsel %vm1844, %v1621, -1e+30
        %v1888 = vsel %vm1844, %v1626, -1e+30
        %v1889 = vsel %vm1844, %v1631, -1e+30
        %v1890 = vsel %vm1844, %v1636, -1e+30
        %v1891 = vsel %vm1844, %v1641, -1e+30
        %v1892 = vsel %vm1844, %v1646, -1e+30
        %v1893 = vsel %vm1844, %v1764, -1e+30
        %v1894 = vsel %vm1844, %v1769, -1e+30
        %v1895 = vsel %vm1844, %v1774, -1e+30
        %v1896 = vsel %vm1844, %v1779, -1e+30
        %v1897 = vsel %vm1844, %v1784, -1e+30
        %v1898 = vsel %vm1844, %v1789, -1e+30
        %v1899 = vsel %vm1844, %v1794, -1e+30
        %v1900 = vsel %vm1844, %v1799, -1e+30
        %v1901 = vsel %vm1844, %v1804, -1e+30
        %v1902 = vsel %vm1844, %v1809, -1e+30
        %v1903 = vsel %vm1844, %v1814, -1e+30
        %v1904 = vsel %vm1844, %v1819, -1e+30
        %v1905 = vsel %vm1844, %v1824, -1e+30
        %v1906 = vsel %vm1844, %v1829, -1e+30
        %v1907 = vsel %vm1844, %v1834, -1e+30
        %v1908 = vsel %vm1844, %v1839, -1e+30
        %1909 = vmax.xlane.f32.xlu0 %v1845
        %v1910 = vpop.xlane.xlu0 %1909
        %1911 = vmax.xlane.f32.xlu0 %v1846
        %v1912 = vpop.xlane.xlu0 %1911
        %1913 = vmax.xlane.f32.xlu0 %v1847
        %v1914 = vpop.xlane.xlu0 %1913
        %1915 = vmax.xlane.f32.xlu0 %v1848
        %v1916 = vpop.xlane.xlu0 %1915
        %1917 = vmax.xlane.f32.xlu0 %v1849
        %v1918 = vpop.xlane.xlu0 %1917
        %1919 = vmax.xlane.f32.xlu0 %v1850
        %v1920 = vpop.xlane.xlu0 %1919
        %1921 = vmax.xlane.f32.xlu0 %v1851
        %v1922 = vpop.xlane.xlu0 %1921
        %1923 = vmax.xlane.f32.xlu0 %v1852
        %v1924 = vpop.xlane.xlu0 %1923
        %1925 = vmax.xlane.f32.xlu0 %v1853
        %v1926 = vpop.xlane.xlu0 %1925
        %1927 = vmax.xlane.f32.xlu0 %v1854
        %v1928 = vpop.xlane.xlu0 %1927
        %1929 = vmax.xlane.f32.xlu0 %v1855
        %v1930 = vpop.xlane.xlu0 %1929
        %1931 = vmax.xlane.f32.xlu0 %v1856
        %v1932 = vpop.xlane.xlu0 %1931
        %1933 = vmax.xlane.f32.xlu0 %v1857
        %v1934 = vpop.xlane.xlu0 %1933
        %1935 = vmax.xlane.f32.xlu0 %v1858
        %v1936 = vpop.xlane.xlu0 %1935
        %1937 = vmax.xlane.f32.xlu0 %v1859
        %v1938 = vpop.xlane.xlu0 %1937
        %1939 = vmax.xlane.f32.xlu0 %v1860
        %v1940 = vpop.xlane.xlu0 %1939
        %1941 = vmax.xlane.f32.xlu0 %v1861
        %v1942 = vpop.xlane.xlu0 %1941
        %1943 = vmax.xlane.f32.xlu0 %v1862
        %v1944 = vpop.xlane.xlu0 %1943
        %1945 = vmax.xlane.f32.xlu0 %v1863
        %v1946 = vpop.xlane.xlu0 %1945
        %1947 = vmax.xlane.f32.xlu0 %v1864
        %v1948 = vpop.xlane.xlu0 %1947
        %1949 = vmax.xlane.f32.xlu0 %v1865
        %v1950 = vpop.xlane.xlu0 %1949
        %1951 = vmax.xlane.f32.xlu0 %v1866
        %v1952 = vpop.xlane.xlu0 %1951
        %1953 = vmax.xlane.f32.xlu0 %v1867
        %v1954 = vpop.xlane.xlu0 %1953
        %1955 = vmax.xlane.f32.xlu0 %v1868
        %v1956 = vpop.xlane.xlu0 %1955
        %1957 = vmax.xlane.f32.xlu0 %v1869
        %v1958 = vpop.xlane.xlu0 %1957
        %1959 = vmax.xlane.f32.xlu0 %v1870
        %v1960 = vpop.xlane.xlu0 %1959
        %1961 = vmax.xlane.f32.xlu0 %v1871
        %v1962 = vpop.xlane.xlu0 %1961
        %1963 = vmax.xlane.f32.xlu0 %v1872
        %v1964 = vpop.xlane.xlu0 %1963
        %1965 = vmax.xlane.f32.xlu0 %v1873
        %v1966 = vpop.xlane.xlu0 %1965
        %1967 = vmax.xlane.f32.xlu0 %v1874
        %v1968 = vpop.xlane.xlu0 %1967
        %1969 = vmax.xlane.f32.xlu0 %v1875
        %v1970 = vpop.xlane.xlu0 %1969
        %1971 = vmax.xlane.f32.xlu0 %v1876
        %v1972 = vpop.xlane.xlu0 %1971
        %1973 = vmax.xlane.f32.xlu0 %v1877
        %v1974 = vpop.xlane.xlu0 %1973
        %1975 = vmax.xlane.f32.xlu0 %v1878
        %v1976 = vpop.xlane.xlu0 %1975
        %1977 = vmax.xlane.f32.xlu0 %v1879
        %v1978 = vpop.xlane.xlu0 %1977
        %1979 = vmax.xlane.f32.xlu0 %v1880
        %v1980 = vpop.xlane.xlu0 %1979
        %1981 = vmax.xlane.f32.xlu0 %v1881
        %v1982 = vpop.xlane.xlu0 %1981
        %1983 = vmax.xlane.f32.xlu0 %v1882
        %v1984 = vpop.xlane.xlu0 %1983
        %1985 = vmax.xlane.f32.xlu0 %v1883
        %v1986 = vpop.xlane.xlu0 %1985
        %1987 = vmax.xlane.f32.xlu0 %v1884
        %v1988 = vpop.xlane.xlu0 %1987
        %1989 = vmax.xlane.f32.xlu0 %v1885
        %v1990 = vpop.xlane.xlu0 %1989
        %1991 = vmax.xlane.f32.xlu0 %v1886
        %v1992 = vpop.xlane.xlu0 %1991
        %1993 = vmax.xlane.f32.xlu0 %v1887
        %v1994 = vpop.xlane.xlu0 %1993
        %1995 = vmax.xlane.f32.xlu0 %v1888
        %v1996 = vpop.xlane.xlu0 %1995
        %1997 = vmax.xlane.f32.xlu0 %v1889
        %v1998 = vpop.xlane.xlu0 %1997
        %1999 = vmax.xlane.f32.xlu0 %v1890
        %v2000 = vpop.xlane.xlu0 %1999
        %2001 = vmax.xlane.f32.xlu0 %v1891
        %v2002 = vpop.xlane.xlu0 %2001
        %2003 = vmax.xlane.f32.xlu0 %v1892
        %v2004 = vpop.xlane.xlu0 %2003
        %2005 = vmax.xlane.f32.xlu0 %v1893
        %v2006 = vpop.xlane.xlu0 %2005
        %2007 = vmax.xlane.f32.xlu0 %v1894
        %v2008 = vpop.xlane.xlu0 %2007
        %2009 = vmax.xlane.f32.xlu0 %v1895
        %v2010 = vpop.xlane.xlu0 %2009
        %2011 = vmax.xlane.f32.xlu0 %v1896
        %v2012 = vpop.xlane.xlu0 %2011
        %2013 = vmax.xlane.f32.xlu0 %v1897
        %v2014 = vpop.xlane.xlu0 %2013
        %2015 = vmax.xlane.f32.xlu0 %v1898
        %v2016 = vpop.xlane.xlu0 %2015
        %2017 = vmax.xlane.f32.xlu0 %v1899
        %v2018 = vpop.xlane.xlu0 %2017
        %2019 = vmax.xlane.f32.xlu0 %v1900
        %v2020 = vpop.xlane.xlu0 %2019
        %2021 = vmax.xlane.f32.xlu0 %v1901
        %v2022 = vpop.xlane.xlu0 %2021
        %2023 = vmax.xlane.f32.xlu0 %v1902
        %v2024 = vpop.xlane.xlu0 %2023
        %2025 = vmax.xlane.f32.xlu0 %v1903
        %v2026 = vpop.xlane.xlu0 %2025
        %2027 = vmax.xlane.f32.xlu0 %v1904
        %v2028 = vpop.xlane.xlu0 %2027
        %2029 = vmax.xlane.f32.xlu0 %v1905
        %v2030 = vpop.xlane.xlu0 %2029
        %2031 = vmax.xlane.f32.xlu0 %v1906
        %v2032 = vpop.xlane.xlu0 %2031
        %2033 = vmax.xlane.f32.xlu0 %v1907
        %v2034 = vpop.xlane.xlu0 %2033
        %2035 = vmax.xlane.f32.xlu0 %v1908
        %v2036 = vpop.xlane.xlu0 %2035
        %v2037 = vsub.f32 %v1845, %v1910
        %v2038 = vsub.f32 %v1846, %v1912
        %v2039 = vsub.f32 %v1847, %v1914
        %v2040 = vsub.f32 %v1848, %v1916
        %v2041 = vsub.f32 %v1849, %v1918
        %v2042 = vsub.f32 %v1850, %v1920
        %v2043 = vsub.f32 %v1851, %v1922
        %v2044 = vsub.f32 %v1852, %v1924
        %v2045 = vsub.f32 %v1853, %v1926
        %v2046 = vsub.f32 %v1854, %v1928
        %v2047 = vsub.f32 %v1855, %v1930
        %v2048 = vsub.f32 %v1856, %v1932
        %v2049 = vsub.f32 %v1857, %v1934
        %v2050 = vsub.f32 %v1858, %v1936
        %v2051 = vsub.f32 %v1859, %v1938
        %v2052 = vsub.f32 %v1860, %v1940
        %v2053 = vsub.f32 %v1861, %v1942
        %v2054 = vsub.f32 %v1862, %v1944
        %v2055 = vsub.f32 %v1863, %v1946
        %v2056 = vsub.f32 %v1864, %v1948
        %v2057 = vsub.f32 %v1865, %v1950
        %v2058 = vsub.f32 %v1866, %v1952
        %v2059 = vsub.f32 %v1867, %v1954
        %v2060 = vsub.f32 %v1868, %v1956
        %v2061 = vsub.f32 %v1869, %v1958
        %v2062 = vsub.f32 %v1870, %v1960
        %v2063 = vsub.f32 %v1871, %v1962
        %v2064 = vsub.f32 %v1872, %v1964
        %v2065 = vsub.f32 %v1873, %v1966
        %v2066 = vsub.f32 %v1874, %v1968
        %v2067 = vsub.f32 %v1875, %v1970
        %v2068 = vsub.f32 %v1876, %v1972
        %v2069 = vsub.f32 %v1877, %v1974
        %v2070 = vsub.f32 %v1878, %v1976
        %v2071 = vsub.f32 %v1879, %v1978
        %v2072 = vsub.f32 %v1880, %v1980
        %v2073 = vsub.f32 %v1881, %v1982
        %v2074 = vsub.f32 %v1882, %v1984
        %v2075 = vsub.f32 %v1883, %v1986
        %v2076 = vsub.f32 %v1884, %v1988
        %v2077 = vsub.f32 %v1885, %v1990
        %v2078 = vsub.f32 %v1886, %v1992
        %v2079 = vsub.f32 %v1887, %v1994
        %v2080 = vsub.f32 %v1888, %v1996
        %v2081 = vsub.f32 %v1889, %v1998
        %v2082 = vsub.f32 %v1890, %v2000
        %v2083 = vsub.f32 %v1891, %v2002
        %v2084 = vsub.f32 %v1892, %v2004
        %v2085 = vsub.f32 %v1893, %v2006
        %v2086 = vsub.f32 %v1894, %v2008
        %v2087 = vsub.f32 %v1895, %v2010
        %v2088 = vsub.f32 %v1896, %v2012
        %v2089 = vsub.f32 %v1897, %v2014
        %v2090 = vsub.f32 %v1898, %v2016
        %v2091 = vsub.f32 %v1899, %v2018
        %v2092 = vsub.f32 %v1900, %v2020
        %v2093 = vsub.f32 %v1901, %v2022
        %v2094 = vsub.f32 %v1902, %v2024
        %v2095 = vsub.f32 %v1903, %v2026
        %v2096 = vsub.f32 %v1904, %v2028
        %v2097 = vsub.f32 %v1905, %v2030
        %v2098 = vsub.f32 %v1906, %v2032
        %v2099 = vsub.f32 %v1907, %v2034
        %v2100 = vsub.f32 %v1908, %v2036
        %v2101 = vmul.f32 %v2037, 1.442695
        %v2102 = vpow.pop %v2101
        %v2103 = vmul.f32 %v2038, 1.442695
        %v2104 = vpow.pop %v2103
        %v2105 = vmul.f32 %v2039, 1.442695
        %v2106 = vpow.pop %v2105
        %v2107 = vmul.f32 %v2040, 1.442695
        %v2108 = vpow.pop %v2107
        %v2109 = vmul.f32 %v2041, 1.442695
        %v2110 = vpow.pop %v2109
        %v2111 = vmul.f32 %v2042, 1.442695
        %v2112 = vpow.pop %v2111
        %v2113 = vmul.f32 %v2043, 1.442695
        %v2114 = vpow.pop %v2113
        %v2115 = vmul.f32 %v2044, 1.442695
        %v2116 = vpow.pop %v2115
        %v2117 = vmul.f32 %v2045, 1.442695
        %v2118 = vpow.pop %v2117
        %v2119 = vmul.f32 %v2046, 1.442695
        %v2120 = vpow.pop %v2119
        %v2121 = vmul.f32 %v2047, 1.442695
        %v2122 = vpow.pop %v2121
        %v2123 = vmul.f32 %v2048, 1.442695
        %v2124 = vpow.pop %v2123
        %v2125 = vmul.f32 %v2049, 1.442695
        %v2126 = vpow.pop %v2125
        %v2127 = vmul.f32 %v2050, 1.442695
        %v2128 = vpow.pop %v2127
        %v2129 = vmul.f32 %v2051, 1.442695
        %v2130 = vpow.pop %v2129
        %v2131 = vmul.f32 %v2052, 1.442695
        %v2132 = vpow.pop %v2131
        %v2133 = vmul.f32 %v2053, 1.442695
        %v2134 = vpow.pop %v2133
        %v2135 = vmul.f32 %v2054, 1.442695
        %v2136 = vpow.pop %v2135
        %v2137 = vmul.f32 %v2055, 1.442695
        %v2138 = vpow.pop %v2137
        %v2139 = vmul.f32 %v2056, 1.442695
        %v2140 = vpow.pop %v2139
        %v2141 = vmul.f32 %v2057, 1.442695
        %v2142 = vpow.pop %v2141
        %v2143 = vmul.f32 %v2058, 1.442695
        %v2144 = vpow.pop %v2143
        %v2145 = vmul.f32 %v2059, 1.442695
        %v2146 = vpow.pop %v2145
        %v2147 = vmul.f32 %v2060, 1.442695
        %v2148 = vpow.pop %v2147
        %v2149 = vmul.f32 %v2061, 1.442695
        %v2150 = vpow.pop %v2149
        %v2151 = vmul.f32 %v2062, 1.442695
        %v2152 = vpow.pop %v2151
        %v2153 = vmul.f32 %v2063, 1.442695
        %v2154 = vpow.pop %v2153
        %v2155 = vmul.f32 %v2064, 1.442695
        %v2156 = vpow.pop %v2155
        %v2157 = vmul.f32 %v2065, 1.442695
        %v2158 = vpow.pop %v2157
        %v2159 = vmul.f32 %v2066, 1.442695
        %v2160 = vpow.pop %v2159
        %v2161 = vmul.f32 %v2067, 1.442695
        %v2162 = vpow.pop %v2161
        %v2163 = vmul.f32 %v2068, 1.442695
        %v2164 = vpow.pop %v2163
        %v2165 = vmul.f32 %v2069, 1.442695
        %v2166 = vpow.pop %v2165
        %v2167 = vmul.f32 %v2070, 1.442695
        %v2168 = vpow.pop %v2167
        %v2169 = vmul.f32 %v2071, 1.442695
        %v2170 = vpow.pop %v2169
        %v2171 = vmul.f32 %v2072, 1.442695
        %v2172 = vpow.pop %v2171
        %v2173 = vmul.f32 %v2073, 1.442695
        %v2174 = vpow.pop %v2173
        %v2175 = vmul.f32 %v2074, 1.442695
        %v2176 = vpow.pop %v2175
        %v2177 = vmul.f32 %v2075, 1.442695
        %v2178 = vpow.pop %v2177
        %v2179 = vmul.f32 %v2076, 1.442695
        %v2180 = vpow.pop %v2179
        %v2181 = vmul.f32 %v2077, 1.442695
        %v2182 = vpow.pop %v2181
        %v2183 = vmul.f32 %v2078, 1.442695
        %v2184 = vpow.pop %v2183
        %v2185 = vmul.f32 %v2079, 1.442695
        %v2186 = vpow.pop %v2185
        %v2187 = vmul.f32 %v2080, 1.442695
        %v2188 = vpow.pop %v2187
        %v2189 = vmul.f32 %v2081, 1.442695
        %v2190 = vpow.pop %v2189
        %v2191 = vmul.f32 %v2082, 1.442695
        %v2192 = vpow.pop %v2191
        %v2193 = vmul.f32 %v2083, 1.442695
        %v2194 = vpow.pop %v2193
        %v2195 = vmul.f32 %v2084, 1.442695
        %v2196 = vpow.pop %v2195
        %v2197 = vmul.f32 %v2085, 1.442695
        %v2198 = vpow.pop %v2197
        %v2199 = vmul.f32 %v2086, 1.442695
        %v2200 = vpow.pop %v2199
        %v2201 = vmul.f32 %v2087, 1.442695
        %v2202 = vpow.pop %v2201
        %v2203 = vmul.f32 %v2088, 1.442695
        %v2204 = vpow.pop %v2203
        %v2205 = vmul.f32 %v2089, 1.442695
        %v2206 = vpow.pop %v2205
        %v2207 = vmul.f32 %v2090, 1.442695
        %v2208 = vpow.pop %v2207
        %v2209 = vmul.f32 %v2091, 1.442695
        %v2210 = vpow.pop %v2209
        %v2211 = vmul.f32 %v2092, 1.442695
        %v2212 = vpow.pop %v2211
        %v2213 = vmul.f32 %v2093, 1.442695
        %v2214 = vpow.pop %v2213
        %v2215 = vmul.f32 %v2094, 1.442695
        %v2216 = vpow.pop %v2215
        %v2217 = vmul.f32 %v2095, 1.442695
        %v2218 = vpow.pop %v2217
        %v2219 = vmul.f32 %v2096, 1.442695
        %v2220 = vpow.pop %v2219
        %v2221 = vmul.f32 %v2097, 1.442695
        %v2222 = vpow.pop %v2221
        %v2223 = vmul.f32 %v2098, 1.442695
        %v2224 = vpow.pop %v2223
        %v2225 = vmul.f32 %v2099, 1.442695
        %v2226 = vpow.pop %v2225
        %v2227 = vmul.f32 %v2100, 1.442695
        %v2228 = vpow.pop %v2227
        %2229 = vadd.xlane.f32.xlu0 %v2102
        %v2230 = vpop.xlane.xlu0 %2229
        %2231 = vadd.xlane.f32.xlu0 %v2104
        %v2232 = vpop.xlane.xlu0 %2231
        %2233 = vadd.xlane.f32.xlu0 %v2106
        %v2234 = vpop.xlane.xlu0 %2233
        %2235 = vadd.xlane.f32.xlu0 %v2108
        %v2236 = vpop.xlane.xlu0 %2235
        %2237 = vadd.xlane.f32.xlu0 %v2110
        %v2238 = vpop.xlane.xlu0 %2237
        %2239 = vadd.xlane.f32.xlu0 %v2112
        %v2240 = vpop.xlane.xlu0 %2239
        %2241 = vadd.xlane.f32.xlu0 %v2114
        %v2242 = vpop.xlane.xlu0 %2241
        %2243 = vadd.xlane.f32.xlu0 %v2116
        %v2244 = vpop.xlane.xlu0 %2243
        %2245 = vadd.xlane.f32.xlu0 %v2118
        %v2246 = vpop.xlane.xlu0 %2245
        %2247 = vadd.xlane.f32.xlu0 %v2120
        %v2248 = vpop.xlane.xlu0 %2247
        %2249 = vadd.xlane.f32.xlu0 %v2122
        %v2250 = vpop.xlane.xlu0 %2249
        %2251 = vadd.xlane.f32.xlu0 %v2124
        %v2252 = vpop.xlane.xlu0 %2251
        %2253 = vadd.xlane.f32.xlu0 %v2126
        %v2254 = vpop.xlane.xlu0 %2253
        %2255 = vadd.xlane.f32.xlu0 %v2128
        %v2256 = vpop.xlane.xlu0 %2255
        %2257 = vadd.xlane.f32.xlu0 %v2130
        %v2258 = vpop.xlane.xlu0 %2257
        %2259 = vadd.xlane.f32.xlu0 %v2132
        %v2260 = vpop.xlane.xlu0 %2259
        %2261 = vadd.xlane.f32.xlu0 %v2134
        %v2262 = vpop.xlane.xlu0 %2261
        %2263 = vadd.xlane.f32.xlu0 %v2136
        %v2264 = vpop.xlane.xlu0 %2263
        %2265 = vadd.xlane.f32.xlu0 %v2138
        %v2266 = vpop.xlane.xlu0 %2265
        %2267 = vadd.xlane.f32.xlu0 %v2140
        %v2268 = vpop.xlane.xlu0 %2267
        %2269 = vadd.xlane.f32.xlu0 %v2142
        %v2270 = vpop.xlane.xlu0 %2269
        %2271 = vadd.xlane.f32.xlu0 %v2144
        %v2272 = vpop.xlane.xlu0 %2271
        %2273 = vadd.xlane.f32.xlu0 %v2146
        %v2274 = vpop.xlane.xlu0 %2273
        %2275 = vadd.xlane.f32.xlu0 %v2148
        %v2276 = vpop.xlane.xlu0 %2275
        %2277 = vadd.xlane.f32.xlu0 %v2150
        %v2278 = vpop.xlane.xlu0 %2277
        %2279 = vadd.xlane.f32.xlu0 %v2152
        %v2280 = vpop.xlane.xlu0 %2279
        %2281 = vadd.xlane.f32.xlu0 %v2154
        %v2282 = vpop.xlane.xlu0 %2281
        %2283 = vadd.xlane.f32.xlu0 %v2156
        %v2284 = vpop.xlane.xlu0 %2283
        %2285 = vadd.xlane.f32.xlu0 %v2158
        %v2286 = vpop.xlane.xlu0 %2285
        %2287 = vadd.xlane.f32.xlu0 %v2160
        %v2288 = vpop.xlane.xlu0 %2287
        %2289 = vadd.xlane.f32.xlu0 %v2162
        %v2290 = vpop.xlane.xlu0 %2289
        %2291 = vadd.xlane.f32.xlu0 %v2164
        %v2292 = vpop.xlane.xlu0 %2291
        %2293 = vadd.xlane.f32.xlu0 %v2166
        %v2294 = vpop.xlane.xlu0 %2293
        %2295 = vadd.xlane.f32.xlu0 %v2168
        %v2296 = vpop.xlane.xlu0 %2295
        %2297 = vadd.xlane.f32.xlu0 %v2170
        %v2298 = vpop.xlane.xlu0 %2297
        %2299 = vadd.xlane.f32.xlu0 %v2172
        %v2300 = vpop.xlane.xlu0 %2299
        %2301 = vadd.xlane.f32.xlu0 %v2174
        %v2302 = vpop.xlane.xlu0 %2301
        %2303 = vadd.xlane.f32.xlu0 %v2176
        %v2304 = vpop.xlane.xlu0 %2303
        %2305 = vadd.xlane.f32.xlu0 %v2178
        %v2306 = vpop.xlane.xlu0 %2305
        %2307 = vadd.xlane.f32.xlu0 %v2180
        %v2308 = vpop.xlane.xlu0 %2307
        %2309 = vadd.xlane.f32.xlu0 %v2182
        %v2310 = vpop.xlane.xlu0 %2309
        %2311 = vadd.xlane.f32.xlu0 %v2184
        %v2312 = vpop.xlane.xlu0 %2311
        %2313 = vadd.xlane.f32.xlu0 %v2186
        %v2314 = vpop.xlane.xlu0 %2313
        %2315 = vadd.xlane.f32.xlu0 %v2188
        %v2316 = vpop.xlane.xlu0 %2315
        %2317 = vadd.xlane.f32.xlu0 %v2190
        %v2318 = vpop.xlane.xlu0 %2317
        %2319 = vadd.xlane.f32.xlu0 %v2192
        %v2320 = vpop.xlane.xlu0 %2319
        %2321 = vadd.xlane.f32.xlu0 %v2194
        %v2322 = vpop.xlane.xlu0 %2321
        %2323 = vadd.xlane.f32.xlu0 %v2196
        %v2324 = vpop.xlane.xlu0 %2323
        %2325 = vadd.xlane.f32.xlu0 %v2198
        %v2326 = vpop.xlane.xlu0 %2325
        %2327 = vadd.xlane.f32.xlu0 %v2200
        %v2328 = vpop.xlane.xlu0 %2327
        %2329 = vadd.xlane.f32.xlu0 %v2202
        %v2330 = vpop.xlane.xlu0 %2329
        %2331 = vadd.xlane.f32.xlu0 %v2204
        %v2332 = vpop.xlane.xlu0 %2331
        %2333 = vadd.xlane.f32.xlu0 %v2206
        %v2334 = vpop.xlane.xlu0 %2333
        %2335 = vadd.xlane.f32.xlu0 %v2208
        %v2336 = vpop.xlane.xlu0 %2335
        %2337 = vadd.xlane.f32.xlu0 %v2210
        %v2338 = vpop.xlane.xlu0 %2337
        %2339 = vadd.xlane.f32.xlu0 %v2212
        %v2340 = vpop.xlane.xlu0 %2339
        %2341 = vadd.xlane.f32.xlu0 %v2214
        %v2342 = vpop.xlane.xlu0 %2341
        %2343 = vadd.xlane.f32.xlu0 %v2216
        %v2344 = vpop.xlane.xlu0 %2343
        %2345 = vadd.xlane.f32.xlu0 %v2218
        %v2346 = vpop.xlane.xlu0 %2345
        %2347 = vadd.xlane.f32.xlu0 %v2220
        %v2348 = vpop.xlane.xlu0 %2347
        %2349 = vadd.xlane.f32.xlu0 %v2222
        %v2350 = vpop.xlane.xlu0 %2349
        %2351 = vadd.xlane.f32.xlu0 %v2224
        %v2352 = vpop.xlane.xlu0 %2351
        %2353 = vadd.xlane.f32.xlu0 %v2226
        %v2354 = vpop.xlane.xlu0 %2353
        %2355 = vadd.xlane.f32.xlu0 %v2228
        %v2356 = vpop.xlane.xlu0 %2355
        %v2357 = vrcp.pop %v2230
        %v2358 = vrcp.pop %v2232
        %v2359 = vrcp.pop %v2234
        %v2360 = vrcp.pop %v2236
        %v2361 = vrcp.pop %v2238
        %v2362 = vrcp.pop %v2240
        %v2363 = vrcp.pop %v2242
        %v2364 = vrcp.pop %v2244
        %v2365 = vrcp.pop %v2246
        %v2366 = vrcp.pop %v2248
        %v2367 = vrcp.pop %v2250
        %v2368 = vrcp.pop %v2252
        %v2369 = vrcp.pop %v2254
        %v2370 = vrcp.pop %v2256
        %v2371 = vrcp.pop %v2258
        %v2372 = vrcp.pop %v2260
        %v2373 = vrcp.pop %v2262
        %v2374 = vrcp.pop %v2264
        %v2375 = vrcp.pop %v2266
        %v2376 = vrcp.pop %v2268
        %v2377 = vrcp.pop %v2270
        %v2378 = vrcp.pop %v2272
        %v2379 = vrcp.pop %v2274
        %v2380 = vrcp.pop %v2276
        %v2381 = vrcp.pop %v2278
        %v2382 = vrcp.pop %v2280
        %v2383 = vrcp.pop %v2282
        %v2384 = vrcp.pop %v2284
        %v2385 = vrcp.pop %v2286
        %v2386 = vrcp.pop %v2288
        %v2387 = vrcp.pop %v2290
        %v2388 = vrcp.pop %v2292
        %v2389 = vrcp.pop %v2294
        %v2390 = vrcp.pop %v2296
        %v2391 = vrcp.pop %v2298
        %v2392 = vrcp.pop %v2300
        %v2393 = vrcp.pop %v2302
        %v2394 = vrcp.pop %v2304
        %v2395 = vrcp.pop %v2306
        %v2396 = vrcp.pop %v2308
        %v2397 = vrcp.pop %v2310
        %v2398 = vrcp.pop %v2312
        %v2399 = vrcp.pop %v2314
        %v2400 = vrcp.pop %v2316
        %v2401 = vrcp.pop %v2318
        %v2402 = vrcp.pop %v2320
        %v2403 = vrcp.pop %v2322
        %v2404 = vrcp.pop %v2324
        %v2405 = vrcp.pop %v2326
        %v2406 = vrcp.pop %v2328
        %v2407 = vrcp.pop %v2330
        %v2408 = vrcp.pop %v2332
        %v2409 = vrcp.pop %v2334
        %v2410 = vrcp.pop %v2336
        %v2411 = vrcp.pop %v2338
        %v2412 = vrcp.pop %v2340
        %v2413 = vrcp.pop %v2342
        %v2414 = vrcp.pop %v2344
        %v2415 = vrcp.pop %v2346
        %v2416 = vrcp.pop %v2348
        %v2417 = vrcp.pop %v2350
        %v2418 = vrcp.pop %v2352
        %v2419 = vrcp.pop %v2354
        %v2420 = vrcp.pop %v2356
        %v2421 = vmul.f32 %v2102, %v2357
        %v2422 = vmul.f32 %v2104, %v2358
        %v2423 = vmul.f32 %v2106, %v2359
        %v2424 = vmul.f32 %v2108, %v2360
        %v2425 = vmul.f32 %v2110, %v2361
        %v2426 = vmul.f32 %v2112, %v2362
        %v2427 = vmul.f32 %v2114, %v2363
        %v2428 = vmul.f32 %v2116, %v2364
        %v2429 = vmul.f32 %v2118, %v2365
        %v2430 = vmul.f32 %v2120, %v2366
        %v2431 = vmul.f32 %v2122, %v2367
        %v2432 = vmul.f32 %v2124, %v2368
        %v2433 = vmul.f32 %v2126, %v2369
        %v2434 = vmul.f32 %v2128, %v2370
        %v2435 = vmul.f32 %v2130, %v2371
        %v2436 = vmul.f32 %v2132, %v2372
        %v2437 = vmul.f32 %v2134, %v2373
        %v2438 = vmul.f32 %v2136, %v2374
        %v2439 = vmul.f32 %v2138, %v2375
        %v2440 = vmul.f32 %v2140, %v2376
        %v2441 = vmul.f32 %v2142, %v2377
        %v2442 = vmul.f32 %v2144, %v2378
        %v2443 = vmul.f32 %v2146, %v2379
        %v2444 = vmul.f32 %v2148, %v2380
        %v2445 = vmul.f32 %v2150, %v2381
        %v2446 = vmul.f32 %v2152, %v2382
        %v2447 = vmul.f32 %v2154, %v2383
        %v2448 = vmul.f32 %v2156, %v2384
        %v2449 = vmul.f32 %v2158, %v2385
        %v2450 = vmul.f32 %v2160, %v2386
        %v2451 = vmul.f32 %v2162, %v2387
        %v2452 = vmul.f32 %v2164, %v2388
        %v2453 = vmul.f32 %v2166, %v2389
        %v2454 = vmul.f32 %v2168, %v2390
        %v2455 = vmul.f32 %v2170, %v2391
        %v2456 = vmul.f32 %v2172, %v2392
        %v2457 = vmul.f32 %v2174, %v2393
        %v2458 = vmul.f32 %v2176, %v2394
        %v2459 = vmul.f32 %v2178, %v2395
        %v2460 = vmul.f32 %v2180, %v2396
        %v2461 = vmul.f32 %v2182, %v2397
        %v2462 = vmul.f32 %v2184, %v2398
        %v2463 = vmul.f32 %v2186, %v2399
        %v2464 = vmul.f32 %v2188, %v2400
        %v2465 = vmul.f32 %v2190, %v2401
        %v2466 = vmul.f32 %v2192, %v2402
        %v2467 = vmul.f32 %v2194, %v2403
        %v2468 = vmul.f32 %v2196, %v2404
        %v2469 = vmul.f32 %v2198, %v2405
        %v2470 = vmul.f32 %v2200, %v2406
        %v2471 = vmul.f32 %v2202, %v2407
        %v2472 = vmul.f32 %v2204, %v2408
        %v2473 = vmul.f32 %v2206, %v2409
        %v2474 = vmul.f32 %v2208, %v2410
        %v2475 = vmul.f32 %v2210, %v2411
        %v2476 = vmul.f32 %v2212, %v2412
        %v2477 = vmul.f32 %v2214, %v2413
        %v2478 = vmul.f32 %v2216, %v2414
        %v2479 = vmul.f32 %v2218, %v2415
        %v2480 = vmul.f32 %v2220, %v2416
        %v2481 = vmul.f32 %v2222, %v2417
        %v2482 = vmul.f32 %v2224, %v2418
        %v2483 = vmul.f32 %v2226, %v2419
        %v2484 = vmul.f32 %v2228, %v2420
        %2485 = vmatprep.subr.mxu0 0.0
        %2486 = vmatpush1.xpose.msra.mxu0 %v2436
        %2487 = vmatprep.subr.mxu0 0.0
        %2488 = vmatpush1.xpose.msra.mxu0 %v2435
        %2489 = vmatprep.subr.mxu0 0.0
        %2490 = vmatpush1.xpose.msra.mxu0 %v2434
        %2491 = vmatprep.subr.mxu0 0.0
        %2492 = vmatpush1.xpose.msra.mxu0 %v2433
        %2493 = vmatprep.subr.mxu0 0.0
        %2494 = vmatpush1.xpose.msra.mxu0 %v2432
        %2495 = vmatprep.subr.mxu0 0.0
        %2496 = vmatpush1.xpose.msra.mxu0 %v2431
        %2497 = vmatprep.subr.mxu0 0.0
        %2498 = vmatpush1.xpose.msra.mxu0 %v2430
        %2499 = vmatprep.subr.mxu0 0.0
        %2500 = vmatpush1.xpose.msra.mxu0 %v2429
        %2501 = vmatprep.subr.mxu0 0.0
        %2502 = vmatpush1.xpose.msra.mxu0 %v2428
        %2503 = vmatprep.subr.mxu0 0.0
        %2504 = vmatpush1.xpose.msra.mxu0 %v2427
        %2505 = vmatprep.subr.mxu0 0.0
        %2506 = vmatpush1.xpose.msra.mxu0 %v2426
        %2507 = vmatprep.subr.mxu0 0.0
        %2508 = vmatpush1.xpose.msra.mxu0 %v2425
        %2509 = vmatprep.subr.mxu0 0.0
        %2510 = vmatpush1.xpose.msra.mxu0 %v2424
        %2511 = vmatprep.subr.mxu0 0.0
        %2512 = vmatpush1.xpose.msra.mxu0 %v2423
        %2513 = vmatprep.subr.mxu0 0.0
        %2514 = vmatpush1.xpose.msra.mxu0 %v2422
        %2515 = vmatprep.subr.mxu0 0.0
        %2516 = vmatpush1.xpose.msra.mxu0 %v2421
        %2517 = vmatprep.subr.mxu0 0.0
        %2518 = vmatpush2.xpose.msra.mxu0 0.0
        %2519 = vmatprep.subr.mxu0 0.0
        %2520 = vmatpush2.xpose.msra.mxu0 0.0
        %2521 = vmatprep.subr.mxu0 0.0
        %2522 = vmatpush2.xpose.msra.mxu0 0.0
        %2523 = vmatprep.subr.mxu0 0.0
        %2524 = vmatpush2.xpose.msra.mxu0 0.0
        %2525 = vmatprep.subr.mxu0 0.0
        %2526 = vmatpush2.xpose.msra.mxu0 0.0
        %2527 = vmatprep.subr.mxu0 0.0
        %2528 = vmatpush2.xpose.msra.mxu0 0.0
        %2529 = vmatprep.subr.mxu0 0.0
        %2530 = vmatpush2.xpose.msra.mxu0 0.0
        %2531 = vmatprep.subr.mxu0 0.0
        %2532 = vmatpush2.xpose.msra.mxu0 0.0
        %2533 = vmatprep.subr.mxu0 0.0
        %2534 = vmatpush2.xpose.msra.mxu0 0.0
        %2535 = vmatprep.subr.mxu0 0.0
        %2536 = vmatpush2.xpose.msra.mxu0 0.0
        %2537 = vmatprep.subr.mxu0 0.0
        %2538 = vmatpush2.xpose.msra.mxu0 0.0
        %2539 = vmatprep.subr.mxu0 0.0
        %2540 = vmatpush2.xpose.msra.mxu0 0.0
        %2541 = vmatprep.subr.mxu0 0.0
        %2542 = vmatpush2.xpose.msra.mxu0 0.0
        %2543 = vmatprep.subr.mxu0 0.0
        %2544 = vmatpush2.xpose.msra.mxu0 0.0
        %2545 = vmatprep.subr.mxu0 0.0
        %2546 = vmatpush2.xpose.msra.mxu0 0.0
        %2547 = vmatprep.subr.mxu0 0.0
        %2548 = vmatpush2.xpose.msra.mxu0 0.0
        %2549 = vmatprep.mubr.f32.mxu0 0.0
        %2550 = vmatmul.mubr.f32.gmra.mxu0 %v1065
        %v2551 = vpop.f32.mrf.mxu0
        %v2552 = vadd.f32 0.0, %v2551
        %v2553 = vpop.f32.mrf.mxu0
        %2554 = vdwg.mxu0
        %2555 = vmatprep.subr.mxu0 0.0
        %2556 = vmatpush1.xpose.msra.mxu0 %v2452
        %2557 = vmatprep.subr.mxu0 0.0
        %2558 = vmatpush1.xpose.msra.mxu0 %v2451
        %2559 = vmatprep.subr.mxu0 0.0
        %2560 = vmatpush1.xpose.msra.mxu0 %v2450
        %2561 = vmatprep.subr.mxu0 0.0
        %2562 = vmatpush1.xpose.msra.mxu0 %v2449
        %2563 = vmatprep.subr.mxu0 0.0
        %2564 = vmatpush1.xpose.msra.mxu0 %v2448
        %2565 = vmatprep.subr.mxu0 0.0
        %2566 = vmatpush1.xpose.msra.mxu0 %v2447
        %2567 = vmatprep.subr.mxu0 0.0
        %2568 = vmatpush1.xpose.msra.mxu0 %v2446
        %2569 = vmatprep.subr.mxu0 0.0
        %2570 = vmatpush1.xpose.msra.mxu0 %v2445
        %2571 = vmatprep.subr.mxu0 0.0
        %2572 = vmatpush1.xpose.msra.mxu0 %v2444
        %2573 = vmatprep.subr.mxu0 0.0
        %2574 = vmatpush1.xpose.msra.mxu0 %v2443
        %2575 = vmatprep.subr.mxu0 0.0
        %2576 = vmatpush1.xpose.msra.mxu0 %v2442
        %2577 = vmatprep.subr.mxu0 0.0
        %2578 = vmatpush1.xpose.msra.mxu0 %v2441
        %2579 = vmatprep.subr.mxu0 0.0
        %2580 = vmatpush1.xpose.msra.mxu0 %v2440
        %2581 = vmatprep.subr.mxu0 0.0
        %2582 = vmatpush1.xpose.msra.mxu0 %v2439
        %2583 = vmatprep.subr.mxu0 0.0
        %2584 = vmatpush1.xpose.msra.mxu0 %v2438
        %2585 = vmatprep.subr.mxu0 0.0
        %2586 = vmatpush1.xpose.msra.mxu0 %v2437
        %2587 = vmatprep.subr.mxu0 0.0
        %2588 = vmatpush2.xpose.msra.mxu0 0.0
        %2589 = vmatprep.subr.mxu0 0.0
        %2590 = vmatpush2.xpose.msra.mxu0 0.0
        %2591 = vmatprep.subr.mxu0 0.0
        %2592 = vmatpush2.xpose.msra.mxu0 0.0
        %2593 = vmatprep.subr.mxu0 0.0
        %2594 = vmatpush2.xpose.msra.mxu0 0.0
        %2595 = vmatprep.subr.mxu0 0.0
        %2596 = vmatpush2.xpose.msra.mxu0 0.0
        %2597 = vmatprep.subr.mxu0 0.0
        %2598 = vmatpush2.xpose.msra.mxu0 0.0
        %2599 = vmatprep.subr.mxu0 0.0
        %2600 = vmatpush2.xpose.msra.mxu0 0.0
        %2601 = vmatprep.subr.mxu0 0.0
        %2602 = vmatpush2.xpose.msra.mxu0 0.0
        %2603 = vmatprep.subr.mxu0 0.0
        %2604 = vmatpush2.xpose.msra.mxu0 0.0
        %2605 = vmatprep.subr.mxu0 0.0
        %2606 = vmatpush2.xpose.msra.mxu0 0.0
        %2607 = vmatprep.subr.mxu0 0.0
        %2608 = vmatpush2.xpose.msra.mxu0 0.0
        %2609 = vmatprep.subr.mxu0 0.0
        %2610 = vmatpush2.xpose.msra.mxu0 0.0
        %2611 = vmatprep.subr.mxu0 0.0
        %2612 = vmatpush2.xpose.msra.mxu0 0.0
        %2613 = vmatprep.subr.mxu0 0.0
        %2614 = vmatpush2.xpose.msra.mxu0 0.0
        %2615 = vmatprep.subr.mxu0 0.0
        %2616 = vmatpush2.xpose.msra.mxu0 0.0
        %2617 = vmatprep.subr.mxu0 0.0
        %2618 = vmatpush2.xpose.msra.mxu0 0.0
        %2619 = vmatprep.mubr.f32.mxu0 0.0
        %2620 = vmatmul.mubr.f32.gmra.mxu0 %v1066
        %v2621 = vpop.f32.mrf.mxu0
        %v2622 = vadd.f32 0.0, %v2621
        %v2623 = vpop.f32.mrf.mxu0
        %2624 = vdwg.mxu0
        %2625 = vmatprep.subr.mxu0 0.0
        %2626 = vmatpush1.xpose.msra.mxu0 %v2468
        %2627 = vmatprep.subr.mxu0 0.0
        %2628 = vmatpush1.xpose.msra.mxu0 %v2467
        %2629 = vmatprep.subr.mxu0 0.0
        %2630 = vmatpush1.xpose.msra.mxu0 %v2466
        %2631 = vmatprep.subr.mxu0 0.0
        %2632 = vmatpush1.xpose.msra.mxu0 %v2465
        %2633 = vmatprep.subr.mxu0 0.0
        %2634 = vmatpush1.xpose.msra.mxu0 %v2464
        %2635 = vmatprep.subr.mxu0 0.0
        %2636 = vmatpush1.xpose.msra.mxu0 %v2463
        %2637 = vmatprep.subr.mxu0 0.0
        %2638 = vmatpush1.xpose.msra.mxu0 %v2462
        %2639 = vmatprep.subr.mxu0 0.0
        %2640 = vmatpush1.xpose.msra.mxu0 %v2461
        %2641 = vmatprep.subr.mxu0 0.0
        %2642 = vmatpush1.xpose.msra.mxu0 %v2460
        %2643 = vmatprep.subr.mxu0 0.0
        %2644 = vmatpush1.xpose.msra.mxu0 %v2459
        %2645 = vmatprep.subr.mxu0 0.0
        %2646 = vmatpush1.xpose.msra.mxu0 %v2458
        %2647 = vmatprep.subr.mxu0 0.0
        %2648 = vmatpush1.xpose.msra.mxu0 %v2457
        %2649 = vmatprep.subr.mxu0 0.0
        %2650 = vmatpush1.xpose.msra.mxu0 %v2456
        %2651 = vmatprep.subr.mxu0 0.0
        %2652 = vmatpush1.xpose.msra.mxu0 %v2455
        %2653 = vmatprep.subr.mxu0 0.0
        %2654 = vmatpush1.xpose.msra.mxu0 %v2454
        %2655 = vmatprep.subr.mxu0 0.0
        %2656 = vmatpush1.xpose.msra.mxu0 %v2453
        %2657 = vmatprep.subr.mxu0 0.0
        %2658 = vmatpush2.xpose.msra.mxu0 0.0
        %2659 = vmatprep.subr.mxu0 0.0
        %2660 = vmatpush2.xpose.msra.mxu0 0.0
        %2661 = vmatprep.subr.mxu0 0.0
        %2662 = vmatpush2.xpose.msra.mxu0 0.0
        %2663 = vmatprep.subr.mxu0 0.0
        %2664 = vmatpush2.xpose.msra.mxu0 0.0
        %2665 = vmatprep.subr.mxu0 0.0
        %2666 = vmatpush2.xpose.msra.mxu0 0.0
        %2667 = vmatprep.subr.mxu0 0.0
        %2668 = vmatpush2.xpose.msra.mxu0 0.0
        %2669 = vmatprep.subr.mxu0 0.0
        %2670 = vmatpush2.xpose.msra.mxu0 0.0
        %2671 = vmatprep.subr.mxu0 0.0
        %2672 = vmatpush2.xpose.msra.mxu0 0.0
        %2673 = vmatprep.subr.mxu0 0.0
        %2674 = vmatpush2.xpose.msra.mxu0 0.0
        %2675 = vmatprep.subr.mxu0 0.0
        %2676 = vmatpush2.xpose.msra.mxu0 0.0
        %2677 = vmatprep.subr.mxu0 0.0
        %2678 = vmatpush2.xpose.msra.mxu0 0.0
        %2679 = vmatprep.subr.mxu0 0.0
        %2680 = vmatpush2.xpose.msra.mxu0 0.0
        %2681 = vmatprep.subr.mxu0 0.0
        %2682 = vmatpush2.xpose.msra.mxu0 0.0
        %2683 = vmatprep.subr.mxu0 0.0
        %2684 = vmatpush2.xpose.msra.mxu0 0.0
        %2685 = vmatprep.subr.mxu0 0.0
        %2686 = vmatpush2.xpose.msra.mxu0 0.0
        %2687 = vmatprep.subr.mxu0 0.0
        %2688 = vmatpush2.xpose.msra.mxu0 0.0
        %2689 = vmatprep.mubr.f32.mxu0 0.0
        %2690 = vmatmul.mubr.f32.gmra.mxu0 %v1067
        %v2691 = vpop.f32.mrf.mxu0
        %v2692 = vadd.f32 0.0, %v2691
        %v2693 = vpop.f32.mrf.mxu0
        %2694 = vdwg.mxu0
        %2695 = vmatprep.subr.mxu0 0.0
        %2696 = vmatpush1.xpose.msra.mxu0 %v2484
        %2697 = vmatprep.subr.mxu0 0.0
        %2698 = vmatpush1.xpose.msra.mxu0 %v2483
        %2699 = vmatprep.subr.mxu0 0.0
        %2700 = vmatpush1.xpose.msra.mxu0 %v2482
        %2701 = vmatprep.subr.mxu0 0.0
        %2702 = vmatpush1.xpose.msra.mxu0 %v2481
        %2703 = vmatprep.subr.mxu0 0.0
        %2704 = vmatpush1.xpose.msra.mxu0 %v2480
        %2705 = vmatprep.subr.mxu0 0.0
        %2706 = vmatpush1.xpose.msra.mxu0 %v2479
        %2707 = vmatprep.subr.mxu0 0.0
        %2708 = vmatpush1.xpose.msra.mxu0 %v2478
        %2709 = vmatprep.subr.mxu0 0.0
        %2710 = vmatpush1.xpose.msra.mxu0 %v2477
        %2711 = vmatprep.subr.mxu0 0.0
        %2712 = vmatpush1.xpose.msra.mxu0 %v2476
        %2713 = vmatprep.subr.mxu0 0.0
        %2714 = vmatpush1.xpose.msra.mxu0 %v2475
        %2715 = vmatprep.subr.mxu0 0.0
        %2716 = vmatpush1.xpose.msra.mxu0 %v2474
        %2717 = vmatprep.subr.mxu0 0.0
        %2718 = vmatpush1.xpose.msra.mxu0 %v2473
        %2719 = vmatprep.subr.mxu0 0.0
        %2720 = vmatpush1.xpose.msra.mxu0 %v2472
        %2721 = vmatprep.subr.mxu0 0.0
        %2722 = vmatpush1.xpose.msra.mxu0 %v2471
        %2723 = vmatprep.subr.mxu0 0.0
        %2724 = vmatpush1.xpose.msra.mxu0 %v2470
        %2725 = vmatprep.subr.mxu0 0.0
        %2726 = vmatpush1.xpose.msra.mxu0 %v2469
        %2727 = vmatprep.subr.mxu0 0.0
        %2728 = vmatpush2.xpose.msra.mxu0 0.0
        %2729 = vmatprep.subr.mxu0 0.0
        %2730 = vmatpush2.xpose.msra.mxu0 0.0
        %2731 = vmatprep.subr.mxu0 0.0
        %2732 = vmatpush2.xpose.msra.mxu0 0.0
        %2733 = vmatprep.subr.mxu0 0.0
        %2734 = vmatpush2.xpose.msra.mxu0 0.0
        %2735 = vmatprep.subr.mxu0 0.0
        %2736 = vmatpush2.xpose.msra.mxu0 0.0
        %2737 = vmatprep.subr.mxu0 0.0
        %2738 = vmatpush2.xpose.msra.mxu0 0.0
        %2739 = vmatprep.subr.mxu0 0.0
        %2740 = vmatpush2.xpose.msra.mxu0 0.0
        %2741 = vmatprep.subr.mxu0 0.0
        %2742 = vmatpush2.xpose.msra.mxu0 0.0
        %2743 = vmatprep.subr.mxu0 0.0
        %2744 = vmatpush2.xpose.msra.mxu0 0.0
        %2745 = vmatprep.subr.mxu0 0.0
        %2746 = vmatpush2.xpose.msra.mxu0 0.0
        %2747 = vmatprep.subr.mxu0 0.0
        %2748 = vmatpush2.xpose.msra.mxu0 0.0
        %2749 = vmatprep.subr.mxu0 0.0
        %2750 = vmatpush2.xpose.msra.mxu0 0.0
        %2751 = vmatprep.subr.mxu0 0.0
        %2752 = vmatpush2.xpose.msra.mxu0 0.0
        %2753 = vmatprep.subr.mxu0 0.0
        %2754 = vmatpush2.xpose.msra.mxu0 0.0
        %2755 = vmatprep.subr.mxu0 0.0
        %2756 = vmatpush2.xpose.msra.mxu0 0.0
        %2757 = vmatprep.subr.mxu0 0.0
        %2758 = vmatpush2.xpose.msra.mxu0 0.0
        %2759 = vmatprep.mubr.f32.mxu0 0.0
        %2760 = vmatmul.mubr.f32.gmra.mxu0 %v1068
        %v2761 = vpop.f32.mrf.mxu0
        %v2762 = vadd.f32 0.0, %v2761
        %v2763 = vpop.f32.mrf.mxu0
        %2764 = vdwg.mxu0
        %v2765 = vld [vmem:[#allocation12] sm:$0xff]
        %v2766 = vld [vmem:[#allocation12 + $0x8] sm:$0xff]
        %v2767 = vld [vmem:[#allocation12 + $0x10] sm:$0xff]
        %v2768 = vld [vmem:[#allocation12 + $0x18] sm:$0xff]
        %v2769 = vld [vmem:[%s10] sm:$0xff]
        %v2770 = vld [vmem:[%s10 + $0x8] sm:$0xff]
        %v2771 = vld [vmem:[%s10 + $0x10] sm:$0xff]
        %v2772 = vld [vmem:[%s10 + $0x18] sm:$0xff]
        %2774 = vset.pattern.permute.xlu0 0
        %2775 = vperm.xlu0 %2774, %v2769
        %v2776 = vpop.permute.xlu0 %2775
        %2779 = vset.pattern.permute.xlu0 0
        %2780 = vperm.xlu0 %2779, %v2770
        %v2781 = vpop.permute.xlu0 %2780
        %2784 = vset.pattern.permute.xlu0 0
        %2785 = vperm.xlu0 %2784, %v2771
        %v2786 = vpop.permute.xlu0 %2785
        %2789 = vset.pattern.permute.xlu0 0
        %2790 = vperm.xlu0 %2789, %v2772
        %v2791 = vpop.permute.xlu0 %2790
        %v2794 = vsel %vm831, %v2765, 0
        %v2797 = vsel %vm831, %v2766, 0
        %v2800 = vsel %vm831, %v2767, 0
        %v2803 = vsel %vm831, %v2768, 0
        %2805 = vmatprep.subr.mxu0 0.0
        %2806 = vmatpush1.msra.mxu0 0.0
        %2807 = vmatprep.subr.mxu0 0.0
        %2808 = vmatpush1.msra.mxu0 0.0
        %2809 = vmatprep.subr.mxu0 0.0
        %2810 = vmatpush1.msra.mxu0 0.0
        %2811 = vmatprep.subr.mxu0 0.0
        %2812 = vmatpush1.msra.mxu0 0.0
        %2813 = vmatprep.subr.mxu0 0.0
        %2814 = vmatpush1.msra.mxu0 0.0
        %2815 = vmatprep.subr.mxu0 0.0
        %2816 = vmatpush1.msra.mxu0 0.0
        %2817 = vmatprep.subr.mxu0 0.0
        %2818 = vmatpush1.msra.mxu0 0.0
        %2819 = vmatprep.subr.mxu0 0.0
        %2820 = vmatpush1.msra.mxu0 0.0
        %2821 = vmatprep.subr.mxu0 0.0
        %2822 = vmatpush1.msra.mxu0 0.0
        %2823 = vmatprep.subr.mxu0 0.0
        %2824 = vmatpush1.msra.mxu0 0.0
        %2825 = vmatprep.subr.mxu0 0.0
        %2826 = vmatpush1.msra.mxu0 0.0
        %2827 = vmatprep.subr.mxu0 0.0
        %2828 = vmatpush1.msra.mxu0 0.0
        %2829 = vmatprep.subr.mxu0 0.0
        %2830 = vmatpush1.msra.mxu0 %v2762
        %2831 = vmatprep.subr.mxu0 0.0
        %2832 = vmatpush1.msra.mxu0 %v2692
        %2833 = vmatprep.subr.mxu0 0.0
        %2834 = vmatpush1.msra.mxu0 %v2622
        %2835 = vmatprep.subr.mxu0 0.0
        %2836 = vmatpush1.msra.mxu0 %v2552
        %2837 = vmatprep.subr.mxu0 0.0
        %2838 = vmatpush2.msra.mxu0 0.0
        %2839 = vmatprep.subr.mxu0 0.0
        %2840 = vmatpush2.msra.mxu0 0.0
        %2841 = vmatprep.subr.mxu0 0.0
        %2842 = vmatpush2.msra.mxu0 0.0
        %2843 = vmatprep.subr.mxu0 0.0
        %2844 = vmatpush2.msra.mxu0 0.0
        %2845 = vmatprep.subr.mxu0 0.0
        %2846 = vmatpush2.msra.mxu0 0.0
        %2847 = vmatprep.subr.mxu0 0.0
        %2848 = vmatpush2.msra.mxu0 0.0
        %2849 = vmatprep.subr.mxu0 0.0
        %2850 = vmatpush2.msra.mxu0 0.0
        %2851 = vmatprep.subr.mxu0 0.0
        %2852 = vmatpush2.msra.mxu0 0.0
        %2853 = vmatprep.subr.mxu0 0.0
        %2854 = vmatpush2.msra.mxu0 0.0
        %2855 = vmatprep.subr.mxu0 0.0
        %2856 = vmatpush2.msra.mxu0 0.0
        %2857 = vmatprep.subr.mxu0 0.0
        %2858 = vmatpush2.msra.mxu0 0.0
        %2859 = vmatprep.subr.mxu0 0.0
        %2860 = vmatpush2.msra.mxu0 0.0
        %2861 = vmatprep.subr.mxu0 0.0
        %2862 = vmatpush2.msra.mxu0 0.0
        %2863 = vmatprep.subr.mxu0 0.0
        %2864 = vmatpush2.msra.mxu0 0.0
        %2865 = vmatprep.subr.mxu0 0.0
        %2866 = vmatpush2.msra.mxu0 0.0
        %2867 = vmatprep.subr.mxu0 0.0
        %2868 = vmatpush2.msra.mxu0 0.0
        %2869 = vmatprep.mubr.f32.mxu0 0.0
        %2870 = vmatmul.mubr.f32.gmra.mxu0 %v2794
        %v2871 = vpop.f32.mrf.mxu0
        %v2872 = vadd.f32 %v2776, %v2871
        %v2873 = vpop.f32.mrf.mxu0
        %2874 = vmatprep.mubr.f32.mxu0 0.0
        %2875 = vmatmul.mubr.f32.gmra.mxu0 %v2797
        %v2876 = vpop.f32.mrf.mxu0
        %v2877 = vadd.f32 %v2781, %v2876
        %v2878 = vpop.f32.mrf.mxu0
        %2879 = vmatprep.mubr.f32.mxu0 0.0
        %2880 = vmatmul.mubr.f32.gmra.mxu0 %v2800
        %v2881 = vpop.f32.mrf.mxu0
        %v2882 = vadd.f32 %v2786, %v2881
        %v2883 = vpop.f32.mrf.mxu0
        %2884 = vmatprep.mubr.f32.mxu0 0.0
        %2885 = vmatmul.mubr.f32.gmra.mxu0 %v2803
        %v2886 = vpop.f32.mrf.mxu0
        %v2887 = vadd.f32 %v2791, %v2886
        %v2888 = vpop.f32.mrf.mxu0
        %2889 = vdwg.mxu0
        %2890 = vst [vmem:[%s514] sm:$0xff] %v2872
        %2891 = vst [vmem:[%s514 + $0x8] sm:$0xff] %v2877
        %2892 = vst [vmem:[%s514 + $0x10] sm:$0xff] %v2882
        %2893 = vst [vmem:[%s514 + $0x18] sm:$0xff] %v2887
        %s2894 = sand.u32 %s300, 1
        %s2895 = scalar_lea.sflag [#allocation6], %s2894
        %s2896 = sand.u32 %s300, 1
        %s2897 = smul.addr %s2896, 32
        %s2898 = scalar_lea.vmem [#allocation13], %s2897
        // Predicated region
        $region89: #{tpu_custom_call.1} parent=63 // pred_check
          %p2899 = pneg %p310
        $region90: #{tpu_custom_call.1} parent=63 // pred_check_branch
          %2901 = sbr.rel (%p2899) target = $region92
        $region91: #{tpu_custom_call.1} parent=63 // pred_region
          %s2903 = ssub.s32 512, 512
          %2904 = vsyncadd %s2895, %s2903
          %s2905 = smul.addr %s34, 4
          %s2906 = sadd.s32 %s35, %s2905
          %s2907 = smul.addr %s2906, 128
          %s2908 = scalar_lea.hbm %s11, %s2907
          %s2909 = sshll.u32 %s2898, 4
          %s2910 = int_to_ptr.vmem [resolvable:$true] %s2909
          %2915 = dma.vmem_to_hbm [thread:$0]  %s2910, 512, %s2908, %s2895, 128, 128, 8
        $region92: #{tpu_custom_call.1} parent=63 // pred_fallthru
          _
      $region64: #{tpu_custom_call.1} parent=5 // pred_fallthru
        _
      %p2916 = scmp.le.s32.totalorder 2, %s25
      // Predicated region
      $region93: #{tpu_custom_call.1} parent=5 // pred_check
        %p2917 = pneg %p2916
      $region94: #{tpu_custom_call.1} parent=5 // pred_check_branch
        %2919 = sbr.rel (%p2917) target = $region96
      $region95: #{tpu_custom_call.1} parent=5 // pred_region
        %s2920 = ssub.s32 %s25, 2
        // Predicated region
        $region97: #{tpu_custom_call.1} parent=95 // pred_check
          %p2921 = pneg %p316
        $region98: #{tpu_custom_call.1} parent=95 // pred_check_branch
          %2923 = sbr.rel (%p2921) target = $region100
        $region99: #{tpu_custom_call.1} parent=95 // pred_region
          %s2924 = sand.u32 %s301, 1
          %s2925 = scalar_lea.sflag [#allocation6], %s2924
          %s2926 = sand.u32 %s301, 1
          %s2927 = smul.addr %s2926, 32
          %s2928 = scalar_lea.vmem [#allocation13], %s2927
          %2929 = dma.done %s2925, 512
        $region100: #{tpu_custom_call.1} parent=95 // pred_fallthru
          _
      $region96: #{tpu_custom_call.1} parent=5 // pred_fallthru
        _
    $region6: #{tpu_custom_call.1} parent=1 // loop_footer
      %s29 = sadd.s32 1, %s25
    $region7: #{tpu_custom_call.1} parent=1 // loop_footer_branch
      %24 = sbr.rel target = $region3
    $region8: #{tpu_custom_call.1} parent=1 // loop_exit
      _
    %2930 = vsyncpa [#allocation5], 1
    %s2931 = scalar_lea.sflag [#allocation5], 1
    %2932 = vsyncpa %s2931, 1
    %2933 = vsyncpa [#allocation8], 1
    %2934 = vsyncpa [#allocation11], 1
    %2935 = vsyncpa [#allocation6], 1
    %s2936 = scalar_lea.sflag [#allocation6], 1
    %2937 = vsyncpa %s2936, 1

// kernel: tpu_custom_call.1
$region0: #{tpu_custom_call.1}
  #allocation0 [shape = 'u32[]', space=smem, size = 0x4, offset = 0x4, fixed_abs, tag = 'smem constant byte address 0x4 - core index']
  #allocation1 [shape = 'u32[144,128]{1,0:T(1,128)}', space=vmem, size = 0x12000, scoped, tag = 'internal scratch']
  #allocation2 [shape = 'f32[4,8,128]{2,1,0:T(8,128)}', space=vmem, size = 0x4000, scoped, tag = 'scratch operand']
  #allocation3 [shape = 'f32[4,8,128]{2,1,0:T(8,128)}', space=vmem, size = 0x4000, scoped, tag = 'scratch operand']
  %s0 = inlined_call_operand.vmem [shape: f32[2,32,128], index: 0, kind: input, shape index: {}]
  %s1 = inlined_call_operand.vmem [shape: f32[2,32,128], index: 1, kind: input, shape index: {}]
  %s2 = inlined_call_operand.hbm [shape: f32[2,32,128], index: 2, kind: input, shape index: {}]
  %s3 = inlined_call_operand.hbm [shape: f32[32,32], index: 3, kind: input, shape index: {}]
  %s4 = inlined_call_operand.vmem [shape: f32[32,1], index: 4, kind: input, shape index: {}]
  %s5 = inlined_call_operand.hbm [shape: f32[32,32], index: 5, kind: input, shape index: {}]
  %s6 = inlined_call_operand.vmem [shape: f32[32,1], index: 6, kind: input, shape index: {}]
  %s7 = inlined_call_operand.hbm [shape: f32[32,32], index: 7, kind: input, shape index: {}]
  %s8 = inlined_call_operand.vmem [shape: f32[32,1], index: 8, kind: input, shape index: {}]
  %s9 = inlined_call_operand.hbm [shape: f32[32,32], index: 9, kind: input, shape index: {}]
  %s10 = inlined_call_operand.vmem [shape: f32[32,1], index: 10, kind: input, shape index: {}]
  %s11 = inlined_call_operand.hbm [shape: f32[2,32,128], index: 11, kind: output, shape index: {}]
  %s12 = sld [smem:[#allocation0]]
  $region101: #{tpu_custom_call.1} parent=0
    _
  %s14 = ssub.s32 1, %s12
  %s15 = scalar_select 0, %s14, %s12
  $region1: #{tpu_custom_call.1} parent=0
    #allocation4 [shape = 'u8[32768]{0}', space=vmem, size = 0x8000, scoped, tag = 'input window, operand 2']
    #allocation5 [shape = 's32[2]{0}', space=sflag, size = 0x8, scoped, tag = 'scoped memory for tpu_custom_call.1']
    #allocation6 [shape = 's32[2]{0}', space=sflag, size = 0x8, scoped, tag = 'scoped memory for tpu_custom_call.1']
    #allocation7 [shape = 'u8[16384]{0}', space=vmem, size = 0x4000, scoped, tag = 'input window, operand 3, single buffered']
    #allocation8 [shape = 's32[1]{0}', space=sflag, size = 0x4, scoped, tag = 'scoped memory for tpu_custom_call.1']
    #allocation9 [shape = 'u8[16384]{0}', space=vmem, size = 0x4000, scoped, tag = 'input window, operand 5, single buffered']
    #allocation10 [shape = 'u8[16384]{0}', space=vmem, size = 0x4000, scoped, tag = 'input window, operand 7, single buffered']
    #allocation11 [shape = 's32[1]{0}', space=sflag, size = 0x4, scoped, tag = 'scoped memory for tpu_custom_call.1']
    #allocation12 [shape = 'u8[16384]{0}', space=vmem, size = 0x4000, scoped, tag = 'input window, operand 9, single buffered']
    #allocation13 [shape = 'u8[32768]{0}', space=vmem, size = 0x8000, scoped, tag = 'output window, operand 0']
    %16 = vsyncpa [#allocation5], 0
    %s17 = scalar_lea.sflag [#allocation5], 1
    %18 = vsyncpa %s17, 0
    %19 = vsyncpa [#allocation8], 0
    %20 = vsyncpa [#allocation11], 0
    %21 = vsyncpa [#allocation6], 0
    %s22 = scalar_lea.sflag [#allocation6], 1
    %23 = vsyncpa %s22, 0
    loop: start=0, step=1, limit=4
    $region2: #{tpu_custom_call.1} parent=1 // loop_pre_header
      _
    $region3: #{tpu_custom_call.1} parent=1 // loop_header
      %s25 = sphi 0, %s29
      %p26 = scmp.ge.s32.totalorder %s25, 4
      %s32 = sphi 0, %s44
      %s33 = sphi 0, %s40
      %s34 = sphi 0, %s32
      %s35 = sphi 0, %s33
      %s36 = sphi 0, %s34
      %s37 = sphi 0, %s35
      %s49 = sphi 0, %s51
      %s52 = sphi 0, %s49
      %s53 = sphi 0, %s52
      %s69 = sphi 0, %s53
      %s75 = sphi 0, %s77
      %s78 = sphi 0, %s75
      %s79 = sphi 0, %s78
      %s95 = sphi 0, %s79
      %s101 = sphi 0, %s103
      %s104 = sphi 0, %s101
      %s105 = sphi 0, %s104
      %s121 = sphi 0, %s105
      %s125 = sphi 0, %s125
      %s127 = sphi 0, %s125
      %s128 = sphi 0, %s127
      %s142 = sphi 0, %s128
      %s146 = sphi 0, %s146
      %s148 = sphi 0, %s146
      %s149 = sphi 0, %s148
      %s163 = sphi 0, %s149
      %s167 = sphi 0, %s167
      %s169 = sphi 0, %s167
      %s170 = sphi 0, %s169
      %s184 = sphi 0, %s170
      %s188 = sphi 0, %s188
      %s190 = sphi 0, %s188
      %s191 = sphi 0, %s190
      %s205 = sphi 0, %s191
      %s209 = sphi 0, %s209
      %s211 = sphi 0, %s209
      %s212 = sphi 0, %s211
      %s226 = sphi 0, %s212
      %s230 = sphi 0, %s230
      %s232 = sphi 0, %s230
      %s233 = sphi 0, %s232
      %s247 = sphi 0, %s233
      %s251 = sphi 0, %s251
      %s253 = sphi 0, %s251
      %s254 = sphi 0, %s253
      %s268 = sphi 0, %s254
      %s272 = sphi 0, %s272
      %s274 = sphi 0, %s272
      %s275 = sphi 0, %s274
      %s289 = sphi 0, %s275
      %s297 = sphi 0, %s299
      %s300 = sphi 0, %s297
      %s301 = sphi 0, %s300
      %s317 = sphi 0, %s301
    $region4: #{tpu_custom_call.1} parent=1 // loop_header_branch
      %28 = sbr.rel (%p26) target = $region8
    $region5: #{tpu_custom_call.1} parent=1 // loop_body
      %s30 = ssub.s32 %s25, 1
      %s31 = ssub.s32 %s25, 2
      %s38 = sadd.s32 1, %s33
      %p39 = scmp.ge.s32.totalorder %s38, 1
      %s40 = scalar_select %p39, 0, %s38
      %s41 = sadd.s32 1, %s32
      %s42 = scalar_select %p39, %s41, %s32
      %p43 = scmp.ge.s32.totalorder %s42, 2
      %s44 = scalar_select %p43, 0, %s42
      %s45 = ssub.s32 %s32, %s44
      %s46 = ssub.s32 %s33, %s40
      %s47 = sor.u32 %s45, %s46
      %p48 = scmp.eq.s32.totalorder %s47, 0
      %s50 = sadd.s32 %s49, 1
      %s51 = scalar_select %p48, %s49, %s50
      %p54 = pneg %p48
      %p55 = scmp.eq.s32.totalorder %s25, 1
      %p56 = por %p54, %p55
      %p57 = scmp.ne.s32.totalorder %s49, %s52
      %p58 = scmp.eq.s32.totalorder %s25, 0
      %p59 = por %p57, %p58
      %p60 = scmp.ne.s32.totalorder %s49, %s52
      %p61 = scmp.eq.s32.totalorder %s30, 1
      %p62 = por %p60, %p61
      %p63 = scmp.ne.s32.totalorder %s52, %s53
      %p64 = scmp.eq.s32.totalorder %s30, 0
      %p65 = por %p63, %p64
      %p66 = scmp.ne.s32.totalorder %s52, %s53
      %p67 = scmp.eq.s32.totalorder %s31, 1
      %p68 = por %p66, %p67
      %p70 = scmp.ne.s32.totalorder %s53, %s69
      %p71 = scmp.eq.s32.totalorder %s31, 0
      %p72 = por %p70, %p71
      %s73 = ssub.s32 %s32, %s44
      %p74 = scmp.eq.s32.totalorder %s73, 0
      %s76 = sadd.s32 %s75, 1
      %s77 = scalar_select %p74, %s75, %s76
      %p80 = pneg %p74
      %p81 = scmp.eq.s32.totalorder %s25, 1
      %p82 = por %p80, %p81
      %p83 = scmp.ne.s32.totalorder %s75, %s78
      %p84 = scmp.eq.s32.totalorder %s25, 0
      %p85 = por %p83, %p84
      %p86 = scmp.ne.s32.totalorder %s75, %s78
      %p87 = scmp.eq.s32.totalorder %s30, 1
      %p88 = por %p86, %p87
      %p89 = scmp.ne.s32.totalorder %s78, %s79
      %p90 = scmp.eq.s32.totalorder %s30, 0
      %p91 = por %p89, %p90
      %p92 = scmp.ne.s32.totalorder %s78, %s79
      %p93 = scmp.eq.s32.totalorder %s31, 1
      %p94 = por %p92, %p93
      %p96 = scmp.ne.s32.totalorder %s79, %s95
      %p97 = scmp.eq.s32.totalorder %s31, 0
      %p98 = por %p96, %p97
      %s99 = ssub.s32 %s32, %s44
      %p100 = scmp.eq.s32.totalorder %s99, 0
      %s102 = sadd.s32 %s101, 1
      %s103 = scalar_select %p100, %s101, %s102
      %p106 = pneg %p100
      %p107 = scmp.eq.s32.totalorder %s25, 1
      %p108 = por %p106, %p107
      %p109 = scmp.ne.s32.totalorder %s101, %s104
      %p110 = scmp.eq.s32.totalorder %s25, 0
      %p111 = por %p109, %p110
      %p112 = scmp.ne.s32.totalorder %s101, %s104
      %p113 = scmp.eq.s32.totalorder %s30, 1
      %p114 = por %p112, %p113
      %p115 = scmp.ne.s32.totalorder %s104, %s105
      %p116 = scmp.eq.s32.totalorder %s30, 0
      %p117 = por %p115, %p116
      %p118 = scmp.ne.s32.totalorder %s104, %s105
      %p119 = scmp.eq.s32.totalorder %s31, 1
      %p120 = por %p118, %p119
      %p122 = scmp.ne.s32.totalorder %s105, %s121
      %p123 = scmp.eq.s32.totalorder %s31, 0
      %p124 = por %p122, %p123
      %s126 = sadd.s32 %s125, 1
      %p129 = scmp.eq.s32.totalorder %s25, 1
      %p130 = scmp.ne.s32.totalorder %s125, %s127
      %p131 = scmp.eq.s32.totalorder %s25, 0
      %p132 = por %p130, %p131
      %p133 = scmp.ne.s32.totalorder %s125, %s127
      %p134 = scmp.eq.s32.totalorder %s30, 1
      %p135 = por %p133, %p134
      %p136 = scmp.ne.s32.totalorder %s127, %s128
      %p137 = scmp.eq.s32.totalorder %s30, 0
      %p138 = por %p136, %p137
      %p139 = scmp.ne.s32.totalorder %s127, %s128
      %p140 = scmp.eq.s32.totalorder %s31, 1
      %p141 = por %p139, %p140
      %p143 = scmp.ne.s32.totalorder %s128, %s142
      %p144 = scmp.eq.s32.totalorder %s31, 0
      %p145 = por %p143, %p144
      %s147 = sadd.s32 %s146, 1
      %p150 = scmp.eq.s32.totalorder %s25, 1
      %p151 = scmp.ne.s32.totalorder %s146, %s148
      %p152 = scmp.eq.s32.totalorder %s25, 0
      %p153 = por %p151, %p152
      %p154 = scmp.ne.s32.totalorder %s146, %s148
      %p155 = scmp.eq.s32.totalorder %s30, 1
      %p156 = por %p154, %p155
      %p157 = scmp.ne.s32.totalorder %s148, %s149
      %p158 = scmp.eq.s32.totalorder %s30, 0
      %p159 = por %p157, %p158
      %p160 = scmp.ne.s32.totalorder %s148, %s149
      %p161 = scmp.eq.s32.totalorder %s31, 1
      %p162 = por %p160, %p161
      %p164 = scmp.ne.s32.totalorder %s149, %s163
      %p165 = scmp.eq.s32.totalorder %s31, 0
      %p166 = por %p164, %p165
      %s168 = sadd.s32 %s167, 1
      %p171 = scmp.eq.s32.totalorder %s25, 1
      %p172 = scmp.ne.s32.totalorder %s167, %s169
      %p173 = scmp.eq.s32.totalorder %s25, 0
      %p174 = por %p172, %p173
      %p175 = scmp.ne.s32.totalorder %s167, %s169
      %p176 = scmp.eq.s32.totalorder %s30, 1
      %p177 = por %p175, %p176
      %p178 = scmp.ne.s32.totalorder %s169, %s170
      %p179 = scmp.eq.s32.totalorder %s30, 0
      %p180 = por %p178, %p179
      %p181 = scmp.ne.s32.totalorder %s169, %s170
      %p182 = scmp.eq.s32.totalorder %s31, 1
      %p183 = por %p181, %p182
      %p185 = scmp.ne.s32.totalorder %s170, %s184
      %p186 = scmp.eq.s32.totalorder %s31, 0
      %p187 = por %p185, %p186
      %s189 = sadd.s32 %s188, 1
      %p192 = scmp.eq.s32.totalorder %s25, 1
      %p193 = scmp.ne.s32.totalorder %s188, %s190
      %p194 = scmp.eq.s32.totalorder %s25, 0
      %p195 = por %p193, %p194
      %p196 = scmp.ne.s32.totalorder %s188, %s190
      %p197 = scmp.eq.s32.totalorder %s30, 1
      %p198 = por %p196, %p197
      %p199 = scmp.ne.s32.totalorder %s190, %s191
      %p200 = scmp.eq.s32.totalorder %s30, 0
      %p201 = por %p199, %p200
      %p202 = scmp.ne.s32.totalorder %s190, %s191
      %p203 = scmp.eq.s32.totalorder %s31, 1
      %p204 = por %p202, %p203
      %p206 = scmp.ne.s32.totalorder %s191, %s205
      %p207 = scmp.eq.s32.totalorder %s31, 0
      %p208 = por %p206, %p207
      %s210 = sadd.s32 %s209, 1
      %p213 = scmp.eq.s32.totalorder %s25, 1
      %p214 = scmp.ne.s32.totalorder %s209, %s211
      %p215 = scmp.eq.s32.totalorder %s25, 0
      %p216 = por %p214, %p215
      %p217 = scmp.ne.s32.totalorder %s209, %s211
      %p218 = scmp.eq.s32.totalorder %s30, 1
      %p219 = por %p217, %p218
      %p220 = scmp.ne.s32.totalorder %s211, %s212
      %p221 = scmp.eq.s32.totalorder %s30, 0
      %p222 = por %p220, %p221
      %p223 = scmp.ne.s32.totalorder %s211, %s212
      %p224 = scmp.eq.s32.totalorder %s31, 1
      %p225 = por %p223, %p224
      %p227 = scmp.ne.s32.totalorder %s212, %s226
      %p228 = scmp.eq.s32.totalorder %s31, 0
      %p229 = por %p227, %p228
      %s231 = sadd.s32 %s230, 1
      %p234 = scmp.eq.s32.totalorder %s25, 1
      %p235 = scmp.ne.s32.totalorder %s230, %s232
      %p236 = scmp.eq.s32.totalorder %s25, 0
      %p237 = por %p235, %p236
      %p238 = scmp.ne.s32.totalorder %s230, %s232
      %p239 = scmp.eq.s32.totalorder %s30, 1
      %p240 = por %p238, %p239
      %p241 = scmp.ne.s32.totalorder %s232, %s233
      %p242 = scmp.eq.s32.totalorder %s30, 0
      %p243 = por %p241, %p242
      %p244 = scmp.ne.s32.totalorder %s232, %s233
      %p245 = scmp.eq.s32.totalorder %s31, 1
      %p246 = por %p244, %p245
      %p248 = scmp.ne.s32.totalorder %s233, %s247
      %p249 = scmp.eq.s32.totalorder %s31, 0
      %p250 = por %p248, %p249
      %s252 = sadd.s32 %s251, 1
      %p255 = scmp.eq.s32.totalorder %s25, 1
      %p256 = scmp.ne.s32.totalorder %s251, %s253
      %p257 = scmp.eq.s32.totalorder %s25, 0
      %p258 = por %p256, %p257
      %p259 = scmp.ne.s32.totalorder %s251, %s253
      %p260 = scmp.eq.s32.totalorder %s30, 1
      %p261 = por %p259, %p260
      %p262 = scmp.ne.s32.totalorder %s253, %s254
      %p263 = scmp.eq.s32.totalorder %s30, 0
      %p264 = por %p262, %p263
      %p265 = scmp.ne.s32.totalorder %s253, %s254
      %p266 = scmp.eq.s32.totalorder %s31, 1
      %p267 = por %p265, %p266
      %p269 = scmp.ne.s32.totalorder %s254, %s268
      %p270 = scmp.eq.s32.totalorder %s31, 0
      %p271 = por %p269, %p270
      %s273 = sadd.s32 %s272, 1
      %p276 = scmp.eq.s32.totalorder %s25, 1
      %p277 = scmp.ne.s32.totalorder %s272, %s274
      %p278 = scmp.eq.s32.totalorder %s25, 0
      %p279 = por %p277, %p278
      %p280 = scmp.ne.s32.totalorder %s272, %s274
      %p281 = scmp.eq.s32.totalorder %s30, 1
      %p282 = por %p280, %p281
      %p283 = scmp.ne.s32.totalorder %s274, %s275
      %p284 = scmp.eq.s32.totalorder %s30, 0
      %p285 = por %p283, %p284
      %p286 = scmp.ne.s32.totalorder %s274, %s275
      %p287 = scmp.eq.s32.totalorder %s31, 1
      %p288 = por %p286, %p287
      %p290 = scmp.ne.s32.totalorder %s275, %s289
      %p291 = scmp.eq.s32.totalorder %s31, 0
      %p292 = por %p290, %p291
      %s293 = ssub.s32 %s32, %s44
      %s294 = ssub.s32 %s33, %s40
      %s295 = sor.u32 %s293, %s294
      %p296 = scmp.eq.s32.totalorder %s295, 0
      %s298 = sadd.s32 %s297, 1
      %s299 = scalar_select %p296, %s297, %s298
      %p302 = pneg %p296
      %p303 = scmp.eq.s32.totalorder %s25, 1
      %p304 = por %p302, %p303
      %p305 = scmp.ne.s32.totalorder %s297, %s300
      %p306 = scmp.eq.s32.totalorder %s25, 0
      %p307 = por %p305, %p306
      %p308 = scmp.ne.s32.totalorder %s297, %s300
      %p309 = scmp.eq.s32.totalorder %s30, 1
      %p310 = por %p308, %p309
      %p311 = scmp.ne.s32.totalorder %s300, %s301
      %p312 = scmp.eq.s32.totalorder %s30, 0
      %p313 = por %p311, %p312
      %p314 = scmp.ne.s32.totalorder %s300, %s301
      %p315 = scmp.eq.s32.totalorder %s31, 1
      %p316 = por %p314, %p315
      %p318 = scmp.ne.s32.totalorder %s301, %s317
      %p319 = scmp.eq.s32.totalorder %s31, 0
      %p320 = por %p318, %p319
      %p321 = scmp.le.s32.totalorder 1, %s25
      %p322 = scmp.lt.s32.totalorder %s25, 3
      %p323 = pnand %p321, %p322
      %p324 = pneg %p323
      // Predicated region
      $region9: #{tpu_custom_call.1} parent=5 // pred_check
        _
      $region10: #{tpu_custom_call.1} parent=5 // pred_check_branch
        %326 = sbr.rel (%p323) target = $region12
      $region11: #{tpu_custom_call.1} parent=5 // pred_region
        %s327 = ssub.s32 %s25, 1
        // Predicated region
        $region13: #{tpu_custom_call.1} parent=11 // pred_check
          %p328 = pneg %p138
        $region14: #{tpu_custom_call.1} parent=11 // pred_check_branch
          %330 = sbr.rel (%p328) target = $region16
        $region15: #{tpu_custom_call.1} parent=11 // pred_region
          %s332 = ssub.s32 512, 512
          %333 = vsyncadd [#allocation8], %s332
          %s334 = sshll.u32 [#allocation7], 4
          %s335 = int_to_ptr.vmem [resolvable:$true] %s334
          %340 = dma.hbm_to_vmem [thread:$0]  %s3, 512, %s335, [#allocation8], 128, 128, 8
        $region16: #{tpu_custom_call.1} parent=11 // pred_fallthru
          _
        // Predicated region
        $region17: #{tpu_custom_call.1} parent=11 // pred_check
          %p341 = pneg %p159
        $region18: #{tpu_custom_call.1} parent=11 // pred_check_branch
          %343 = sbr.rel (%p341) target = $region20
        $region19: #{tpu_custom_call.1} parent=11 // pred_region
          _
        $region20: #{tpu_custom_call.1} parent=11 // pred_fallthru
          _
        // Predicated region
        $region21: #{tpu_custom_call.1} parent=11 // pred_check
          %p344 = pneg %p180
        $region22: #{tpu_custom_call.1} parent=11 // pred_check_branch
          %346 = sbr.rel (%p344) target = $region24
        $region23: #{tpu_custom_call.1} parent=11 // pred_region
          %s348 = ssub.s32 512, 512
          %349 = vsyncadd [#allocation8], %s348
          %s350 = sshll.u32 [#allocation9], 4
          %s351 = int_to_ptr.vmem [resolvable:$true] %s350
          %356 = dma.hbm_to_vmem [thread:$0]  %s5, 512, %s351, [#allocation8], 128, 128, 8
        $region24: #{tpu_custom_call.1} parent=11 // pred_fallthru
          _
        // Predicated region
        $region25: #{tpu_custom_call.1} parent=11 // pred_check
          %p357 = pneg %p201
        $region26: #{tpu_custom_call.1} parent=11 // pred_check_branch
          %359 = sbr.rel (%p357) target = $region28
        $region27: #{tpu_custom_call.1} parent=11 // pred_region
          _
        $region28: #{tpu_custom_call.1} parent=11 // pred_fallthru
          _
        // Predicated region
        $region29: #{tpu_custom_call.1} parent=11 // pred_check
          %p360 = pneg %p222
        $region30: #{tpu_custom_call.1} parent=11 // pred_check_branch
          %362 = sbr.rel (%p360) target = $region32
        $region31: #{tpu_custom_call.1} parent=11 // pred_region
          %s364 = ssub.s32 512, 512
          %365 = vsyncadd [#allocation11], %s364
          %s366 = sshll.u32 [#allocation10], 4
          %s367 = int_to_ptr.vmem [resolvable:$true] %s366
          %372 = dma.hbm_to_vmem [thread:$0]  %s7, 512, %s367, [#allocation11], 128, 128, 8
        $region32: #{tpu_custom_call.1} parent=11 // pred_fallthru
          _
        // Predicated region
        $region33: #{tpu_custom_call.1} parent=11 // pred_check
          %p373 = pneg %p243
        $region34: #{tpu_custom_call.1} parent=11 // pred_check_branch
          %375 = sbr.rel (%p373) target = $region36
        $region35: #{tpu_custom_call.1} parent=11 // pred_region
          _
        $region36: #{tpu_custom_call.1} parent=11 // pred_fallthru
          _
        // Predicated region
        $region37: #{tpu_custom_call.1} parent=11 // pred_check
          %p376 = pneg %p264
        $region38: #{tpu_custom_call.1} parent=11 // pred_check_branch
          %378 = sbr.rel (%p376) target = $region40
        $region39: #{tpu_custom_call.1} parent=11 // pred_region
          %s380 = ssub.s32 512, 512
          %381 = vsyncadd [#allocation11], %s380
          %s382 = sshll.u32 [#allocation12], 4
          %s383 = int_to_ptr.vmem [resolvable:$true] %s382
          %388 = dma.hbm_to_vmem [thread:$0]  %s9, 512, %s383, [#allocation11], 128, 128, 8
        $region40: #{tpu_custom_call.1} parent=11 // pred_fallthru
          _
        // Predicated region
        $region41: #{tpu_custom_call.1} parent=11 // pred_check
          %p389 = pneg %p285
        $region42: #{tpu_custom_call.1} parent=11 // pred_check_branch
          %391 = sbr.rel (%p389) target = $region44
        $region43: #{tpu_custom_call.1} parent=11 // pred_region
          _
        $region44: #{tpu_custom_call.1} parent=11 // pred_fallthru
          _
      $region12: #{tpu_custom_call.1} parent=5 // pred_fallthru
        _
      %p392 = scmp.lt.s32.totalorder %s25, 2
      // Predicated region
      $region45: #{tpu_custom_call.1} parent=5 // pred_check
        %p393 = pneg %p392
      $region46: #{tpu_custom_call.1} parent=5 // pred_check_branch
        %395 = sbr.rel (%p393) target = $region48
      $region47: #{tpu_custom_call.1} parent=5 // pred_region
        // Predicated region
        $region49: #{tpu_custom_call.1} parent=47 // pred_check
          %p396 = pneg %p59
        $region50: #{tpu_custom_call.1} parent=47 // pred_check_branch
          %398 = sbr.rel (%p396) target = $region52
        $region51: #{tpu_custom_call.1} parent=47 // pred_region
          %p399 = scmp.lt.s32.totalorder %s32, 1
          %s400 = scalar_select %p399, %s32, 1
          %p401 = scmp.lt.s32.totalorder %s33, 0
          %s402 = scalar_select %p401, %s33, 0
          %s403 = smul.addr %s400, 4
          %s404 = sadd.s32 %s402, %s403
          %s405 = smul.addr %s404, 8
          %s406 = scalar_lea.vmem %s0, %s405
        $region52: #{tpu_custom_call.1} parent=47 // pred_fallthru
          _
        // Predicated region
        $region53: #{tpu_custom_call.1} parent=47 // pred_check
          %p407 = pneg %p85
        $region54: #{tpu_custom_call.1} parent=47 // pred_check_branch
          %409 = sbr.rel (%p407) target = $region56
        $region55: #{tpu_custom_call.1} parent=47 // pred_region
          %p410 = scmp.lt.s32.totalorder %s32, 1
          %s411 = scalar_select %p410, %s32, 1
          %s412 = smul.addr %s411, 4
          %s413 = smul.addr %s412, 8
          %s414 = scalar_lea.vmem %s1, %s413
        $region56: #{tpu_custom_call.1} parent=47 // pred_fallthru
          _
        // Predicated region
        $region57: #{tpu_custom_call.1} parent=47 // pred_check
          %p415 = pneg %p111
        $region58: #{tpu_custom_call.1} parent=47 // pred_check_branch
          %417 = sbr.rel (%p415) target = $region60
        $region59: #{tpu_custom_call.1} parent=47 // pred_region
          %s418 = sand.u32 %s101, 1
          %s419 = scalar_lea.sflag [#allocation5], %s418
          %s420 = sand.u32 %s101, 1
          %s421 = smul.addr %s420, 32
          %s422 = scalar_lea.vmem [#allocation4], %s421
          %s424 = ssub.s32 512, 512
          %425 = vsyncadd %s419, %s424
          %s426 = smul.addr %s32, 4
          %s427 = smul.addr %s426, 128
          %s428 = scalar_lea.hbm %s2, %s427
          %s429 = sshll.u32 %s422, 4
          %s430 = int_to_ptr.vmem [resolvable:$true] %s429
          %435 = dma.hbm_to_vmem [thread:$0]  %s428, 512, %s430, %s419, 128, 128, 8
        $region60: #{tpu_custom_call.1} parent=47 // pred_fallthru
          _
      $region48: #{tpu_custom_call.1} parent=5 // pred_fallthru
        _
      %p436 = scmp.le.s32.totalorder 1, %s25
      %p437 = scmp.lt.s32.totalorder %s25, 3
      %p438 = pnand %p436, %p437
      %p439 = pneg %p438
      // Predicated region
      $region61: #{tpu_custom_call.1} parent=5 // pred_check
        _
      $region62: #{tpu_custom_call.1} parent=5 // pred_check_branch
        %441 = sbr.rel (%p438) target = $region64
      $region63: #{tpu_custom_call.1} parent=5 // pred_region
        %s442 = ssub.s32 %s25, 1
        %s443 = sand.u32 %s104, 1
        %s444 = scalar_lea.sflag [#allocation5], %s443
        %s445 = sand.u32 %s104, 1
        %s446 = smul.addr %s445, 32
        %s447 = scalar_lea.vmem [#allocation4], %s446
        // Predicated region
        $region65: #{tpu_custom_call.1} parent=63 // pred_check
          %p448 = pneg %p117
        $region66: #{tpu_custom_call.1} parent=63 // pred_check_branch
          %450 = sbr.rel (%p448) target = $region68
        $region67: #{tpu_custom_call.1} parent=63 // pred_region
          %451 = dma.done %s444, 512
        $region68: #{tpu_custom_call.1} parent=63 // pred_fallthru
          _
        // Predicated region
        $region69: #{tpu_custom_call.1} parent=63 // pred_check
          %p452 = pneg %p138
        $region70: #{tpu_custom_call.1} parent=63 // pred_check_branch
          %454 = sbr.rel (%p452) target = $region72
        $region71: #{tpu_custom_call.1} parent=63 // pred_region
          %455 = dma.done [#allocation8], 512
        $region72: #{tpu_custom_call.1} parent=63 // pred_fallthru
          _
        // Predicated region
        $region73: #{tpu_custom_call.1} parent=63 // pred_check
          %p456 = pneg %p180
        $region74: #{tpu_custom_call.1} parent=63 // pred_check_branch
          %458 = sbr.rel (%p456) target = $region76
        $region75: #{tpu_custom_call.1} parent=63 // pred_region
          %459 = dma.done [#allocation8], 512
        $region76: #{tpu_custom_call.1} parent=63 // pred_fallthru
          _
        // Predicated region
        $region77: #{tpu_custom_call.1} parent=63 // pred_check
          %p460 = pneg %p222
        $region78: #{tpu_custom_call.1} parent=63 // pred_check_branch
          %462 = sbr.rel (%p460) target = $region80
        $region79: #{tpu_custom_call.1} parent=63 // pred_region
          %463 = dma.done [#allocation11], 512
        $region80: #{tpu_custom_call.1} parent=63 // pred_fallthru
          _
        // Predicated region
        $region81: #{tpu_custom_call.1} parent=63 // pred_check
          %p464 = pneg %p264
        $region82: #{tpu_custom_call.1} parent=63 // pred_check_branch
          %466 = sbr.rel (%p464) target = $region84
        $region83: #{tpu_custom_call.1} parent=63 // pred_region
          %467 = dma.done [#allocation11], 512
        $region84: #{tpu_custom_call.1} parent=63 // pred_fallthru
          _
        %p468 = scmp.lt.s32.totalorder %s34, 1
        %s469 = scalar_select %p468, %s34, 1
        %p470 = scmp.lt.s32.totalorder %s35, 0
        %s471 = scalar_select %p470, %s35, 0
        %s472 = smul.addr %s469, 4
        %s473 = sadd.s32 %s471, %s472
        %s474 = smul.addr %s473, 8
        %s475 = scalar_lea.vmem %s0, %s474
        %p476 = pneg %p65
        %p477 = pneg %p62
        %p478 = scmp.lt.s32.totalorder %s34, 1
        %s479 = scalar_select %p478, %s34, 1
        %s480 = smul.addr %s479, 4
        %s481 = smul.addr %s480, 8
        %s482 = scalar_lea.vmem %s1, %s481
        %p483 = pneg %p91
        %p484 = pneg %p88
        %s485 = sand.u32 %s104, 1
        %s486 = scalar_lea.sflag [#allocation5], %s485
        %s487 = sand.u32 %s104, 1
        %s488 = smul.addr %s487, 32
        %s489 = scalar_lea.vmem [#allocation4], %s488
        %p490 = pneg %p117
        %p491 = pneg %p114
        %p492 = pneg %p138
        %p493 = pneg %p135
        %p494 = pneg %p159
        %p495 = pneg %p156
        %p496 = pneg %p180
        %p497 = pneg %p177
        %p498 = pneg %p201
        %p499 = pneg %p198
        %p500 = pneg %p222
        %p501 = pneg %p219
        %p502 = pneg %p243
        %p503 = pneg %p240
        %p504 = pneg %p264
        %p505 = pneg %p261
        %p506 = pneg %p285
        %p507 = pneg %p282
        %p508 = pneg %p313
        %p509 = pneg %p310
        %s510 = sand.u32 %s300, 1
        %s511 = scalar_lea.sflag [#allocation6], %s510
        %s512 = sand.u32 %s300, 1
        %s513 = smul.addr %s512, 32
        %s514 = scalar_lea.vmem [#allocation13], %s513
        %p515 = scmp.lt.s32.totalorder %s34, 1
        %s516 = scalar_select %p515, %s34, 1
        %p517 = scmp.lt.s32.totalorder %s35, 0
        %s518 = scalar_select %p517, %s35, 0
        %s519 = smul.addr %s516, 4
        %s520 = sadd.s32 %s518, %s519
        %s521 = smul.addr %s520, 8
        %s522 = scalar_lea.vmem %s0, %s521
        %p523 = scmp.lt.s32.totalorder %s34, 1
        %s524 = scalar_select %p523, %s34, 1
        %s525 = smul.addr %s524, 4
        %s526 = smul.addr %s525, 8
        %s527 = scalar_lea.vmem %s1, %s526
        %p528 = scmp.eq.s32.totalorder %s35, 0
        // Predicated region
        $region85: #{tpu_custom_call.1} parent=63 // pred_check
          %p529 = pneg %p528
        $region86: #{tpu_custom_call.1} parent=63 // pred_check_branch
          %531 = sbr.rel (%p529) target = $region88
        $region87: #{tpu_custom_call.1} parent=63 // pred_region
          %v532 = vld [vmem:[%s527] sm:$0xff]
          %v533 = vld [vmem:[%s527 + $0x8] sm:$0xff]
          %v534 = vld [vmem:[%s527 + $0x10] sm:$0xff]
          %v535 = vld [vmem:[%s527 + $0x18] sm:$0xff]
          %v536 = vld [vmem:[%s447] sm:$0xff]
          %v537 = vld [vmem:[%s447 + $0x8] sm:$0xff]
          %v538 = vld [vmem:[%s447 + $0x10] sm:$0xff]
          %v539 = vld [vmem:[%s447 + $0x18] sm:$0xff]
          %v540 = vld [vmem:[#allocation9] sm:$0xff]
          %v541 = vld [vmem:[#allocation9 + $0x8] sm:$0xff]
          %v542 = vld [vmem:[#allocation9 + $0x10] sm:$0xff]
          %v543 = vld [vmem:[#allocation9 + $0x18] sm:$0xff]
          %v544 = vld [vmem:[%s6] sm:$0xff]
          %v545 = vld [vmem:[%s6 + $0x8] sm:$0xff]
          %v546 = vld [vmem:[%s6 + $0x10] sm:$0xff]
          %v547 = vld [vmem:[%s6 + $0x18] sm:$0xff]
          %549 = vset.pattern.permute.xlu0 0
          %550 = vperm.xlu0 %549, %v544
          %v551 = vpop.permute.xlu0 %550
          %554 = vset.pattern.permute.xlu0 0
          %555 = vperm.xlu0 %554, %v545
          %v556 = vpop.permute.xlu0 %555
          %559 = vset.pattern.permute.xlu0 0
          %560 = vperm.xlu0 %559, %v546
          %v561 = vpop.permute.xlu0 %560
          %564 = vset.pattern.permute.xlu0 0
          %565 = vperm.xlu0 %564, %v547
          %v566 = vpop.permute.xlu0 %565
          %vm568 = vcmask 261120
          %v570 = vsel %vm568, %v540, 0
          %v573 = vsel %vm568, %v541, 0
          %v576 = vsel %vm568, %v542, 0
          %v579 = vsel %vm568, %v543, 0
          %581 = vmatprep.subr.mxu0 0.0
          %582 = vmatpush1.msra.mxu0 0.0
          %583 = vmatprep.subr.mxu0 0.0
          %584 = vmatpush1.msra.mxu0 0.0
          %585 = vmatprep.subr.mxu0 0.0
          %586 = vmatpush1.msra.mxu0 0.0
          %587 = vmatprep.subr.mxu0 0.0
          %588 = vmatpush1.msra.mxu0 0.0
          %589 = vmatprep.subr.mxu0 0.0
          %590 = vmatpush1.msra.mxu0 0.0
          %591 = vmatprep.subr.mxu0 0.0
          %592 = vmatpush1.msra.mxu0 0.0
          %593 = vmatprep.subr.mxu0 0.0
          %594 = vmatpush1.msra.mxu0 0.0
          %595 = vmatprep.subr.mxu0 0.0
          %596 = vmatpush1.msra.mxu0 0.0
          %597 = vmatprep.subr.mxu0 0.0
          %598 = vmatpush1.msra.mxu0 0.0
          %599 = vmatprep.subr.mxu0 0.0
          %600 = vmatpush1.msra.mxu0 0.0
          %601 = vmatprep.subr.mxu0 0.0
          %602 = vmatpush1.msra.mxu0 0.0
          %603 = vmatprep.subr.mxu0 0.0
          %604 = vmatpush1.msra.mxu0 0.0
          %605 = vmatprep.subr.mxu0 0.0
          %606 = vmatpush1.msra.mxu0 %v535
          %607 = vmatprep.subr.mxu0 0.0
          %608 = vmatpush1.msra.mxu0 %v534
          %609 = vmatprep.subr.mxu0 0.0
          %610 = vmatpush1.msra.mxu0 %v533
          %611 = vmatprep.subr.mxu0 0.0
          %612 = vmatpush1.msra.mxu0 %v532
          %613 = vmatprep.subr.mxu0 0.0
          %614 = vmatpush2.msra.mxu0 0.0
          %615 = vmatprep.subr.mxu0 0.0
          %616 = vmatpush2.msra.mxu0 0.0
          %617 = vmatprep.subr.mxu0 0.0
          %618 = vmatpush2.msra.mxu0 0.0
          %619 = vmatprep.subr.mxu0 0.0
          %620 = vmatpush2.msra.mxu0 0.0
          %621 = vmatprep.subr.mxu0 0.0
          %622 = vmatpush2.msra.mxu0 0.0
          %623 = vmatprep.subr.mxu0 0.0
          %624 = vmatpush2.msra.mxu0 0.0
          %625 = vmatprep.subr.mxu0 0.0
          %626 = vmatpush2.msra.mxu0 0.0
          %627 = vmatprep.subr.mxu0 0.0
          %628 = vmatpush2.msra.mxu0 0.0
          %629 = vmatprep.subr.mxu0 0.0
          %630 = vmatpush2.msra.mxu0 0.0
          %631 = vmatprep.subr.mxu0 0.0
          %632 = vmatpush2.msra.mxu0 0.0
          %633 = vmatprep.subr.mxu0 0.0
          %634 = vmatpush2.msra.mxu0 0.0
          %635 = vmatprep.subr.mxu0 0.0
          %636 = vmatpush2.msra.mxu0 0.0
          %637 = vmatprep.subr.mxu0 0.0
          %638 = vmatpush2.msra.mxu0 0.0
          %639 = vmatprep.subr.mxu0 0.0
          %640 = vmatpush2.msra.mxu0 0.0
          %641 = vmatprep.subr.mxu0 0.0
          %642 = vmatpush2.msra.mxu0 0.0
          %643 = vmatprep.subr.mxu0 0.0
          %644 = vmatpush2.msra.mxu0 0.0
          %645 = vmatprep.mubr.f32.mxu0 0.0
          %646 = vmatmul.mubr.f32.gmra.mxu0 %v570
          %v647 = vpop.f32.mrf.mxu0
          %v648 = vadd.f32 %v551, %v647
          %v649 = vpop.f32.mrf.mxu0
          %650 = vmatprep.mubr.f32.mxu0 0.0
          %651 = vmatmul.mubr.f32.gmra.mxu0 %v573
          %v652 = vpop.f32.mrf.mxu0
          %v653 = vadd.f32 %v556, %v652
          %v654 = vpop.f32.mrf.mxu0
          %655 = vmatprep.mubr.f32.mxu0 0.0
          %656 = vmatmul.mubr.f32.gmra.mxu0 %v576
          %v657 = vpop.f32.mrf.mxu0
          %v658 = vadd.f32 %v561, %v657
          %v659 = vpop.f32.mrf.mxu0
          %660 = vmatprep.mubr.f32.mxu0 0.0
          %661 = vmatmul.mubr.f32.gmra.mxu0 %v579
          %v662 = vpop.f32.mrf.mxu0
          %v663 = vadd.f32 %v566, %v662
          %v664 = vpop.f32.mrf.mxu0
          %665 = vdwg.mxu0
          %v666 = vld [vmem:[#allocation10] sm:$0xff]
          %v667 = vld [vmem:[#allocation10 + $0x8] sm:$0xff]
          %v668 = vld [vmem:[#allocation10 + $0x10] sm:$0xff]
          %v669 = vld [vmem:[#allocation10 + $0x18] sm:$0xff]
          %v670 = vld [vmem:[%s8] sm:$0xff]
          %v671 = vld [vmem:[%s8 + $0x8] sm:$0xff]
          %v672 = vld [vmem:[%s8 + $0x10] sm:$0xff]
          %v673 = vld [vmem:[%s8 + $0x18] sm:$0xff]
          %675 = vset.pattern.permute.xlu0 0
          %676 = vperm.xlu0 %675, %v670
          %v677 = vpop.permute.xlu0 %676
          %680 = vset.pattern.permute.xlu0 0
          %681 = vperm.xlu0 %680, %v671
          %v682 = vpop.permute.xlu0 %681
          %685 = vset.pattern.permute.xlu0 0
          %686 = vperm.xlu0 %685, %v672
          %v687 = vpop.permute.xlu0 %686
          %690 = vset.pattern.permute.xlu0 0
          %691 = vperm.xlu0 %690, %v673
          %v692 = vpop.permute.xlu0 %691
          %v695 = vsel %vm568, %v666, 0
          %v698 = vsel %vm568, %v667, 0
          %v701 = vsel %vm568, %v668, 0
          %v704 = vsel %vm568, %v669, 0
          %706 = vmatprep.subr.mxu0 0.0
          %707 = vmatpush1.msra.mxu0 0.0
          %708 = vmatprep.subr.mxu0 0.0
          %709 = vmatpush1.msra.mxu0 0.0
          %710 = vmatprep.subr.mxu0 0.0
          %711 = vmatpush1.msra.mxu0 0.0
          %712 = vmatprep.subr.mxu0 0.0
          %713 = vmatpush1.msra.mxu0 0.0
          %714 = vmatprep.subr.mxu0 0.0
          %715 = vmatpush1.msra.mxu0 0.0
          %716 = vmatprep.subr.mxu0 0.0
          %717 = vmatpush1.msra.mxu0 0.0
          %718 = vmatprep.subr.mxu0 0.0
          %719 = vmatpush1.msra.mxu0 0.0
          %720 = vmatprep.subr.mxu0 0.0
          %721 = vmatpush1.msra.mxu0 0.0
          %722 = vmatprep.subr.mxu0 0.0
          %723 = vmatpush1.msra.mxu0 0.0
          %724 = vmatprep.subr.mxu0 0.0
          %725 = vmatpush1.msra.mxu0 0.0
          %726 = vmatprep.subr.mxu0 0.0
          %727 = vmatpush1.msra.mxu0 0.0
          %728 = vmatprep.subr.mxu0 0.0
          %729 = vmatpush1.msra.mxu0 0.0
          %730 = vmatprep.subr.mxu0 0.0
          %731 = vmatpush1.msra.mxu0 %v539
          %732 = vmatprep.subr.mxu0 0.0
          %733 = vmatpush1.msra.mxu0 %v538
          %734 = vmatprep.subr.mxu0 0.0
          %735 = vmatpush1.msra.mxu0 %v537
          %736 = vmatprep.subr.mxu0 0.0
          %737 = vmatpush1.msra.mxu0 %v536
          %738 = vmatprep.subr.mxu0 0.0
          %739 = vmatpush2.msra.mxu0 0.0
          %740 = vmatprep.subr.mxu0 0.0
          %741 = vmatpush2.msra.mxu0 0.0
          %742 = vmatprep.subr.mxu0 0.0
          %743 = vmatpush2.msra.mxu0 0.0
          %744 = vmatprep.subr.mxu0 0.0
          %745 = vmatpush2.msra.mxu0 0.0
          %746 = vmatprep.subr.mxu0 0.0
          %747 = vmatpush2.msra.mxu0 0.0
          %748 = vmatprep.subr.mxu0 0.0
          %749 = vmatpush2.msra.mxu0 0.0
          %750 = vmatprep.subr.mxu0 0.0
          %751 = vmatpush2.msra.mxu0 0.0
          %752 = vmatprep.subr.mxu0 0.0
          %753 = vmatpush2.msra.mxu0 0.0
          %754 = vmatprep.subr.mxu0 0.0
          %755 = vmatpush2.msra.mxu0 0.0
          %756 = vmatprep.subr.mxu0 0.0
          %757 = vmatpush2.msra.mxu0 0.0
          %758 = vmatprep.subr.mxu0 0.0
          %759 = vmatpush2.msra.mxu0 0.0
          %760 = vmatprep.subr.mxu0 0.0
          %761 = vmatpush2.msra.mxu0 0.0
          %762 = vmatprep.subr.mxu0 0.0
          %763 = vmatpush2.msra.mxu0 0.0
          %764 = vmatprep.subr.mxu0 0.0
          %765 = vmatpush2.msra.mxu0 0.0
          %766 = vmatprep.subr.mxu0 0.0
          %767 = vmatpush2.msra.mxu0 0.0
          %768 = vmatprep.subr.mxu0 0.0
          %769 = vmatpush2.msra.mxu0 0.0
          %770 = vmatprep.mubr.f32.mxu0 0.0
          %771 = vmatmul.mubr.f32.gmra.mxu0 %v695
          %v772 = vpop.f32.mrf.mxu0
          %v773 = vadd.f32 %v677, %v772
          %v774 = vpop.f32.mrf.mxu0
          %775 = vmatprep.mubr.f32.mxu0 0.0
          %776 = vmatmul.mubr.f32.gmra.mxu0 %v698
          %v777 = vpop.f32.mrf.mxu0
          %v778 = vadd.f32 %v682, %v777
          %v779 = vpop.f32.mrf.mxu0
          %780 = vmatprep.mubr.f32.mxu0 0.0
          %781 = vmatmul.mubr.f32.gmra.mxu0 %v701
          %v782 = vpop.f32.mrf.mxu0
          %v783 = vadd.f32 %v687, %v782
          %v784 = vpop.f32.mrf.mxu0
          %785 = vmatprep.mubr.f32.mxu0 0.0
          %786 = vmatmul.mubr.f32.gmra.mxu0 %v704
          %v787 = vpop.f32.mrf.mxu0
          %v788 = vadd.f32 %v692, %v787
          %v789 = vpop.f32.mrf.mxu0
          %790 = vdwg.mxu0
          %791 = vst [vmem:[#allocation2] sm:$0xff] %v648
          %792 = vst [vmem:[#allocation2 + $0x8] sm:$0xff] %v653
          %793 = vst [vmem:[#allocation2 + $0x10] sm:$0xff] %v658
          %794 = vst [vmem:[#allocation2 + $0x18] sm:$0xff] %v663
          %795 = vst [vmem:[#allocation3] sm:$0xff] %v773
          %796 = vst [vmem:[#allocation3 + $0x8] sm:$0xff] %v778
          %797 = vst [vmem:[#allocation3 + $0x10] sm:$0xff] %v783
          %798 = vst [vmem:[#allocation3 + $0x18] sm:$0xff] %v788
        $region88: #{tpu_custom_call.1} parent=63 // pred_fallthru
          _
        %v799 = vld [vmem:[%s522] sm:$0xff]
        %v800 = vld [vmem:[%s522 + $0x8] sm:$0xff]
        %v801 = vld [vmem:[%s522 + $0x10] sm:$0xff]
        %v802 = vld [vmem:[%s522 + $0x18] sm:$0xff]
        %v803 = vld [vmem:[#allocation7] sm:$0xff]
        %v804 = vld [vmem:[#allocation7 + $0x8] sm:$0xff]
        %v805 = vld [vmem:[#allocation7 + $0x10] sm:$0xff]
        %v806 = vld [vmem:[#allocation7 + $0x18] sm:$0xff]
        %v807 = vld [vmem:[%s4] sm:$0xff]
        %v808 = vld [vmem:[%s4 + $0x8] sm:$0xff]
        %v809 = vld [vmem:[%s4 + $0x10] sm:$0xff]
        %v810 = vld [vmem:[%s4 + $0x18] sm:$0xff]
        %812 = vset.pattern.permute.xlu0 0
        %813 = vperm.xlu0 %812, %v807
        %v814 = vpop.permute.xlu0 %813
        %817 = vset.pattern.permute.xlu0 0
        %818 = vperm.xlu0 %817, %v808
        %v819 = vpop.permute.xlu0 %818
        %822 = vset.pattern.permute.xlu0 0
        %823 = vperm.xlu0 %822, %v809
        %v824 = vpop.permute.xlu0 %823
        %827 = vset.pattern.permute.xlu0 0
        %828 = vperm.xlu0 %827, %v810
        %v829 = vpop.permute.xlu0 %828
        %vm831 = vcmask 261120
        %v833 = vsel %vm831, %v803, 0
        %v836 = vsel %vm831, %v804, 0
        %v839 = vsel %vm831, %v805, 0
        %v842 = vsel %vm831, %v806, 0
        %844 = vmatprep.subr.mxu0 0.0
        %845 = vmatpush1.msra.mxu0 0.0
        %846 = vmatprep.subr.mxu0 0.0
        %847 = vmatpush1.msra.mxu0 0.0
        %848 = vmatprep.subr.mxu0 0.0
        %849 = vmatpush1.msra.mxu0 0.0
        %850 = vmatprep.subr.mxu0 0.0
        %851 = vmatpush1.msra.mxu0 0.0
        %852 = vmatprep.subr.mxu0 0.0
        %853 = vmatpush1.msra.mxu0 0.0
        %854 = vmatprep.subr.mxu0 0.0
        %855 = vmatpush1.msra.mxu0 0.0
        %856 = vmatprep.subr.mxu0 0.0
        %857 = vmatpush1.msra.mxu0 0.0
        %858 = vmatprep.subr.mxu0 0.0
        %859 = vmatpush1.msra.mxu0 0.0
        %860 = vmatprep.subr.mxu0 0.0
        %861 = vmatpush1.msra.mxu0 0.0
        %862 = vmatprep.subr.mxu0 0.0
        %863 = vmatpush1.msra.mxu0 0.0
        %864 = vmatprep.subr.mxu0 0.0
        %865 = vmatpush1.msra.mxu0 0.0
        %866 = vmatprep.subr.mxu0 0.0
        %867 = vmatpush1.msra.mxu0 0.0
        %868 = vmatprep.subr.mxu0 0.0
        %869 = vmatpush1.msra.mxu0 %v802
        %870 = vmatprep.subr.mxu0 0.0
        %871 = vmatpush1.msra.mxu0 %v801
        %872 = vmatprep.subr.mxu0 0.0
        %873 = vmatpush1.msra.mxu0 %v800
        %874 = vmatprep.subr.mxu0 0.0
        %875 = vmatpush1.msra.mxu0 %v799
        %876 = vmatprep.subr.mxu0 0.0
        %877 = vmatpush2.msra.mxu0 0.0
        %878 = vmatprep.subr.mxu0 0.0
        %879 = vmatpush2.msra.mxu0 0.0
        %880 = vmatprep.subr.mxu0 0.0
        %881 = vmatpush2.msra.mxu0 0.0
        %882 = vmatprep.subr.mxu0 0.0
        %883 = vmatpush2.msra.mxu0 0.0
        %884 = vmatprep.subr.mxu0 0.0
        %885 = vmatpush2.msra.mxu0 0.0
        %886 = vmatprep.subr.mxu0 0.0
        %887 = vmatpush2.msra.mxu0 0.0
        %888 = vmatprep.subr.mxu0 0.0
        %889 = vmatpush2.msra.mxu0 0.0
        %890 = vmatprep.subr.mxu0 0.0
        %891 = vmatpush2.msra.mxu0 0.0
        %892 = vmatprep.subr.mxu0 0.0
        %893 = vmatpush2.msra.mxu0 0.0
        %894 = vmatprep.subr.mxu0 0.0
        %895 = vmatpush2.msra.mxu0 0.0
        %896 = vmatprep.subr.mxu0 0.0
        %897 = vmatpush2.msra.mxu0 0.0
        %898 = vmatprep.subr.mxu0 0.0
        %899 = vmatpush2.msra.mxu0 0.0
        %900 = vmatprep.subr.mxu0 0.0
        %901 = vmatpush2.msra.mxu0 0.0
        %902 = vmatprep.subr.mxu0 0.0
        %903 = vmatpush2.msra.mxu0 0.0
        %904 = vmatprep.subr.mxu0 0.0
        %905 = vmatpush2.msra.mxu0 0.0
        %906 = vmatprep.subr.mxu0 0.0
        %907 = vmatpush2.msra.mxu0 0.0
        %908 = vmatprep.mubr.f32.mxu0 0.0
        %909 = vmatmul.mubr.f32.gmra.mxu0 %v833
        %v910 = vpop.f32.mrf.mxu0
        %v911 = vadd.f32 %v814, %v910
        %v912 = vpop.f32.mrf.mxu0
        %913 = vmatprep.mubr.f32.mxu0 0.0
        %914 = vmatmul.mubr.f32.gmra.mxu0 %v836
        %v915 = vpop.f32.mrf.mxu0
        %v916 = vadd.f32 %v819, %v915
        %v917 = vpop.f32.mrf.mxu0
        %918 = vmatprep.mubr.f32.mxu0 0.0
        %919 = vmatmul.mubr.f32.gmra.mxu0 %v839
        %v920 = vpop.f32.mrf.mxu0
        %v921 = vadd.f32 %v824, %v920
        %v922 = vpop.f32.mrf.mxu0
        %923 = vmatprep.mubr.f32.mxu0 0.0
        %924 = vmatmul.mubr.f32.gmra.mxu0 %v842
        %v925 = vpop.f32.mrf.mxu0
        %v926 = vadd.f32 %v829, %v925
        %v927 = vpop.f32.mrf.mxu0
        %928 = vdwg.mxu0
        %v929 = vmul.f32 %v911, 0.35355338
        %v930 = vmul.f32 %v916, 0.35355338
        %v931 = vmul.f32 %v921, 0.35355338
        %v932 = vmul.f32 %v926, 0.35355338
        %933 = vxpose.xlu0.b32.start [1/16] %v929, 128
        %934 = vxpose.xlu0.b32.cont [2/16] 0.0, 128
        %935 = vxpose.xlu0.b32.cont [3/16] 0.0, 128
        %936 = vxpose.xlu0.b32.cont [4/16] 0.0, 128
        %937 = vxpose.xlu0.b32.cont [5/16] 0.0, 128
        %938 = vxpose.xlu0.b32.cont [6/16] 0.0, 128
        %939 = vxpose.xlu0.b32.cont [7/16] 0.0, 128
        %940 = vxpose.xlu0.b32.cont [8/16] 0.0, 128
        %941 = vxpose.xlu0.b32.cont [9/16] 0.0, 128
        %942 = vxpose.xlu0.b32.cont [10/16] 0.0, 128
        %943 = vxpose.xlu0.b32.cont [11/16] 0.0, 128
        %944 = vxpose.xlu0.b32.cont [12/16] 0.0, 128
        %945 = vxpose.xlu0.b32.cont [13/16] 0.0, 128
        %946 = vxpose.xlu0.b32.cont [14/16] 0.0, 128
        %947 = vxpose.xlu0.b32.cont [15/16] 0.0, 128
        %948 = vxpose.xlu0.b32.end [16/16] 0.0, 128
        %v949 = vpop.trf.xlu0
        %v950 = vpop.trf.xlu0
        %v951 = vpop.trf.xlu0
        %v952 = vpop.trf.xlu0
        %v953 = vpop.trf.xlu0
        %v954 = vpop.trf.xlu0
        %v955 = vpop.trf.xlu0
        %v956 = vpop.trf.xlu0
        %v957 = vpop.trf.xlu0
        %v958 = vpop.trf.xlu0
        %v959 = vpop.trf.xlu0
        %v960 = vpop.trf.xlu0
        %v961 = vpop.trf.xlu0
        %v962 = vpop.trf.xlu0
        %v963 = vpop.trf.xlu0
        %v964 = vpop.trf.xlu0
        %965 = vxpose.xlu0.b32.start [1/16] %v930, 128
        %966 = vxpose.xlu0.b32.cont [2/16] 0.0, 128
        %967 = vxpose.xlu0.b32.cont [3/16] 0.0, 128
        %968 = vxpose.xlu0.b32.cont [4/16] 0.0, 128
        %969 = vxpose.xlu0.b32.cont [5/16] 0.0, 128
        %970 = vxpose.xlu0.b32.cont [6/16] 0.0, 128
        %971 = vxpose.xlu0.b32.cont [7/16] 0.0, 128
        %972 = vxpose.xlu0.b32.cont [8/16] 0.0, 128
        %973 = vxpose.xlu0.b32.cont [9/16] 0.0, 128
        %974 = vxpose.xlu0.b32.cont [10/16] 0.0, 128
        %975 = vxpose.xlu0.b32.cont [11/16] 0.0, 128
        %976 = vxpose.xlu0.b32.cont [12/16] 0.0, 128
        %977 = vxpose.xlu0.b32.cont [13/16] 0.0, 128
        %978 = vxpose.xlu0.b32.cont [14/16] 0.0, 128
        %979 = vxpose.xlu0.b32.cont [15/16] 0.0, 128
        %980 = vxpose.xlu0.b32.end [16/16] 0.0, 128
        %v981 = vpop.trf.xlu0
        %v982 = vpop.trf.xlu0
        %v983 = vpop.trf.xlu0
        %v984 = vpop.trf.xlu0
        %v985 = vpop.trf.xlu0
        %v986 = vpop.trf.xlu0
        %v987 = vpop.trf.xlu0
        %v988 = vpop.trf.xlu0
        %v989 = vpop.trf.xlu0
        %v990 = vpop.trf.xlu0
        %v991 = vpop.trf.xlu0
        %v992 = vpop.trf.xlu0
        %v993 = vpop.trf.xlu0
        %v994 = vpop.trf.xlu0
        %v995 = vpop.trf.xlu0
        %v996 = vpop.trf.xlu0
        %997 = vxpose.xlu0.b32.start [1/16] %v931, 128
        %998 = vxpose.xlu0.b32.cont [2/16] 0.0, 128
        %999 = vxpose.xlu0.b32.cont [3/16] 0.0, 128
        %1000 = vxpose.xlu0.b32.cont [4/16] 0.0, 128
        %1001 = vxpose.xlu0.b32.cont [5/16] 0.0, 128
        %1002 = vxpose.xlu0.b32.cont [6/16] 0.0, 128
        %1003 = vxpose.xlu0.b32.cont [7/16] 0.0, 128
        %1004 = vxpose.xlu0.b32.cont [8/16] 0.0, 128
        %1005 = vxpose.xlu0.b32.cont [9/16] 0.0, 128
        %1006 = vxpose.xlu0.b32.cont [10/16] 0.0, 128
        %1007 = vxpose.xlu0.b32.cont [11/16] 0.0, 128
        %1008 = vxpose.xlu0.b32.cont [12/16] 0.0, 128
        %1009 = vxpose.xlu0.b32.cont [13/16] 0.0, 128
        %1010 = vxpose.xlu0.b32.cont [14/16] 0.0, 128
        %1011 = vxpose.xlu0.b32.cont [15/16] 0.0, 128
        %1012 = vxpose.xlu0.b32.end [16/16] 0.0, 128
        %v1013 = vpop.trf.xlu0
        %v1014 = vpop.trf.xlu0
        %v1015 = vpop.trf.xlu0
        %v1016 = vpop.trf.xlu0
        %v1017 = vpop.trf.xlu0
        %v1018 = vpop.trf.xlu0
        %v1019 = vpop.trf.xlu0
        %v1020 = vpop.trf.xlu0
        %v1021 = vpop.trf.xlu0
        %v1022 = vpop.trf.xlu0
        %v1023 = vpop.trf.xlu0
        %v1024 = vpop.trf.xlu0
        %v1025 = vpop.trf.xlu0
        %v1026 = vpop.trf.xlu0
        %v1027 = vpop.trf.xlu0
        %v1028 = vpop.trf.xlu0
        %1029 = vxpose.xlu0.b32.start [1/16] %v932, 128
        %1030 = vxpose.xlu0.b32.cont [2/16] 0.0, 128
        %1031 = vxpose.xlu0.b32.cont [3/16] 0.0, 128
        %1032 = vxpose.xlu0.b32.cont [4/16] 0.0, 128
        %1033 = vxpose.xlu0.b32.cont [5/16] 0.0, 128
        %1034 = vxpose.xlu0.b32.cont [6/16] 0.0, 128
        %1035 = vxpose.xlu0.b32.cont [7/16] 0.0, 128
        %1036 = vxpose.xlu0.b32.cont [8/16] 0.0, 128
        %1037 = vxpose.xlu0.b32.cont [9/16] 0.0, 128
        %1038 = vxpose.xlu0.b32.cont [10/16] 0.0, 128
        %1039 = vxpose.xlu0.b32.cont [11/16] 0.0, 128
        %1040 = vxpose.xlu0.b32.cont [12/16] 0.0, 128
        %1041 = vxpose.xlu0.b32.cont [13/16] 0.0, 128
        %1042 = vxpose.xlu0.b32.cont [14/16] 0.0, 128
        %1043 = vxpose.xlu0.b32.cont [15/16] 0.0, 128
        %1044 = vxpose.xlu0.b32.end [16/16] 0.0, 128
        %v1045 = vpop.trf.xlu0
        %v1046 = vpop.trf.xlu0
        %v1047 = vpop.trf.xlu0
        %v1048 = vpop.trf.xlu0
        %v1049 = vpop.trf.xlu0
        %v1050 = vpop.trf.xlu0
        %v1051 = vpop.trf.xlu0
        %v1052 = vpop.trf.xlu0
        %v1053 = vpop.trf.xlu0
        %v1054 = vpop.trf.xlu0
        %v1055 = vpop.trf.xlu0
        %v1056 = vpop.trf.xlu0
        %v1057 = vpop.trf.xlu0
        %v1058 = vpop.trf.xlu0
        %v1059 = vpop.trf.xlu0
        %v1060 = vpop.trf.xlu0
        %v1061 = vld [vmem:[#allocation2] sm:$0xff]
        %v1062 = vld [vmem:[#allocation2 + $0x8] sm:$0xff]
        %v1063 = vld [vmem:[#allocation2 + $0x10] sm:$0xff]
        %v1064 = vld [vmem:[#allocation2 + $0x18] sm:$0xff]
        %v1065 = vld [vmem:[#allocation3] sm:$0xff]
        %v1066 = vld [vmem:[#allocation3 + $0x8] sm:$0xff]
        %v1067 = vld [vmem:[#allocation3 + $0x10] sm:$0xff]
        %v1068 = vld [vmem:[#allocation3 + $0x18] sm:$0xff]
        %vm1069 = vcmask 64512
        %v1071 = vsel %vm1069, %v949, 0
        %v1074 = vsel %vm1069, %v950, 0
        %v1077 = vsel %vm1069, %v951, 0
        %v1080 = vsel %vm1069, %v952, 0
        %v1083 = vsel %vm1069, %v953, 0
        %v1086 = vsel %vm1069, %v954, 0
        %v1089 = vsel %vm1069, %v955, 0
        %v1092 = vsel %vm1069, %v956, 0
        %v1095 = vsel %vm1069, %v957, 0
        %v1098 = vsel %vm1069, %v958, 0
        %v1101 = vsel %vm1069, %v959, 0
        %v1104 = vsel %vm1069, %v960, 0
        %v1107 = vsel %vm1069, %v961, 0
        %v1110 = vsel %vm1069, %v962, 0
        %v1113 = vsel %vm1069, %v963, 0
        %v1116 = vsel %vm1069, %v964, 0
        %1118 = vmatprep.subr.mxu0 0.0
        %1119 = vmatpush1.msra.mxu0 0.0
        %1120 = vmatprep.subr.mxu0 0.0
        %1121 = vmatpush1.msra.mxu0 0.0
        %1122 = vmatprep.subr.mxu0 0.0
        %1123 = vmatpush1.msra.mxu0 0.0
        %1124 = vmatprep.subr.mxu0 0.0
        %1125 = vmatpush1.msra.mxu0 0.0
        %1126 = vmatprep.subr.mxu0 0.0
        %1127 = vmatpush1.msra.mxu0 0.0
        %1128 = vmatprep.subr.mxu0 0.0
        %1129 = vmatpush1.msra.mxu0 0.0
        %1130 = vmatprep.subr.mxu0 0.0
        %1131 = vmatpush1.msra.mxu0 0.0
        %1132 = vmatprep.subr.mxu0 0.0
        %1133 = vmatpush1.msra.mxu0 0.0
        %1134 = vmatprep.subr.mxu0 0.0
        %1135 = vmatpush1.msra.mxu0 0.0
        %1136 = vmatprep.subr.mxu0 0.0
        %1137 = vmatpush1.msra.mxu0 0.0
        %1138 = vmatprep.subr.mxu0 0.0
        %1139 = vmatpush1.msra.mxu0 0.0
        %1140 = vmatprep.subr.mxu0 0.0
        %1141 = vmatpush1.msra.mxu0 0.0
        %1142 = vmatprep.subr.mxu0 0.0
        %1143 = vmatpush1.msra.mxu0 0.0
        %1144 = vmatprep.subr.mxu0 0.0
        %1145 = vmatpush1.msra.mxu0 0.0
        %1146 = vmatprep.subr.mxu0 0.0
        %1147 = vmatpush1.msra.mxu0 0.0
        %1148 = vmatprep.subr.mxu0 0.0
        %1149 = vmatpush1.msra.mxu0 %v1061
        %1150 = vmatprep.subr.mxu0 0.0
        %1151 = vmatpush2.msra.mxu0 0.0
        %1152 = vmatprep.subr.mxu0 0.0
        %1153 = vmatpush2.msra.mxu0 0.0
        %1154 = vmatprep.subr.mxu0 0.0
        %1155 = vmatpush2.msra.mxu0 0.0
        %1156 = vmatprep.subr.mxu0 0.0
        %1157 = vmatpush2.msra.mxu0 0.0
        %1158 = vmatprep.subr.mxu0 0.0
        %1159 = vmatpush2.msra.mxu0 0.0
        %1160 = vmatprep.subr.mxu0 0.0
        %1161 = vmatpush2.msra.mxu0 0.0
        %1162 = vmatprep.subr.mxu0 0.0
        %1163 = vmatpush2.msra.mxu0 0.0
        %1164 = vmatprep.subr.mxu0 0.0
        %1165 = vmatpush2.msra.mxu0 0.0
        %1166 = vmatprep.subr.mxu0 0.0
        %1167 = vmatpush2.msra.mxu0 0.0
        %1168 = vmatprep.subr.mxu0 0.0
        %1169 = vmatpush2.msra.mxu0 0.0
        %1170 = vmatprep.subr.mxu0 0.0
        %1171 = vmatpush2.msra.mxu0 0.0
        %1172 = vmatprep.subr.mxu0 0.0
        %1173 = vmatpush2.msra.mxu0 0.0
        %1174 = vmatprep.subr.mxu0 0.0
        %1175 = vmatpush2.msra.mxu0 0.0
        %1176 = vmatprep.subr.mxu0 0.0
        %1177 = vmatpush2.msra.mxu0 0.0
        %1178 = vmatprep.subr.mxu0 0.0
        %1179 = vmatpush2.msra.mxu0 0.0
        %1180 = vmatprep.subr.mxu0 0.0
        %1181 = vmatpush2.msra.mxu0 0.0
        %1182 = vmatprep.mubr.f32.mxu0 0.0
        %1183 = vmatmul.mubr.f32.gmra.mxu0 %v1071
        %v1184 = vpop.f32.mrf.mxu0
        %v1185 = vadd.f32 0.0, %v1184
        %v1186 = vpop.f32.mrf.mxu0
        %1187 = vmatprep.mubr.f32.mxu0 0.0
        %1188 = vmatmul.mubr.f32.gmra.mxu0 %v1074
        %v1189 = vpop.f32.mrf.mxu0
        %v1190 = vadd.f32 0.0, %v1189
        %v1191 = vpop.f32.mrf.mxu0
        %1192 = vmatprep.mubr.f32.mxu0 0.0
        %1193 = vmatmul.mubr.f32.gmra.mxu0 %v1077
        %v1194 = vpop.f32.mrf.mxu0
        %v1195 = vadd.f32 0.0, %v1194
        %v1196 = vpop.f32.mrf.mxu0
        %1197 = vmatprep.mubr.f32.mxu0 0.0
        %1198 = vmatmul.mubr.f32.gmra.mxu0 %v1080
        %v1199 = vpop.f32.mrf.mxu0
        %v1200 = vadd.f32 0.0, %v1199
        %v1201 = vpop.f32.mrf.mxu0
        %1202 = vmatprep.mubr.f32.mxu0 0.0
        %1203 = vmatmul.mubr.f32.gmra.mxu0 %v1083
        %v1204 = vpop.f32.mrf.mxu0
        %v1205 = vadd.f32 0.0, %v1204
        %v1206 = vpop.f32.mrf.mxu0
        %1207 = vmatprep.mubr.f32.mxu0 0.0
        %1208 = vmatmul.mubr.f32.gmra.mxu0 %v1086
        %v1209 = vpop.f32.mrf.mxu0
        %v1210 = vadd.f32 0.0, %v1209
        %v1211 = vpop.f32.mrf.mxu0
        %1212 = vmatprep.mubr.f32.mxu0 0.0
        %1213 = vmatmul.mubr.f32.gmra.mxu0 %v1089
        %v1214 = vpop.f32.mrf.mxu0
        %v1215 = vadd.f32 0.0, %v1214
        %v1216 = vpop.f32.mrf.mxu0
        %1217 = vmatprep.mubr.f32.mxu0 0.0
        %1218 = vmatmul.mubr.f32.gmra.mxu0 %v1092
        %v1219 = vpop.f32.mrf.mxu0
        %v1220 = vadd.f32 0.0, %v1219
        %v1221 = vpop.f32.mrf.mxu0
        %1222 = vmatprep.mubr.f32.mxu0 0.0
        %1223 = vmatmul.mubr.f32.gmra.mxu0 %v1095
        %v1224 = vpop.f32.mrf.mxu0
        %v1225 = vadd.f32 0.0, %v1224
        %v1226 = vpop.f32.mrf.mxu0
        %1227 = vmatprep.mubr.f32.mxu0 0.0
        %1228 = vmatmul.mubr.f32.gmra.mxu0 %v1098
        %v1229 = vpop.f32.mrf.mxu0
        %v1230 = vadd.f32 0.0, %v1229
        %v1231 = vpop.f32.mrf.mxu0
        %1232 = vmatprep.mubr.f32.mxu0 0.0
        %1233 = vmatmul.mubr.f32.gmra.mxu0 %v1101
        %v1234 = vpop.f32.mrf.mxu0
        %v1235 = vadd.f32 0.0, %v1234
        %v1236 = vpop.f32.mrf.mxu0
        %1237 = vmatprep.mubr.f32.mxu0 0.0
        %1238 = vmatmul.mubr.f32.gmra.mxu0 %v1104
        %v1239 = vpop.f32.mrf.mxu0
        %v1240 = vadd.f32 0.0, %v1239
        %v1241 = vpop.f32.mrf.mxu0
        %1242 = vmatprep.mubr.f32.mxu0 0.0
        %1243 = vmatmul.mubr.f32.gmra.mxu0 %v1107
        %v1244 = vpop.f32.mrf.mxu0
        %v1245 = vadd.f32 0.0, %v1244
        %v1246 = vpop.f32.mrf.mxu0
        %1247 = vmatprep.mubr.f32.mxu0 0.0
        %1248 = vmatmul.mubr.f32.gmra.mxu0 %v1110
        %v1249 = vpop.f32.mrf.mxu0
        %v1250 = vadd.f32 0.0, %v1249
        %v1251 = vpop.f32.mrf.mxu0
        %1252 = vmatprep.mubr.f32.mxu0 0.0
        %1253 = vmatmul.mubr.f32.gmra.mxu0 %v1113
        %v1254 = vpop.f32.mrf.mxu0
        %v1255 = vadd.f32 0.0, %v1254
        %v1256 = vpop.f32.mrf.mxu0
        %1257 = vmatprep.mubr.f32.mxu0 0.0
        %1258 = vmatmul.mubr.f32.gmra.mxu0 %v1116
        %v1259 = vpop.f32.mrf.mxu0
        %v1260 = vadd.f32 0.0, %v1259
        %v1261 = vpop.f32.mrf.mxu0
        %1262 = vdwg.mxu0
        %v1264 = vsel %vm1069, %v981, 0
        %v1267 = vsel %vm1069, %v982, 0
        %v1270 = vsel %vm1069, %v983, 0
        %v1273 = vsel %vm1069, %v984, 0
        %v1276 = vsel %vm1069, %v985, 0
        %v1279 = vsel %vm1069, %v986, 0
        %v1282 = vsel %vm1069, %v987, 0
        %v1285 = vsel %vm1069, %v988, 0
        %v1288 = vsel %vm1069, %v989, 0
        %v1291 = vsel %vm1069, %v990, 0
        %v1294 = vsel %vm1069, %v991, 0
        %v1297 = vsel %vm1069, %v992, 0
        %v1300 = vsel %vm1069, %v993, 0
        %v1303 = vsel %vm1069, %v994, 0
        %v1306 = vsel %vm1069, %v995, 0
        %v1309 = vsel %vm1069, %v996, 0
        %1311 = vmatprep.subr.mxu0 0.0
        %1312 = vmatpush1.msra.mxu0 0.0
        %1313 = vmatprep.subr.mxu0 0.0
        %1314 = vmatpush1.msra.mxu0 0.0
        %1315 = vmatprep.subr.mxu0 0.0
        %1316 = vmatpush1.msra.mxu0 0.0
        %1317 = vmatprep.subr.mxu0 0.0
        %1318 = vmatpush1.msra.mxu0 0.0
        %1319 = vmatprep.subr.mxu0 0.0
        %1320 = vmatpush1.msra.mxu0 0.0
        %1321 = vmatprep.subr.mxu0 0.0
        %1322 = vmatpush1.msra.mxu0 0.0
        %1323 = vmatprep.subr.mxu0 0.0
        %1324 = vmatpush1.msra.mxu0 0.0
        %1325 = vmatprep.subr.mxu0 0.0
        %1326 = vmatpush1.msra.mxu0 0.0
        %1327 = vmatprep.subr.mxu0 0.0
        %1328 = vmatpush1.msra.mxu0 0.0
        %1329 = vmatprep.subr.mxu0 0.0
        %1330 = vmatpush1.msra.mxu0 0.0
        %1331 = vmatprep.subr.mxu0 0.0
        %1332 = vmatpush1.msra.mxu0 0.0
        %1333 = vmatprep.subr.mxu0 0.0
        %1334 = vmatpush1.msra.mxu0 0.0
        %1335 = vmatprep.subr.mxu0 0.0
        %1336 = vmatpush1.msra.mxu0 0.0
        %1337 = vmatprep.subr.mxu0 0.0
        %1338 = vmatpush1.msra.mxu0 0.0
        %1339 = vmatprep.subr.mxu0 0.0
        %1340 = vmatpush1.msra.mxu0 0.0
        %1341 = vmatprep.subr.mxu0 0.0
        %1342 = vmatpush1.msra.mxu0 %v1062
        %1343 = vmatprep.subr.mxu0 0.0
        %1344 = vmatpush2.msra.mxu0 0.0
        %1345 = vmatprep.subr.mxu0 0.0
        %1346 = vmatpush2.msra.mxu0 0.0
        %1347 = vmatprep.subr.mxu0 0.0
        %1348 = vmatpush2.msra.mxu0 0.0
        %1349 = vmatprep.subr.mxu0 0.0
        %1350 = vmatpush2.msra.mxu0 0.0
        %1351 = vmatprep.subr.mxu0 0.0
        %1352 = vmatpush2.msra.mxu0 0.0
        %1353 = vmatprep.subr.mxu0 0.0
        %1354 = vmatpush2.msra.mxu0 0.0
        %1355 = vmatprep.subr.mxu0 0.0
        %1356 = vmatpush2.msra.mxu0 0.0
        %1357 = vmatprep.subr.mxu0 0.0
        %1358 = vmatpush2.msra.mxu0 0.0
        %1359 = vmatprep.subr.mxu0 0.0
        %1360 = vmatpush2.msra.mxu0 0.0
        %1361 = vmatprep.subr.mxu0 0.0
        %1362 = vmatpush2.msra.mxu0 0.0
        %1363 = vmatprep.subr.mxu0 0.0
        %1364 = vmatpush2.msra.mxu0 0.0
        %1365 = vmatprep.subr.mxu0 0.0
        %1366 = vmatpush2.msra.mxu0 0.0
        %1367 = vmatprep.subr.mxu0 0.0
        %1368 = vmatpush2.msra.mxu0 0.0
        %1369 = vmatprep.subr.mxu0 0.0
        %1370 = vmatpush2.msra.mxu0 0.0
        %1371 = vmatprep.subr.mxu0 0.0
        %1372 = vmatpush2.msra.mxu0 0.0
        %1373 = vmatprep.subr.mxu0 0.0
        %1374 = vmatpush2.msra.mxu0 0.0
        %1375 = vmatprep.mubr.f32.mxu0 0.0
        %1376 = vmatmul.mubr.f32.gmra.mxu0 %v1264
        %v1377 = vpop.f32.mrf.mxu0
        %v1378 = vadd.f32 0.0, %v1377
        %v1379 = vpop.f32.mrf.mxu0
        %1380 = vmatprep.mubr.f32.mxu0 0.0
        %1381 = vmatmul.mubr.f32.gmra.mxu0 %v1267
        %v1382 = vpop.f32.mrf.mxu0
        %v1383 = vadd.f32 0.0, %v1382
        %v1384 = vpop.f32.mrf.mxu0
        %1385 = vmatprep.mubr.f32.mxu0 0.0
        %1386 = vmatmul.mubr.f32.gmra.mxu0 %v1270
        %v1387 = vpop.f32.mrf.mxu0
        %v1388 = vadd.f32 0.0, %v1387
        %v1389 = vpop.f32.mrf.mxu0
        %1390 = vmatprep.mubr.f32.mxu0 0.0
        %1391 = vmatmul.mubr.f32.gmra.mxu0 %v1273
        %v1392 = vpop.f32.mrf.mxu0
        %v1393 = vadd.f32 0.0, %v1392
        %v1394 = vpop.f32.mrf.mxu0
        %1395 = vmatprep.mubr.f32.mxu0 0.0
        %1396 = vmatmul.mubr.f32.gmra.mxu0 %v1276
        %v1397 = vpop.f32.mrf.mxu0
        %v1398 = vadd.f32 0.0, %v1397
        %v1399 = vpop.f32.mrf.mxu0
        %1400 = vmatprep.mubr.f32.mxu0 0.0
        %1401 = vmatmul.mubr.f32.gmra.mxu0 %v1279
        %v1402 = vpop.f32.mrf.mxu0
        %v1403 = vadd.f32 0.0, %v1402
        %v1404 = vpop.f32.mrf.mxu0
        %1405 = vmatprep.mubr.f32.mxu0 0.0
        %1406 = vmatmul.mubr.f32.gmra.mxu0 %v1282
        %v1407 = vpop.f32.mrf.mxu0
        %v1408 = vadd.f32 0.0, %v1407
        %v1409 = vpop.f32.mrf.mxu0
        %1410 = vmatprep.mubr.f32.mxu0 0.0
        %1411 = vmatmul.mubr.f32.gmra.mxu0 %v1285
        %v1412 = vpop.f32.mrf.mxu0
        %v1413 = vadd.f32 0.0, %v1412
        %v1414 = vpop.f32.mrf.mxu0
        %1415 = vmatprep.mubr.f32.mxu0 0.0
        %1416 = vmatmul.mubr.f32.gmra.mxu0 %v1288
        %v1417 = vpop.f32.mrf.mxu0
        %v1418 = vadd.f32 0.0, %v1417
        %v1419 = vpop.f32.mrf.mxu0
        %1420 = vmatprep.mubr.f32.mxu0 0.0
        %1421 = vmatmul.mubr.f32.gmra.mxu0 %v1291
        %v1422 = vpop.f32.mrf.mxu0
        %v1423 = vadd.f32 0.0, %v1422
        %v1424 = vpop.f32.mrf.mxu0
        %1425 = vmatprep.mubr.f32.mxu0 0.0
        %1426 = vmatmul.mubr.f32.gmra.mxu0 %v1294
        %v1427 = vpop.f32.mrf.mxu0
        %v1428 = vadd.f32 0.0, %v1427
        %v1429 = vpop.f32.mrf.mxu0
        %1430 = vmatprep.mubr.f32.mxu0 0.0
        %1431 = vmatmul.mubr.f32.gmra.mxu0 %v1297
        %v1432 = vpop.f32.mrf.mxu0
        %v1433 = vadd.f32 0.0, %v1432
        %v1434 = vpop.f32.mrf.mxu0
        %1435 = vmatprep.mubr.f32.mxu0 0.0
        %1436 = vmatmul.mubr.f32.gmra.mxu0 %v1300
        %v1437 = vpop.f32.mrf.mxu0
        %v1438 = vadd.f32 0.0, %v1437
        %v1439 = vpop.f32.mrf.mxu0
        %1440 = vmatprep.mubr.f32.mxu0 0.0
        %1441 = vmatmul.mubr.f32.gmra.mxu0 %v1303
        %v1442 = vpop.f32.mrf.mxu0
        %v1443 = vadd.f32 0.0, %v1442
        %v1444 = vpop.f32.mrf.mxu0
        %1445 = vmatprep.mubr.f32.mxu0 0.0
        %1446 = vmatmul.mubr.f32.gmra.mxu0 %v1306
        %v1447 = vpop.f32.mrf.mxu0
        %v1448 = vadd.f32 0.0, %v1447
        %v1449 = vpop.f32.mrf.mxu0
        %1450 = vmatprep.mubr.f32.mxu0 0.0
        %1451 = vmatmul.mubr.f32.gmra.mxu0 %v1309
        %v1452 = vpop.f32.mrf.mxu0
        %v1453 = vadd.f32 0.0, %v1452
        %v1454 = vpop.f32.mrf.mxu0
        %1455 = vdwg.mxu0
        %v1457 = vsel %vm1069, %v1013, 0
        %v1460 = vsel %vm1069, %v1014, 0
        %v1463 = vsel %vm1069, %v1015, 0
        %v1466 = vsel %vm1069, %v1016, 0
        %v1469 = vsel %vm1069, %v1017, 0
        %v1472 = vsel %vm1069, %v1018, 0
        %v1475 = vsel %vm1069, %v1019, 0
        %v1478 = vsel %vm1069, %v1020, 0
        %v1481 = vsel %vm1069, %v1021, 0
        %v1484 = vsel %vm1069, %v1022, 0
        %v1487 = vsel %vm1069, %v1023, 0
        %v1490 = vsel %vm1069, %v1024, 0
        %v1493 = vsel %vm1069, %v1025, 0
        %v1496 = vsel %vm1069, %v1026, 0
        %v1499 = vsel %vm1069, %v1027, 0
        %v1502 = vsel %vm1069, %v1028, 0
        %1504 = vmatprep.subr.mxu0 0.0
        %1505 = vmatpush1.msra.mxu0 0.0
        %1506 = vmatprep.subr.mxu0 0.0
        %1507 = vmatpush1.msra.mxu0 0.0
        %1508 = vmatprep.subr.mxu0 0.0
        %1509 = vmatpush1.msra.mxu0 0.0
        %1510 = vmatprep.subr.mxu0 0.0
        %1511 = vmatpush1.msra.mxu0 0.0
        %1512 = vmatprep.subr.mxu0 0.0
        %1513 = vmatpush1.msra.mxu0 0.0
        %1514 = vmatprep.subr.mxu0 0.0
        %1515 = vmatpush1.msra.mxu0 0.0
        %1516 = vmatprep.subr.mxu0 0.0
        %1517 = vmatpush1.msra.mxu0 0.0
        %1518 = vmatprep.subr.mxu0 0.0
        %1519 = vmatpush1.msra.mxu0 0.0
        %1520 = vmatprep.subr.mxu0 0.0
        %1521 = vmatpush1.msra.mxu0 0.0
        %1522 = vmatprep.subr.mxu0 0.0
        %1523 = vmatpush1.msra.mxu0 0.0
        %1524 = vmatprep.subr.mxu0 0.0
        %1525 = vmatpush1.msra.mxu0 0.0
        %1526 = vmatprep.subr.mxu0 0.0
        %1527 = vmatpush1.msra.mxu0 0.0
        %1528 = vmatprep.subr.mxu0 0.0
        %1529 = vmatpush1.msra.mxu0 0.0
        %1530 = vmatprep.subr.mxu0 0.0
        %1531 = vmatpush1.msra.mxu0 0.0
        %1532 = vmatprep.subr.mxu0 0.0
        %1533 = vmatpush1.msra.mxu0 0.0
        %1534 = vmatprep.subr.mxu0 0.0
        %1535 = vmatpush1.msra.mxu0 %v1063
        %1536 = vmatprep.subr.mxu0 0.0
        %1537 = vmatpush2.msra.mxu0 0.0
        %1538 = vmatprep.subr.mxu0 0.0
        %1539 = vmatpush2.msra.mxu0 0.0
        %1540 = vmatprep.subr.mxu0 0.0
        %1541 = vmatpush2.msra.mxu0 0.0
        %1542 = vmatprep.subr.mxu0 0.0
        %1543 = vmatpush2.msra.mxu0 0.0
        %1544 = vmatprep.subr.mxu0 0.0
        %1545 = vmatpush2.msra.mxu0 0.0
        %1546 = vmatprep.subr.mxu0 0.0
        %1547 = vmatpush2.msra.mxu0 0.0
        %1548 = vmatprep.subr.mxu0 0.0
        %1549 = vmatpush2.msra.mxu0 0.0
        %1550 = vmatprep.subr.mxu0 0.0
        %1551 = vmatpush2.msra.mxu0 0.0
        %1552 = vmatprep.subr.mxu0 0.0
        %1553 = vmatpush2.msra.mxu0 0.0
        %1554 = vmatprep.subr.mxu0 0.0
        %1555 = vmatpush2.msra.mxu0 0.0
        %1556 = vmatprep.subr.mxu0 0.0
        %1557 = vmatpush2.msra.mxu0 0.0
        %1558 = vmatprep.subr.mxu0 0.0
        %1559 = vmatpush2.msra.mxu0 0.0
        %1560 = vmatprep.subr.mxu0 0.0
        %1561 = vmatpush2.msra.mxu0 0.0
        %1562 = vmatprep.subr.mxu0 0.0
        %1563 = vmatpush2.msra.mxu0 0.0
        %1564 = vmatprep.subr.mxu0 0.0
        %1565 = vmatpush2.msra.mxu0 0.0
        %1566 = vmatprep.subr.mxu0 0.0
        %1567 = vmatpush2.msra.mxu0 0.0
        %1568 = vmatprep.mubr.f32.mxu0 0.0
        %1569 = vmatmul.mubr.f32.gmra.mxu0 %v1457
        %v1570 = vpop.f32.mrf.mxu0
        %v1571 = vadd.f32 0.0, %v1570
        %v1572 = vpop.f32.mrf.mxu0
        %1573 = vmatprep.mubr.f32.mxu0 0.0
        %1574 = vmatmul.mubr.f32.gmra.mxu0 %v1460
        %v1575 = vpop.f32.mrf.mxu0
        %v1576 = vadd.f32 0.0, %v1575
        %v1577 = vpop.f32.mrf.mxu0
        %1578 = vmatprep.mubr.f32.mxu0 0.0
        %1579 = vmatmul.mubr.f32.gmra.mxu0 %v1463
        %v1580 = vpop.f32.mrf.mxu0
        %v1581 = vadd.f32 0.0, %v1580
        %v1582 = vpop.f32.mrf.mxu0
        %1583 = vmatprep.mubr.f32.mxu0 0.0
        %1584 = vmatmul.mubr.f32.gmra.mxu0 %v1466
        %v1585 = vpop.f32.mrf.mxu0
        %v1586 = vadd.f32 0.0, %v1585
        %v1587 = vpop.f32.mrf.mxu0
        %1588 = vmatprep.mubr.f32.mxu0 0.0
        %1589 = vmatmul.mubr.f32.gmra.mxu0 %v1469
        %v1590 = vpop.f32.mrf.mxu0
        %v1591 = vadd.f32 0.0, %v1590
        %v1592 = vpop.f32.mrf.mxu0
        %1593 = vmatprep.mubr.f32.mxu0 0.0
        %1594 = vmatmul.mubr.f32.gmra.mxu0 %v1472
        %v1595 = vpop.f32.mrf.mxu0
        %v1596 = vadd.f32 0.0, %v1595
        %v1597 = vpop.f32.mrf.mxu0
        %1598 = vmatprep.mubr.f32.mxu0 0.0
        %1599 = vmatmul.mubr.f32.gmra.mxu0 %v1475
        %v1600 = vpop.f32.mrf.mxu0
        %v1601 = vadd.f32 0.0, %v1600
        %v1602 = vpop.f32.mrf.mxu0
        %1603 = vmatprep.mubr.f32.mxu0 0.0
        %1604 = vmatmul.mubr.f32.gmra.mxu0 %v1478
        %v1605 = vpop.f32.mrf.mxu0
        %v1606 = vadd.f32 0.0, %v1605
        %v1607 = vpop.f32.mrf.mxu0
        %1608 = vmatprep.mubr.f32.mxu0 0.0
        %1609 = vmatmul.mubr.f32.gmra.mxu0 %v1481
        %v1610 = vpop.f32.mrf.mxu0
        %v1611 = vadd.f32 0.0, %v1610
        %v1612 = vpop.f32.mrf.mxu0
        %1613 = vmatprep.mubr.f32.mxu0 0.0
        %1614 = vmatmul.mubr.f32.gmra.mxu0 %v1484
        %v1615 = vpop.f32.mrf.mxu0
        %v1616 = vadd.f32 0.0, %v1615
        %v1617 = vpop.f32.mrf.mxu0
        %1618 = vmatprep.mubr.f32.mxu0 0.0
        %1619 = vmatmul.mubr.f32.gmra.mxu0 %v1487
        %v1620 = vpop.f32.mrf.mxu0
        %v1621 = vadd.f32 0.0, %v1620
        %v1622 = vpop.f32.mrf.mxu0
        %1623 = vmatprep.mubr.f32.mxu0 0.0
        %1624 = vmatmul.mubr.f32.gmra.mxu0 %v1490
        %v1625 = vpop.f32.mrf.mxu0
        %v1626 = vadd.f32 0.0, %v1625
        %v1627 = vpop.f32.mrf.mxu0
        %1628 = vmatprep.mubr.f32.mxu0 0.0
        %1629 = vmatmul.mubr.f32.gmra.mxu0 %v1493
        %v1630 = vpop.f32.mrf.mxu0
        %v1631 = vadd.f32 0.0, %v1630
        %v1632 = vpop.f32.mrf.mxu0
        %1633 = vmatprep.mubr.f32.mxu0 0.0
        %1634 = vmatmul.mubr.f32.gmra.mxu0 %v1496
        %v1635 = vpop.f32.mrf.mxu0
        %v1636 = vadd.f32 0.0, %v1635
        %v1637 = vpop.f32.mrf.mxu0
        %1638 = vmatprep.mubr.f32.mxu0 0.0
        %1639 = vmatmul.mubr.f32.gmra.mxu0 %v1499
        %v1640 = vpop.f32.mrf.mxu0
        %v1641 = vadd.f32 0.0, %v1640
        %v1642 = vpop.f32.mrf.mxu0
        %1643 = vmatprep.mubr.f32.mxu0 0.0
        %1644 = vmatmul.mubr.f32.gmra.mxu0 %v1502
        %v1645 = vpop.f32.mrf.mxu0
        %v1646 = vadd.f32 0.0, %v1645
        %v1647 = vpop.f32.mrf.mxu0
        %1648 = vdwg.mxu0
        %v1650 = vsel %vm1069, %v1045, 0
        %v1653 = vsel %vm1069, %v1046, 0
        %v1656 = vsel %vm1069, %v1047, 0
        %v1659 = vsel %vm1069, %v1048, 0
        %v1662 = vsel %vm1069, %v1049, 0
        %v1665 = vsel %vm1069, %v1050, 0
        %v1668 = vsel %vm1069, %v1051, 0
        %v1671 = vsel %vm1069, %v1052, 0
        %v1674 = vsel %vm1069, %v1053, 0
        %v1677 = vsel %vm1069, %v1054, 0
        %v1680 = vsel %vm1069, %v1055, 0
        %v1683 = vsel %vm1069, %v1056, 0
        %v1686 = vsel %vm1069, %v1057, 0
        %v1689 = vsel %vm1069, %v1058, 0
        %v1692 = vsel %vm1069, %v1059, 0
        %v1695 = vsel %vm1069, %v1060, 0
        %1697 = vmatprep.subr.mxu0 0.0
        %1698 = vmatpush1.msra.mxu0 0.0
        %1699 = vmatprep.subr.mxu0 0.0
        %1700 = vmatpush1.msra.mxu0 0.0
        %1701 = vmatprep.subr.mxu0 0.0
        %1702 = vmatpush1.msra.mxu0 0.0
        %1703 = vmatprep.subr.mxu0 0.0
        %1704 = vmatpush1.msra.mxu0 0.0
        %1705 = vmatprep.subr.mxu0 0.0
        %1706 = vmatpush1.msra.mxu0 0.0
        %1707 = vmatprep.subr.mxu0 0.0
        %1708 = vmatpush1.msra.mxu0 0.0
        %1709 = vmatprep.subr.mxu0 0.0
        %1710 = vmatpush1.msra.mxu0 0.0
        %1711 = vmatprep.subr.mxu0 0.0
        %1712 = vmatpush1.msra.mxu0 0.0
        %1713 = vmatprep.subr.mxu0 0.0
        %1714 = vmatpush1.msra.mxu0 0.0
        %1715 = vmatprep.subr.mxu0 0.0
        %1716 = vmatpush1.msra.mxu0 0.0
        %1717 = vmatprep.subr.mxu0 0.0
        %1718 = vmatpush1.msra.mxu0 0.0
        %1719 = vmatprep.subr.mxu0 0.0
        %1720 = vmatpush1.msra.mxu0 0.0
        %1721 = vmatprep.subr.mxu0 0.0
        %1722 = vmatpush1.msra.mxu0 0.0
        %1723 = vmatprep.subr.mxu0 0.0
        %1724 = vmatpush1.msra.mxu0 0.0
        %1725 = vmatprep.subr.mxu0 0.0
        %1726 = vmatpush1.msra.mxu0 0.0
        %1727 = vmatprep.subr.mxu0 0.0
        %1728 = vmatpush1.msra.mxu0 %v1064
        %1729 = vmatprep.subr.mxu0 0.0
        %1730 = vmatpush2.msra.mxu0 0.0
        %1731 = vmatprep.subr.mxu0 0.0
        %1732 = vmatpush2.msra.mxu0 0.0
        %1733 = vmatprep.subr.mxu0 0.0
        %1734 = vmatpush2.msra.mxu0 0.0
        %1735 = vmatprep.subr.mxu0 0.0
        %1736 = vmatpush2.msra.mxu0 0.0
        %1737 = vmatprep.subr.mxu0 0.0
        %1738 = vmatpush2.msra.mxu0 0.0
        %1739 = vmatprep.subr.mxu0 0.0
        %1740 = vmatpush2.msra.mxu0 0.0
        %1741 = vmatprep.subr.mxu0 0.0
        %1742 = vmatpush2.msra.mxu0 0.0
        %1743 = vmatprep.subr.mxu0 0.0
        %1744 = vmatpush2.msra.mxu0 0.0
        %1745 = vmatprep.subr.mxu0 0.0
        %1746 = vmatpush2.msra.mxu0 0.0
        %1747 = vmatprep.subr.mxu0 0.0
        %1748 = vmatpush2.msra.mxu0 0.0
        %1749 = vmatprep.subr.mxu0 0.0
        %1750 = vmatpush2.msra.mxu0 0.0
        %1751 = vmatprep.subr.mxu0 0.0
        %1752 = vmatpush2.msra.mxu0 0.0
        %1753 = vmatprep.subr.mxu0 0.0
        %1754 = vmatpush2.msra.mxu0 0.0
        %1755 = vmatprep.subr.mxu0 0.0
        %1756 = vmatpush2.msra.mxu0 0.0
        %1757 = vmatprep.subr.mxu0 0.0
        %1758 = vmatpush2.msra.mxu0 0.0
        %1759 = vmatprep.subr.mxu0 0.0
        %1760 = vmatpush2.msra.mxu0 0.0
        %1761 = vmatprep.mubr.f32.mxu0 0.0
        %1762 = vmatmul.mubr.f32.gmra.mxu0 %v1650
        %v1763 = vpop.f32.mrf.mxu0
        %v1764 = vadd.f32 0.0, %v1763
        %v1765 = vpop.f32.mrf.mxu0
        %1766 = vmatprep.mubr.f32.mxu0 0.0
        %1767 = vmatmul.mubr.f32.gmra.mxu0 %v1653
        %v1768 = vpop.f32.mrf.mxu0
        %v1769 = vadd.f32 0.0, %v1768
        %v1770 = vpop.f32.mrf.mxu0
        %1771 = vmatprep.mubr.f32.mxu0 0.0
        %1772 = vmatmul.mubr.f32.gmra.mxu0 %v1656
        %v1773 = vpop.f32.mrf.mxu0
        %v1774 = vadd.f32 0.0, %v1773
        %v1775 = vpop.f32.mrf.mxu0
        %1776 = vmatprep.mubr.f32.mxu0 0.0
        %1777 = vmatmul.mubr.f32.gmra.mxu0 %v1659
        %v1778 = vpop.f32.mrf.mxu0
        %v1779 = vadd.f32 0.0, %v1778
        %v1780 = vpop.f32.mrf.mxu0
        %1781 = vmatprep.mubr.f32.mxu0 0.0
        %1782 = vmatmul.mubr.f32.gmra.mxu0 %v1662
        %v1783 = vpop.f32.mrf.mxu0
        %v1784 = vadd.f32 0.0, %v1783
        %v1785 = vpop.f32.mrf.mxu0
        %1786 = vmatprep.mubr.f32.mxu0 0.0
        %1787 = vmatmul.mubr.f32.gmra.mxu0 %v1665
        %v1788 = vpop.f32.mrf.mxu0
        %v1789 = vadd.f32 0.0, %v1788
        %v1790 = vpop.f32.mrf.mxu0
        %1791 = vmatprep.mubr.f32.mxu0 0.0
        %1792 = vmatmul.mubr.f32.gmra.mxu0 %v1668
        %v1793 = vpop.f32.mrf.mxu0
        %v1794 = vadd.f32 0.0, %v1793
        %v1795 = vpop.f32.mrf.mxu0
        %1796 = vmatprep.mubr.f32.mxu0 0.0
        %1797 = vmatmul.mubr.f32.gmra.mxu0 %v1671
        %v1798 = vpop.f32.mrf.mxu0
        %v1799 = vadd.f32 0.0, %v1798
        %v1800 = vpop.f32.mrf.mxu0
        %1801 = vmatprep.mubr.f32.mxu0 0.0
        %1802 = vmatmul.mubr.f32.gmra.mxu0 %v1674
        %v1803 = vpop.f32.mrf.mxu0
        %v1804 = vadd.f32 0.0, %v1803
        %v1805 = vpop.f32.mrf.mxu0
        %1806 = vmatprep.mubr.f32.mxu0 0.0
        %1807 = vmatmul.mubr.f32.gmra.mxu0 %v1677
        %v1808 = vpop.f32.mrf.mxu0
        %v1809 = vadd.f32 0.0, %v1808
        %v1810 = vpop.f32.mrf.mxu0
        %1811 = vmatprep.mubr.f32.mxu0 0.0
        %1812 = vmatmul.mubr.f32.gmra.mxu0 %v1680
        %v1813 = vpop.f32.mrf.mxu0
        %v1814 = vadd.f32 0.0, %v1813
        %v1815 = vpop.f32.mrf.mxu0
        %1816 = vmatprep.mubr.f32.mxu0 0.0
        %1817 = vmatmul.mubr.f32.gmra.mxu0 %v1683
        %v1818 = vpop.f32.mrf.mxu0
        %v1819 = vadd.f32 0.0, %v1818
        %v1820 = vpop.f32.mrf.mxu0
        %1821 = vmatprep.mubr.f32.mxu0 0.0
        %1822 = vmatmul.mubr.f32.gmra.mxu0 %v1686
        %v1823 = vpop.f32.mrf.mxu0
        %v1824 = vadd.f32 0.0, %v1823
        %v1825 = vpop.f32.mrf.mxu0
        %1826 = vmatprep.mubr.f32.mxu0 0.0
        %1827 = vmatmul.mubr.f32.gmra.mxu0 %v1689
        %v1828 = vpop.f32.mrf.mxu0
        %v1829 = vadd.f32 0.0, %v1828
        %v1830 = vpop.f32.mrf.mxu0
        %1831 = vmatprep.mubr.f32.mxu0 0.0
        %1832 = vmatmul.mubr.f32.gmra.mxu0 %v1692
        %v1833 = vpop.f32.mrf.mxu0
        %v1834 = vadd.f32 0.0, %v1833
        %v1835 = vpop.f32.mrf.mxu0
        %1836 = vmatprep.mubr.f32.mxu0 0.0
        %1837 = vmatmul.mubr.f32.gmra.mxu0 %v1695
        %v1838 = vpop.f32.mrf.mxu0
        %v1839 = vadd.f32 0.0, %v1838
        %v1840 = vpop.f32.mrf.mxu0
        %1841 = vdwg.mxu0
        %v1842 = vlaneseq
        %v1843 = vand.u32 %v1842, 127
        %vm1844 = vcmp.lt.s32.totalorder %v1843, 8
        %v1845 = vsel %vm1844, %v1185, -1e+30
        %v1846 = vsel %vm1844, %v1190, -1e+30
        %v1847 = vsel %vm1844, %v1195, -1e+30
        %v1848 = vsel %vm1844, %v1200, -1e+30
        %v1849 = vsel %vm1844, %v1205, -1e+30
        %v1850 = vsel %vm1844, %v1210, -1e+30
        %v1851 = vsel %vm1844, %v1215, -1e+30
        %v1852 = vsel %vm1844, %v1220, -1e+30
        %v1853 = vsel %vm1844, %v1225, -1e+30
        %v1854 = vsel %vm1844, %v1230, -1e+30
        %v1855 = vsel %vm1844, %v1235, -1e+30
        %v1856 = vsel %vm1844, %v1240, -1e+30
        %v1857 = vsel %vm1844, %v1245, -1e+30
        %v1858 = vsel %vm1844, %v1250, -1e+30
        %v1859 = vsel %vm1844, %v1255, -1e+30
        %v1860 = vsel %vm1844, %v1260, -1e+30
        %v1861 = vsel %vm1844, %v1378, -1e+30
        %v1862 = vsel %vm1844, %v1383, -1e+30
        %v1863 = vsel %vm1844, %v1388, -1e+30
        %v1864 = vsel %vm1844, %v1393, -1e+30
        %v1865 = vsel %vm1844, %v1398, -1e+30
        %v1866 = vsel %vm1844, %v1403, -1e+30
        %v1867 = vsel %vm1844, %v1408, -1e+30
        %v1868 = vsel %vm1844, %v1413, -1e+30
        %v1869 = vsel %vm1844, %v1418, -1e+30
        %v1870 = vsel %vm1844, %v1423, -1e+30
        %v1871 = vsel %vm1844, %v1428, -1e+30
        %v1872 = vsel %vm1844, %v1433, -1e+30
        %v1873 = vsel %vm1844, %v1438, -1e+30
        %v1874 = vsel %vm1844, %v1443, -1e+30
        %v1875 = vsel %vm1844, %v1448, -1e+30
        %v1876 = vsel %vm1844, %v1453, -1e+30
        %v1877 = vsel %vm1844, %v1571, -1e+30
        %v1878 = vsel %vm1844, %v1576, -1e+30
        %v1879 = vsel %vm1844, %v1581, -1e+30
        %v1880 = vsel %vm1844, %v1586, -1e+30
        %v1881 = vsel %vm1844, %v1591, -1e+30
        %v1882 = vsel %vm1844, %v1596, -1e+30
        %v1883 = vsel %vm1844, %v1601, -1e+30
        %v1884 = vsel %vm1844, %v1606, -1e+30
        %v1885 = vsel %vm1844, %v1611, -1e+30
        %v1886 = vsel %vm1844, %v1616, -1e+30
        %v1887 = vsel %vm1844, %v1621, -1e+30
        %v1888 = vsel %vm1844, %v1626, -1e+30
        %v1889 = vsel %vm1844, %v1631, -1e+30
        %v1890 = vsel %vm1844, %v1636, -1e+30
        %v1891 = vsel %vm1844, %v1641, -1e+30
        %v1892 = vsel %vm1844, %v1646, -1e+30
        %v1893 = vsel %vm1844, %v1764, -1e+30
        %v1894 = vsel %vm1844, %v1769, -1e+30
        %v1895 = vsel %vm1844, %v1774, -1e+30
        %v1896 = vsel %vm1844, %v1779, -1e+30
        %v1897 = vsel %vm1844, %v1784, -1e+30
        %v1898 = vsel %vm1844, %v1789, -1e+30
        %v1899 = vsel %vm1844, %v1794, -1e+30
        %v1900 = vsel %vm1844, %v1799, -1e+30
        %v1901 = vsel %vm1844, %v1804, -1e+30
        %v1902 = vsel %vm1844, %v1809, -1e+30
        %v1903 = vsel %vm1844, %v1814, -1e+30
        %v1904 = vsel %vm1844, %v1819, -1e+30
        %v1905 = vsel %vm1844, %v1824, -1e+30
        %v1906 = vsel %vm1844, %v1829, -1e+30
        %v1907 = vsel %vm1844, %v1834, -1e+30
        %v1908 = vsel %vm1844, %v1839, -1e+30
        %1909 = vmax.xlane.f32.xlu0 %v1845
        %v1910 = vpop.xlane.xlu0 %1909
        %1911 = vmax.xlane.f32.xlu0 %v1846
        %v1912 = vpop.xlane.xlu0 %1911
        %1913 = vmax.xlane.f32.xlu0 %v1847
        %v1914 = vpop.xlane.xlu0 %1913
        %1915 = vmax.xlane.f32.xlu0 %v1848
        %v1916 = vpop.xlane.xlu0 %1915
        %1917 = vmax.xlane.f32.xlu0 %v1849
        %v1918 = vpop.xlane.xlu0 %1917
        %1919 = vmax.xlane.f32.xlu0 %v1850
        %v1920 = vpop.xlane.xlu0 %1919
        %1921 = vmax.xlane.f32.xlu0 %v1851
        %v1922 = vpop.xlane.xlu0 %1921
        %1923 = vmax.xlane.f32.xlu0 %v1852
        %v1924 = vpop.xlane.xlu0 %1923
        %1925 = vmax.xlane.f32.xlu0 %v1853
        %v1926 = vpop.xlane.xlu0 %1925
        %1927 = vmax.xlane.f32.xlu0 %v1854
        %v1928 = vpop.xlane.xlu0 %1927
        %1929 = vmax.xlane.f32.xlu0 %v1855
        %v1930 = vpop.xlane.xlu0 %1929
        %1931 = vmax.xlane.f32.xlu0 %v1856
        %v1932 = vpop.xlane.xlu0 %1931
        %1933 = vmax.xlane.f32.xlu0 %v1857
        %v1934 = vpop.xlane.xlu0 %1933
        %1935 = vmax.xlane.f32.xlu0 %v1858
        %v1936 = vpop.xlane.xlu0 %1935
        %1937 = vmax.xlane.f32.xlu0 %v1859
        %v1938 = vpop.xlane.xlu0 %1937
        %1939 = vmax.xlane.f32.xlu0 %v1860
        %v1940 = vpop.xlane.xlu0 %1939
        %1941 = vmax.xlane.f32.xlu0 %v1861
        %v1942 = vpop.xlane.xlu0 %1941
        %1943 = vmax.xlane.f32.xlu0 %v1862
        %v1944 = vpop.xlane.xlu0 %1943
        %1945 = vmax.xlane.f32.xlu0 %v1863
        %v1946 = vpop.xlane.xlu0 %1945
        %1947 = vmax.xlane.f32.xlu0 %v1864
        %v1948 = vpop.xlane.xlu0 %1947
        %1949 = vmax.xlane.f32.xlu0 %v1865
        %v1950 = vpop.xlane.xlu0 %1949
        %1951 = vmax.xlane.f32.xlu0 %v1866
        %v1952 = vpop.xlane.xlu0 %1951
        %1953 = vmax.xlane.f32.xlu0 %v1867
        %v1954 = vpop.xlane.xlu0 %1953
        %1955 = vmax.xlane.f32.xlu0 %v1868
        %v1956 = vpop.xlane.xlu0 %1955
        %1957 = vmax.xlane.f32.xlu0 %v1869
        %v1958 = vpop.xlane.xlu0 %1957
        %1959 = vmax.xlane.f32.xlu0 %v1870
        %v1960 = vpop.xlane.xlu0 %1959
        %1961 = vmax.xlane.f32.xlu0 %v1871
        %v1962 = vpop.xlane.xlu0 %1961
        %1963 = vmax.xlane.f32.xlu0 %v1872
        %v1964 = vpop.xlane.xlu0 %1963
        %1965 = vmax.xlane.f32.xlu0 %v1873
        %v1966 = vpop.xlane.xlu0 %1965
        %1967 = vmax.xlane.f32.xlu0 %v1874
        %v1968 = vpop.xlane.xlu0 %1967
        %1969 = vmax.xlane.f32.xlu0 %v1875
        %v1970 = vpop.xlane.xlu0 %1969
        %1971 = vmax.xlane.f32.xlu0 %v1876
        %v1972 = vpop.xlane.xlu0 %1971
        %1973 = vmax.xlane.f32.xlu0 %v1877
        %v1974 = vpop.xlane.xlu0 %1973
        %1975 = vmax.xlane.f32.xlu0 %v1878
        %v1976 = vpop.xlane.xlu0 %1975
        %1977 = vmax.xlane.f32.xlu0 %v1879
        %v1978 = vpop.xlane.xlu0 %1977
        %1979 = vmax.xlane.f32.xlu0 %v1880
        %v1980 = vpop.xlane.xlu0 %1979
        %1981 = vmax.xlane.f32.xlu0 %v1881
        %v1982 = vpop.xlane.xlu0 %1981
        %1983 = vmax.xlane.f32.xlu0 %v1882
        %v1984 = vpop.xlane.xlu0 %1983
        %1985 = vmax.xlane.f32.xlu0 %v1883
        %v1986 = vpop.xlane.xlu0 %1985
        %1987 = vmax.xlane.f32.xlu0 %v1884
        %v1988 = vpop.xlane.xlu0 %1987
        %1989 = vmax.xlane.f32.xlu0 %v1885
        %v1990 = vpop.xlane.xlu0 %1989
        %1991 = vmax.xlane.f32.xlu0 %v1886
        %v1992 = vpop.xlane.xlu0 %1991
        %1993 = vmax.xlane.f32.xlu0 %v1887
        %v1994 = vpop.xlane.xlu0 %1993
        %1995 = vmax.xlane.f32.xlu0 %v1888
        %v1996 = vpop.xlane.xlu0 %1995
        %1997 = vmax.xlane.f32.xlu0 %v1889
        %v1998 = vpop.xlane.xlu0 %1997
        %1999 = vmax.xlane.f32.xlu0 %v1890
        %v2000 = vpop.xlane.xlu0 %1999
        %2001 = vmax.xlane.f32.xlu0 %v1891
        %v2002 = vpop.xlane.xlu0 %2001
        %2003 = vmax.xlane.f32.xlu0 %v1892
        %v2004 = vpop.xlane.xlu0 %2003
        %2005 = vmax.xlane.f32.xlu0 %v1893
        %v2006 = vpop.xlane.xlu0 %2005
        %2007 = vmax.xlane.f32.xlu0 %v1894
        %v2008 = vpop.xlane.xlu0 %2007
        %2009 = vmax.xlane.f32.xlu0 %v1895
        %v2010 = vpop.xlane.xlu0 %2009
        %2011 = vmax.xlane.f32.xlu0 %v1896
        %v2012 = vpop.xlane.xlu0 %2011
        %2013 = vmax.xlane.f32.xlu0 %v1897
        %v2014 = vpop.xlane.xlu0 %2013
        %2015 = vmax.xlane.f32.xlu0 %v1898
        %v2016 = vpop.xlane.xlu0 %2015
        %2017 = vmax.xlane.f32.xlu0 %v1899
        %v2018 = vpop.xlane.xlu0 %2017
        %2019 = vmax.xlane.f32.xlu0 %v1900
        %v2020 = vpop.xlane.xlu0 %2019
        %2021 = vmax.xlane.f32.xlu0 %v1901
        %v2022 = vpop.xlane.xlu0 %2021
        %2023 = vmax.xlane.f32.xlu0 %v1902
        %v2024 = vpop.xlane.xlu0 %2023
        %2025 = vmax.xlane.f32.xlu0 %v1903
        %v2026 = vpop.xlane.xlu0 %2025
        %2027 = vmax.xlane.f32.xlu0 %v1904
        %v2028 = vpop.xlane.xlu0 %2027
        %2029 = vmax.xlane.f32.xlu0 %v1905
        %v2030 = vpop.xlane.xlu0 %2029
        %2031 = vmax.xlane.f32.xlu0 %v1906
        %v2032 = vpop.xlane.xlu0 %2031
        %2033 = vmax.xlane.f32.xlu0 %v1907
        %v2034 = vpop.xlane.xlu0 %2033
        %2035 = vmax.xlane.f32.xlu0 %v1908
        %v2036 = vpop.xlane.xlu0 %2035
        %v2037 = vsub.f32 %v1845, %v1910
        %v2038 = vsub.f32 %v1846, %v1912
        %v2039 = vsub.f32 %v1847, %v1914
        %v2040 = vsub.f32 %v1848, %v1916
        %v2041 = vsub.f32 %v1849, %v1918
        %v2042 = vsub.f32 %v1850, %v1920
        %v2043 = vsub.f32 %v1851, %v1922
        %v2044 = vsub.f32 %v1852, %v1924
        %v2045 = vsub.f32 %v1853, %v1926
        %v2046 = vsub.f32 %v1854, %v1928
        %v2047 = vsub.f32 %v1855, %v1930
        %v2048 = vsub.f32 %v1856, %v1932
        %v2049 = vsub.f32 %v1857, %v1934
        %v2050 = vsub.f32 %v1858, %v1936
        %v2051 = vsub.f32 %v1859, %v1938
        %v2052 = vsub.f32 %v1860, %v1940
        %v2053 = vsub.f32 %v1861, %v1942
        %v2054 = vsub.f32 %v1862, %v1944
        %v2055 = vsub.f32 %v1863, %v1946
        %v2056 = vsub.f32 %v1864, %v1948
        %v2057 = vsub.f32 %v1865, %v1950
        %v2058 = vsub.f32 %v1866, %v1952
        %v2059 = vsub.f32 %v1867, %v1954
        %v2060 = vsub.f32 %v1868, %v1956
        %v2061 = vsub.f32 %v1869, %v1958
        %v2062 = vsub.f32 %v1870, %v1960
        %v2063 = vsub.f32 %v1871, %v1962
        %v2064 = vsub.f32 %v1872, %v1964
        %v2065 = vsub.f32 %v1873, %v1966
        %v2066 = vsub.f32 %v1874, %v1968
        %v2067 = vsub.f32 %v1875, %v1970
        %v2068 = vsub.f32 %v1876, %v1972
        %v2069 = vsub.f32 %v1877, %v1974
        %v2070 = vsub.f32 %v1878, %v1976
        %v2071 = vsub.f32 %v1879, %v1978
        %v2072 = vsub.f32 %v1880, %v1980
        %v2073 = vsub.f32 %v1881, %v1982
        %v2074 = vsub.f32 %v1882, %v1984
        %v2075 = vsub.f32 %v1883, %v1986
        %v2076 = vsub.f32 %v1884, %v1988
        %v2077 = vsub.f32 %v1885, %v1990
        %v2078 = vsub.f32 %v1886, %v1992
        %v2079 = vsub.f32 %v1887, %v1994
        %v2080 = vsub.f32 %v1888, %v1996
        %v2081 = vsub.f32 %v1889, %v1998
        %v2082 = vsub.f32 %v1890, %v2000
        %v2083 = vsub.f32 %v1891, %v2002
        %v2084 = vsub.f32 %v1892, %v2004
        %v2085 = vsub.f32 %v1893, %v2006
        %v2086 = vsub.f32 %v1894, %v2008
        %v2087 = vsub.f32 %v1895, %v2010
        %v2088 = vsub.f32 %v1896, %v2012
        %v2089 = vsub.f32 %v1897, %v2014
        %v2090 = vsub.f32 %v1898, %v2016
        %v2091 = vsub.f32 %v1899, %v2018
        %v2092 = vsub.f32 %v1900, %v2020
        %v2093 = vsub.f32 %v1901, %v2022
        %v2094 = vsub.f32 %v1902, %v2024
        %v2095 = vsub.f32 %v1903, %v2026
        %v2096 = vsub.f32 %v1904, %v2028
        %v2097 = vsub.f32 %v1905, %v2030
        %v2098 = vsub.f32 %v1906, %v2032
        %v2099 = vsub.f32 %v1907, %v2034
        %v2100 = vsub.f32 %v1908, %v2036
        %v2101 = vmul.f32 %v2037, 1.442695
        %v2102 = vpow.pop %v2101
        %v2103 = vmul.f32 %v2038, 1.442695
        %v2104 = vpow.pop %v2103
        %v2105 = vmul.f32 %v2039, 1.442695
        %v2106 = vpow.pop %v2105
        %v2107 = vmul.f32 %v2040, 1.442695
        %v2108 = vpow.pop %v2107
        %v2109 = vmul.f32 %v2041, 1.442695
        %v2110 = vpow.pop %v2109
        %v2111 = vmul.f32 %v2042, 1.442695
        %v2112 = vpow.pop %v2111
        %v2113 = vmul.f32 %v2043, 1.442695
        %v2114 = vpow.pop %v2113
        %v2115 = vmul.f32 %v2044, 1.442695
        %v2116 = vpow.pop %v2115
        %v2117 = vmul.f32 %v2045, 1.442695
        %v2118 = vpow.pop %v2117
        %v2119 = vmul.f32 %v2046, 1.442695
        %v2120 = vpow.pop %v2119
        %v2121 = vmul.f32 %v2047, 1.442695
        %v2122 = vpow.pop %v2121
        %v2123 = vmul.f32 %v2048, 1.442695
        %v2124 = vpow.pop %v2123
        %v2125 = vmul.f32 %v2049, 1.442695
        %v2126 = vpow.pop %v2125
        %v2127 = vmul.f32 %v2050, 1.442695
        %v2128 = vpow.pop %v2127
        %v2129 = vmul.f32 %v2051, 1.442695
        %v2130 = vpow.pop %v2129
        %v2131 = vmul.f32 %v2052, 1.442695
        %v2132 = vpow.pop %v2131
        %v2133 = vmul.f32 %v2053, 1.442695
        %v2134 = vpow.pop %v2133
        %v2135 = vmul.f32 %v2054, 1.442695
        %v2136 = vpow.pop %v2135
        %v2137 = vmul.f32 %v2055, 1.442695
        %v2138 = vpow.pop %v2137
        %v2139 = vmul.f32 %v2056, 1.442695
        %v2140 = vpow.pop %v2139
        %v2141 = vmul.f32 %v2057, 1.442695
        %v2142 = vpow.pop %v2141
        %v2143 = vmul.f32 %v2058, 1.442695
        %v2144 = vpow.pop %v2143
        %v2145 = vmul.f32 %v2059, 1.442695
        %v2146 = vpow.pop %v2145
        %v2147 = vmul.f32 %v2060, 1.442695
        %v2148 = vpow.pop %v2147
        %v2149 = vmul.f32 %v2061, 1.442695
        %v2150 = vpow.pop %v2149
        %v2151 = vmul.f32 %v2062, 1.442695
        %v2152 = vpow.pop %v2151
        %v2153 = vmul.f32 %v2063, 1.442695
        %v2154 = vpow.pop %v2153
        %v2155 = vmul.f32 %v2064, 1.442695
        %v2156 = vpow.pop %v2155
        %v2157 = vmul.f32 %v2065, 1.442695
        %v2158 = vpow.pop %v2157
        %v2159 = vmul.f32 %v2066, 1.442695
        %v2160 = vpow.pop %v2159
        %v2161 = vmul.f32 %v2067, 1.442695
        %v2162 = vpow.pop %v2161
        %v2163 = vmul.f32 %v2068, 1.442695
        %v2164 = vpow.pop %v2163
        %v2165 = vmul.f32 %v2069, 1.442695
        %v2166 = vpow.pop %v2165
        %v2167 = vmul.f32 %v2070, 1.442695
        %v2168 = vpow.pop %v2167
        %v2169 = vmul.f32 %v2071, 1.442695
        %v2170 = vpow.pop %v2169
        %v2171 = vmul.f32 %v2072, 1.442695
        %v2172 = vpow.pop %v2171
        %v2173 = vmul.f32 %v2073, 1.442695
        %v2174 = vpow.pop %v2173
        %v2175 = vmul.f32 %v2074, 1.442695
        %v2176 = vpow.pop %v2175
        %v2177 = vmul.f32 %v2075, 1.442695
        %v2178 = vpow.pop %v2177
        %v2179 = vmul.f32 %v2076, 1.442695
        %v2180 = vpow.pop %v2179
        %v2181 = vmul.f32 %v2077, 1.442695
        %v2182 = vpow.pop %v2181
        %v2183 = vmul.f32 %v2078, 1.442695
        %v2184 = vpow.pop %v2183
        %v2185 = vmul.f32 %v2079, 1.442695
        %v2186 = vpow.pop %v2185
        %v2187 = vmul.f32 %v2080, 1.442695
        %v2188 = vpow.pop %v2187
        %v2189 = vmul.f32 %v2081, 1.442695
        %v2190 = vpow.pop %v2189
        %v2191 = vmul.f32 %v2082, 1.442695
        %v2192 = vpow.pop %v2191
        %v2193 = vmul.f32 %v2083, 1.442695
        %v2194 = vpow.pop %v2193
        %v2195 = vmul.f32 %v2084, 1.442695
        %v2196 = vpow.pop %v2195
        %v2197 = vmul.f32 %v2085, 1.442695
        %v2198 = vpow.pop %v2197
        %v2199 = vmul.f32 %v2086, 1.442695
        %v2200 = vpow.pop %v2199
        %v2201 = vmul.f32 %v2087, 1.442695
        %v2202 = vpow.pop %v2201
        %v2203 = vmul.f32 %v2088, 1.442695
        %v2204 = vpow.pop %v2203
        %v2205 = vmul.f32 %v2089, 1.442695
        %v2206 = vpow.pop %v2205
        %v2207 = vmul.f32 %v2090, 1.442695
        %v2208 = vpow.pop %v2207
        %v2209 = vmul.f32 %v2091, 1.442695
        %v2210 = vpow.pop %v2209
        %v2211 = vmul.f32 %v2092, 1.442695
        %v2212 = vpow.pop %v2211
        %v2213 = vmul.f32 %v2093, 1.442695
        %v2214 = vpow.pop %v2213
        %v2215 = vmul.f32 %v2094, 1.442695
        %v2216 = vpow.pop %v2215
        %v2217 = vmul.f32 %v2095, 1.442695
        %v2218 = vpow.pop %v2217
        %v2219 = vmul.f32 %v2096, 1.442695
        %v2220 = vpow.pop %v2219
        %v2221 = vmul.f32 %v2097, 1.442695
        %v2222 = vpow.pop %v2221
        %v2223 = vmul.f32 %v2098, 1.442695
        %v2224 = vpow.pop %v2223
        %v2225 = vmul.f32 %v2099, 1.442695
        %v2226 = vpow.pop %v2225
        %v2227 = vmul.f32 %v2100, 1.442695
        %v2228 = vpow.pop %v2227
        %2229 = vadd.xlane.f32.xlu0 %v2102
        %v2230 = vpop.xlane.xlu0 %2229
        %2231 = vadd.xlane.f32.xlu0 %v2104
        %v2232 = vpop.xlane.xlu0 %2231
        %2233 = vadd.xlane.f32.xlu0 %v2106
        %v2234 = vpop.xlane.xlu0 %2233
        %2235 = vadd.xlane.f32.xlu0 %v2108
        %v2236 = vpop.xlane.xlu0 %2235
        %2237 = vadd.xlane.f32.xlu0 %v2110
        %v2238 = vpop.xlane.xlu0 %2237
        %2239 = vadd.xlane.f32.xlu0 %v2112
        %v2240 = vpop.xlane.xlu0 %2239
        %2241 = vadd.xlane.f32.xlu0 %v2114
        %v2242 = vpop.xlane.xlu0 %2241
        %2243 = vadd.xlane.f32.xlu0 %v2116
        %v2244 = vpop.xlane.xlu0 %2243
        %2245 = vadd.xlane.f32.xlu0 %v2118
        %v2246 = vpop.xlane.xlu0 %2245
        %2247 = vadd.xlane.f32.xlu0 %v2120
        %v2248 = vpop.xlane.xlu0 %2247
        %2249 = vadd.xlane.f32.xlu0 %v2122
        %v2250 = vpop.xlane.xlu0 %2249
        %2251 = vadd.xlane.f32.xlu0 %v2124
        %v2252 = vpop.xlane.xlu0 %2251
        %2253 = vadd.xlane.f32.xlu0 %v2126
        %v2254 = vpop.xlane.xlu0 %2253
        %2255 = vadd.xlane.f32.xlu0 %v2128
        %v2256 = vpop.xlane.xlu0 %2255
        %2257 = vadd.xlane.f32.xlu0 %v2130
        %v2258 = vpop.xlane.xlu0 %2257
        %2259 = vadd.xlane.f32.xlu0 %v2132
        %v2260 = vpop.xlane.xlu0 %2259
        %2261 = vadd.xlane.f32.xlu0 %v2134
        %v2262 = vpop.xlane.xlu0 %2261
        %2263 = vadd.xlane.f32.xlu0 %v2136
        %v2264 = vpop.xlane.xlu0 %2263
        %2265 = vadd.xlane.f32.xlu0 %v2138
        %v2266 = vpop.xlane.xlu0 %2265
        %2267 = vadd.xlane.f32.xlu0 %v2140
        %v2268 = vpop.xlane.xlu0 %2267
        %2269 = vadd.xlane.f32.xlu0 %v2142
        %v2270 = vpop.xlane.xlu0 %2269
        %2271 = vadd.xlane.f32.xlu0 %v2144
        %v2272 = vpop.xlane.xlu0 %2271
        %2273 = vadd.xlane.f32.xlu0 %v2146
        %v2274 = vpop.xlane.xlu0 %2273
        %2275 = vadd.xlane.f32.xlu0 %v2148
        %v2276 = vpop.xlane.xlu0 %2275
        %2277 = vadd.xlane.f32.xlu0 %v2150
        %v2278 = vpop.xlane.xlu0 %2277
        %2279 = vadd.xlane.f32.xlu0 %v2152
        %v2280 = vpop.xlane.xlu0 %2279
        %2281 = vadd.xlane.f32.xlu0 %v2154
        %v2282 = vpop.xlane.xlu0 %2281
        %2283 = vadd.xlane.f32.xlu0 %v2156
        %v2284 = vpop.xlane.xlu0 %2283
        %2285 = vadd.xlane.f32.xlu0 %v2158
        %v2286 = vpop.xlane.xlu0 %2285
        %2287 = vadd.xlane.f32.xlu0 %v2160
        %v2288 = vpop.xlane.xlu0 %2287
        %2289 = vadd.xlane.f32.xlu0 %v2162
        %v2290 = vpop.xlane.xlu0 %2289
        %2291 = vadd.xlane.f32.xlu0 %v2164
        %v2292 = vpop.xlane.xlu0 %2291
        %2293 = vadd.xlane.f32.xlu0 %v2166
        %v2294 = vpop.xlane.xlu0 %2293
        %2295 = vadd.xlane.f32.xlu0 %v2168
        %v2296 = vpop.xlane.xlu0 %2295
        %2297 = vadd.xlane.f32.xlu0 %v2170
        %v2298 = vpop.xlane.xlu0 %2297
        %2299 = vadd.xlane.f32.xlu0 %v2172
        %v2300 = vpop.xlane.xlu0 %2299
        %2301 = vadd.xlane.f32.xlu0 %v2174
        %v2302 = vpop.xlane.xlu0 %2301
        %2303 = vadd.xlane.f32.xlu0 %v2176
        %v2304 = vpop.xlane.xlu0 %2303
        %2305 = vadd.xlane.f32.xlu0 %v2178
        %v2306 = vpop.xlane.xlu0 %2305
        %2307 = vadd.xlane.f32.xlu0 %v2180
        %v2308 = vpop.xlane.xlu0 %2307
        %2309 = vadd.xlane.f32.xlu0 %v2182
        %v2310 = vpop.xlane.xlu0 %2309
        %2311 = vadd.xlane.f32.xlu0 %v2184
        %v2312 = vpop.xlane.xlu0 %2311
        %2313 = vadd.xlane.f32.xlu0 %v2186
        %v2314 = vpop.xlane.xlu0 %2313
        %2315 = vadd.xlane.f32.xlu0 %v2188
        %v2316 = vpop.xlane.xlu0 %2315
        %2317 = vadd.xlane.f32.xlu0 %v2190
        %v2318 = vpop.xlane.xlu0 %2317
        %2319 = vadd.xlane.f32.xlu0 %v2192
        %v2320 = vpop.xlane.xlu0 %2319
        %2321 = vadd.xlane.f32.xlu0 %v2194
        %v2322 = vpop.xlane.xlu0 %2321
        %2323 = vadd.xlane.f32.xlu0 %v2196
        %v2324 = vpop.xlane.xlu0 %2323
        %2325 = vadd.xlane.f32.xlu0 %v2198
        %v2326 = vpop.xlane.xlu0 %2325
        %2327 = vadd.xlane.f32.xlu0 %v2200
        %v2328 = vpop.xlane.xlu0 %2327
        %2329 = vadd.xlane.f32.xlu0 %v2202
        %v2330 = vpop.xlane.xlu0 %2329
        %2331 = vadd.xlane.f32.xlu0 %v2204
        %v2332 = vpop.xlane.xlu0 %2331
        %2333 = vadd.xlane.f32.xlu0 %v2206
        %v2334 = vpop.xlane.xlu0 %2333
        %2335 = vadd.xlane.f32.xlu0 %v2208
        %v2336 = vpop.xlane.xlu0 %2335
        %2337 = vadd.xlane.f32.xlu0 %v2210
        %v2338 = vpop.xlane.xlu0 %2337
        %2339 = vadd.xlane.f32.xlu0 %v2212
        %v2340 = vpop.xlane.xlu0 %2339
        %2341 = vadd.xlane.f32.xlu0 %v2214
        %v2342 = vpop.xlane.xlu0 %2341
        %2343 = vadd.xlane.f32.xlu0 %v2216
        %v2344 = vpop.xlane.xlu0 %2343
        %2345 = vadd.xlane.f32.xlu0 %v2218
        %v2346 = vpop.xlane.xlu0 %2345
        %2347 = vadd.xlane.f32.xlu0 %v2220
        %v2348 = vpop.xlane.xlu0 %2347
        %2349 = vadd.xlane.f32.xlu0 %v2222
        %v2350 = vpop.xlane.xlu0 %2349
        %2351 = vadd.xlane.f32.xlu0 %v2224
        %v2352 = vpop.xlane.xlu0 %2351
        %2353 = vadd.xlane.f32.xlu0 %v2226
        %v2354 = vpop.xlane.xlu0 %2353
        %2355 = vadd.xlane.f32.xlu0 %v2228
        %v2356 = vpop.xlane.xlu0 %2355
        %v2357 = vrcp.pop %v2230
        %v2358 = vrcp.pop %v2232
        %v2359 = vrcp.pop %v2234
        %v2360 = vrcp.pop %v2236
        %v2361 = vrcp.pop %v2238
        %v2362 = vrcp.pop %v2240
        %v2363 = vrcp.pop %v2242
        %v2364 = vrcp.pop %v2244
        %v2365 = vrcp.pop %v2246
        %v2366 = vrcp.pop %v2248
        %v2367 = vrcp.pop %v2250
        %v2368 = vrcp.pop %v2252
        %v2369 = vrcp.pop %v2254
        %v2370 = vrcp.pop %v2256
        %v2371 = vrcp.pop %v2258
        %v2372 = vrcp.pop %v2260
        %v2373 = vrcp.pop %v2262
        %v2374 = vrcp.pop %v2264
        %v2375 = vrcp.pop %v2266
        %v2376 = vrcp.pop %v2268
        %v2377 = vrcp.pop %v2270
        %v2378 = vrcp.pop %v2272
        %v2379 = vrcp.pop %v2274
        %v2380 = vrcp.pop %v2276
        %v2381 = vrcp.pop %v2278
        %v2382 = vrcp.pop %v2280
        %v2383 = vrcp.pop %v2282
        %v2384 = vrcp.pop %v2284
        %v2385 = vrcp.pop %v2286
        %v2386 = vrcp.pop %v2288
        %v2387 = vrcp.pop %v2290
        %v2388 = vrcp.pop %v2292
        %v2389 = vrcp.pop %v2294
        %v2390 = vrcp.pop %v2296
        %v2391 = vrcp.pop %v2298
        %v2392 = vrcp.pop %v2300
        %v2393 = vrcp.pop %v2302
        %v2394 = vrcp.pop %v2304
        %v2395 = vrcp.pop %v2306
        %v2396 = vrcp.pop %v2308
        %v2397 = vrcp.pop %v2310
        %v2398 = vrcp.pop %v2312
        %v2399 = vrcp.pop %v2314
        %v2400 = vrcp.pop %v2316
        %v2401 = vrcp.pop %v2318
        %v2402 = vrcp.pop %v2320
        %v2403 = vrcp.pop %v2322
        %v2404 = vrcp.pop %v2324
        %v2405 = vrcp.pop %v2326
        %v2406 = vrcp.pop %v2328
        %v2407 = vrcp.pop %v2330
        %v2408 = vrcp.pop %v2332
        %v2409 = vrcp.pop %v2334
        %v2410 = vrcp.pop %v2336
        %v2411 = vrcp.pop %v2338
        %v2412 = vrcp.pop %v2340
        %v2413 = vrcp.pop %v2342
        %v2414 = vrcp.pop %v2344
        %v2415 = vrcp.pop %v2346
        %v2416 = vrcp.pop %v2348
        %v2417 = vrcp.pop %v2350
        %v2418 = vrcp.pop %v2352
        %v2419 = vrcp.pop %v2354
        %v2420 = vrcp.pop %v2356
        %v2421 = vmul.f32 %v2102, %v2357
        %v2422 = vmul.f32 %v2104, %v2358
        %v2423 = vmul.f32 %v2106, %v2359
        %v2424 = vmul.f32 %v2108, %v2360
        %v2425 = vmul.f32 %v2110, %v2361
        %v2426 = vmul.f32 %v2112, %v2362
        %v2427 = vmul.f32 %v2114, %v2363
        %v2428 = vmul.f32 %v2116, %v2364
        %v2429 = vmul.f32 %v2118, %v2365
        %v2430 = vmul.f32 %v2120, %v2366
        %v2431 = vmul.f32 %v2122, %v2367
        %v2432 = vmul.f32 %v2124, %v2368
        %v2433 = vmul.f32 %v2126, %v2369
        %v2434 = vmul.f32 %v2128, %v2370
        %v2435 = vmul.f32 %v2130, %v2371
        %v2436 = vmul.f32 %v2132, %v2372
        %v2437 = vmul.f32 %v2134, %v2373
        %v2438 = vmul.f32 %v2136, %v2374
        %v2439 = vmul.f32 %v2138, %v2375
        %v2440 = vmul.f32 %v2140, %v2376
        %v2441 = vmul.f32 %v2142, %v2377
        %v2442 = vmul.f32 %v2144, %v2378
        %v2443 = vmul.f32 %v2146, %v2379
        %v2444 = vmul.f32 %v2148, %v2380
        %v2445 = vmul.f32 %v2150, %v2381
        %v2446 = vmul.f32 %v2152, %v2382
        %v2447 = vmul.f32 %v2154, %v2383
        %v2448 = vmul.f32 %v2156, %v2384
        %v2449 = vmul.f32 %v2158, %v2385
        %v2450 = vmul.f32 %v2160, %v2386
        %v2451 = vmul.f32 %v2162, %v2387
        %v2452 = vmul.f32 %v2164, %v2388
        %v2453 = vmul.f32 %v2166, %v2389
        %v2454 = vmul.f32 %v2168, %v2390
        %v2455 = vmul.f32 %v2170, %v2391
        %v2456 = vmul.f32 %v2172, %v2392
        %v2457 = vmul.f32 %v2174, %v2393
        %v2458 = vmul.f32 %v2176, %v2394
        %v2459 = vmul.f32 %v2178, %v2395
        %v2460 = vmul.f32 %v2180, %v2396
        %v2461 = vmul.f32 %v2182, %v2397
        %v2462 = vmul.f32 %v2184, %v2398
        %v2463 = vmul.f32 %v2186, %v2399
        %v2464 = vmul.f32 %v2188, %v2400
        %v2465 = vmul.f32 %v2190, %v2401
        %v2466 = vmul.f32 %v2192, %v2402
        %v2467 = vmul.f32 %v2194, %v2403
        %v2468 = vmul.f32 %v2196, %v2404
        %v2469 = vmul.f32 %v2198, %v2405
        %v2470 = vmul.f32 %v2200, %v2406
        %v2471 = vmul.f32 %v2202, %v2407
        %v2472 = vmul.f32 %v2204, %v2408
        %v2473 = vmul.f32 %v2206, %v2409
        %v2474 = vmul.f32 %v2208, %v2410
        %v2475 = vmul.f32 %v2210, %v2411
        %v2476 = vmul.f32 %v2212, %v2412
        %v2477 = vmul.f32 %v2214, %v2413
        %v2478 = vmul.f32 %v2216, %v2414
        %v2479 = vmul.f32 %v2218, %v2415
        %v2480 = vmul.f32 %v2220, %v2416
        %v2481 = vmul.f32 %v2222, %v2417
        %v2482 = vmul.f32 %v2224, %v2418
        %v2483 = vmul.f32 %v2226, %v2419
        %v2484 = vmul.f32 %v2228, %v2420
        %2485 = vmatprep.subr.mxu0 0.0
        %2486 = vmatpush1.xpose.msra.mxu0 %v2436
        %2487 = vmatprep.subr.mxu0 0.0
        %2488 = vmatpush1.xpose.msra.mxu0 %v2435
        %2489 = vmatprep.subr.mxu0 0.0
        %2490 = vmatpush1.xpose.msra.mxu0 %v2434
        %2491 = vmatprep.subr.mxu0 0.0
        %2492 = vmatpush1.xpose.msra.mxu0 %v2433
        %2493 = vmatprep.subr.mxu0 0.0
        %2494 = vmatpush1.xpose.msra.mxu0 %v2432
        %2495 = vmatprep.subr.mxu0 0.0
        %2496 = vmatpush1.xpose.msra.mxu0 %v2431
        %2497 = vmatprep.subr.mxu0 0.0
        %2498 = vmatpush1.xpose.msra.mxu0 %v2430
        %2499 = vmatprep.subr.mxu0 0.0
        %2500 = vmatpush1.xpose.msra.mxu0 %v2429
        %2501 = vmatprep.subr.mxu0 0.0
        %2502 = vmatpush1.xpose.msra.mxu0 %v2428
        %2503 = vmatprep.subr.mxu0 0.0
        %2504 = vmatpush1.xpose.msra.mxu0 %v2427
        %2505 = vmatprep.subr.mxu0 0.0
        %2506 = vmatpush1.xpose.msra.mxu0 %v2426
        %2507 = vmatprep.subr.mxu0 0.0
        %2508 = vmatpush1.xpose.msra.mxu0 %v2425
        %2509 = vmatprep.subr.mxu0 0.0
        %2510 = vmatpush1.xpose.msra.mxu0 %v2424
        %2511 = vmatprep.subr.mxu0 0.0
        %2512 = vmatpush1.xpose.msra.mxu0 %v2423
        %2513 = vmatprep.subr.mxu0 0.0
        %2514 = vmatpush1.xpose.msra.mxu0 %v2422
        %2515 = vmatprep.subr.mxu0 0.0
        %2516 = vmatpush1.xpose.msra.mxu0 %v2421
        %2517 = vmatprep.subr.mxu0 0.0
        %2518 = vmatpush2.xpose.msra.mxu0 0.0
        %2519 = vmatprep.subr.mxu0 0.0
        %2520 = vmatpush2.xpose.msra.mxu0 0.0
        %2521 = vmatprep.subr.mxu0 0.0
        %2522 = vmatpush2.xpose.msra.mxu0 0.0
        %2523 = vmatprep.subr.mxu0 0.0
        %2524 = vmatpush2.xpose.msra.mxu0 0.0
        %2525 = vmatprep.subr.mxu0 0.0
        %2526 = vmatpush2.xpose.msra.mxu0 0.0
        %2527 = vmatprep.subr.mxu0 0.0
        %2528 = vmatpush2.xpose.msra.mxu0 0.0
        %2529 = vmatprep.subr.mxu0 0.0
        %2530 = vmatpush2.xpose.msra.mxu0 0.0
        %2531 = vmatprep.subr.mxu0 0.0
        %2532 = vmatpush2.xpose.msra.mxu0 0.0
        %2533 = vmatprep.subr.mxu0 0.0
        %2534 = vmatpush2.xpose.msra.mxu0 0.0
        %2535 = vmatprep.subr.mxu0 0.0
        %2536 = vmatpush2.xpose.msra.mxu0 0.0
        %2537 = vmatprep.subr.mxu0 0.0
        %2538 = vmatpush2.xpose.msra.mxu0 0.0
        %2539 = vmatprep.subr.mxu0 0.0
        %2540 = vmatpush2.xpose.msra.mxu0 0.0
        %2541 = vmatprep.subr.mxu0 0.0
        %2542 = vmatpush2.xpose.msra.mxu0 0.0
        %2543 = vmatprep.subr.mxu0 0.0
        %2544 = vmatpush2.xpose.msra.mxu0 0.0
        %2545 = vmatprep.subr.mxu0 0.0
        %2546 = vmatpush2.xpose.msra.mxu0 0.0
        %2547 = vmatprep.subr.mxu0 0.0
        %2548 = vmatpush2.xpose.msra.mxu0 0.0
        %2549 = vmatprep.mubr.f32.mxu0 0.0
        %2550 = vmatmul.mubr.f32.gmra.mxu0 %v1065
        %v2551 = vpop.f32.mrf.mxu0
        %v2552 = vadd.f32 0.0, %v2551
        %v2553 = vpop.f32.mrf.mxu0
        %2554 = vdwg.mxu0
        %2555 = vmatprep.subr.mxu0 0.0
        %2556 = vmatpush1.xpose.msra.mxu0 %v2452
        %2557 = vmatprep.subr.mxu0 0.0
        %2558 = vmatpush1.xpose.msra.mxu0 %v2451
        %2559 = vmatprep.subr.mxu0 0.0
        %2560 = vmatpush1.xpose.msra.mxu0 %v2450
        %2561 = vmatprep.subr.mxu0 0.0
        %2562 = vmatpush1.xpose.msra.mxu0 %v2449
        %2563 = vmatprep.subr.mxu0 0.0
        %2564 = vmatpush1.xpose.msra.mxu0 %v2448
        %2565 = vmatprep.subr.mxu0 0.0
        %2566 = vmatpush1.xpose.msra.mxu0 %v2447
        %2567 = vmatprep.subr.mxu0 0.0
        %2568 = vmatpush1.xpose.msra.mxu0 %v2446
        %2569 = vmatprep.subr.mxu0 0.0
        %2570 = vmatpush1.xpose.msra.mxu0 %v2445
        %2571 = vmatprep.subr.mxu0 0.0
        %2572 = vmatpush1.xpose.msra.mxu0 %v2444
        %2573 = vmatprep.subr.mxu0 0.0
        %2574 = vmatpush1.xpose.msra.mxu0 %v2443
        %2575 = vmatprep.subr.mxu0 0.0
        %2576 = vmatpush1.xpose.msra.mxu0 %v2442
        %2577 = vmatprep.subr.mxu0 0.0
        %2578 = vmatpush1.xpose.msra.mxu0 %v2441
        %2579 = vmatprep.subr.mxu0 0.0
        %2580 = vmatpush1.xpose.msra.mxu0 %v2440
        %2581 = vmatprep.subr.mxu0 0.0
        %2582 = vmatpush1.xpose.msra.mxu0 %v2439
        %2583 = vmatprep.subr.mxu0 0.0
        %2584 = vmatpush1.xpose.msra.mxu0 %v2438
        %2585 = vmatprep.subr.mxu0 0.0
        %2586 = vmatpush1.xpose.msra.mxu0 %v2437
        %2587 = vmatprep.subr.mxu0 0.0
        %2588 = vmatpush2.xpose.msra.mxu0 0.0
        %2589 = vmatprep.subr.mxu0 0.0
        %2590 = vmatpush2.xpose.msra.mxu0 0.0
        %2591 = vmatprep.subr.mxu0 0.0
        %2592 = vmatpush2.xpose.msra.mxu0 0.0
        %2593 = vmatprep.subr.mxu0 0.0
        %2594 = vmatpush2.xpose.msra.mxu0 0.0
        %2595 = vmatprep.subr.mxu0 0.0
        %2596 = vmatpush2.xpose.msra.mxu0 0.0
        %2597 = vmatprep.subr.mxu0 0.0
        %2598 = vmatpush2.xpose.msra.mxu0 0.0
        %2599 = vmatprep.subr.mxu0 0.0
        %2600 = vmatpush2.xpose.msra.mxu0 0.0
        %2601 = vmatprep.subr.mxu0 0.0
        %2602 = vmatpush2.xpose.msra.mxu0 0.0
        %2603 = vmatprep.subr.mxu0 0.0
        %2604 = vmatpush2.xpose.msra.mxu0 0.0
        %2605 = vmatprep.subr.mxu0 0.0
        %2606 = vmatpush2.xpose.msra.mxu0 0.0
        %2607 = vmatprep.subr.mxu0 0.0
        %2608 = vmatpush2.xpose.msra.mxu0 0.0
        %2609 = vmatprep.subr.mxu0 0.0
        %2610 = vmatpush2.xpose.msra.mxu0 0.0
        %2611 = vmatprep.subr.mxu0 0.0
        %2612 = vmatpush2.xpose.msra.mxu0 0.0
        %2613 = vmatprep.subr.mxu0 0.0
        %2614 = vmatpush2.xpose.msra.mxu0 0.0
        %2615 = vmatprep.subr.mxu0 0.0
        %2616 = vmatpush2.xpose.msra.mxu0 0.0
        %2617 = vmatprep.subr.mxu0 0.0
        %2618 = vmatpush2.xpose.msra.mxu0 0.0
        %2619 = vmatprep.mubr.f32.mxu0 0.0
        %2620 = vmatmul.mubr.f32.gmra.mxu0 %v1066
        %v2621 = vpop.f32.mrf.mxu0
        %v2622 = vadd.f32 0.0, %v2621
        %v2623 = vpop.f32.mrf.mxu0
        %2624 = vdwg.mxu0
        %2625 = vmatprep.subr.mxu0 0.0
        %2626 = vmatpush1.xpose.msra.mxu0 %v2468
        %2627 = vmatprep.subr.mxu0 0.0
        %2628 = vmatpush1.xpose.msra.mxu0 %v2467
        %2629 = vmatprep.subr.mxu0 0.0
        %2630 = vmatpush1.xpose.msra.mxu0 %v2466
        %2631 = vmatprep.subr.mxu0 0.0
        %2632 = vmatpush1.xpose.msra.mxu0 %v2465
        %2633 = vmatprep.subr.mxu0 0.0
        %2634 = vmatpush1.xpose.msra.mxu0 %v2464
        %2635 = vmatprep.subr.mxu0 0.0
        %2636 = vmatpush1.xpose.msra.mxu0 %v2463
        %2637 = vmatprep.subr.mxu0 0.0
        %2638 = vmatpush1.xpose.msra.mxu0 %v2462
        %2639 = vmatprep.subr.mxu0 0.0
        %2640 = vmatpush1.xpose.msra.mxu0 %v2461
        %2641 = vmatprep.subr.mxu0 0.0
        %2642 = vmatpush1.xpose.msra.mxu0 %v2460
        %2643 = vmatprep.subr.mxu0 0.0
        %2644 = vmatpush1.xpose.msra.mxu0 %v2459
        %2645 = vmatprep.subr.mxu0 0.0
        %2646 = vmatpush1.xpose.msra.mxu0 %v2458
        %2647 = vmatprep.subr.mxu0 0.0
        %2648 = vmatpush1.xpose.msra.mxu0 %v2457
        %2649 = vmatprep.subr.mxu0 0.0
        %2650 = vmatpush1.xpose.msra.mxu0 %v2456
        %2651 = vmatprep.subr.mxu0 0.0
        %2652 = vmatpush1.xpose.msra.mxu0 %v2455
        %2653 = vmatprep.subr.mxu0 0.0
        %2654 = vmatpush1.xpose.msra.mxu0 %v2454
        %2655 = vmatprep.subr.mxu0 0.0
        %2656 = vmatpush1.xpose.msra.mxu0 %v2453
        %2657 = vmatprep.subr.mxu0 0.0
        %2658 = vmatpush2.xpose.msra.mxu0 0.0
        %2659 = vmatprep.subr.mxu0 0.0
        %2660 = vmatpush2.xpose.msra.mxu0 0.0
        %2661 = vmatprep.subr.mxu0 0.0
        %2662 = vmatpush2.xpose.msra.mxu0 0.0
        %2663 = vmatprep.subr.mxu0 0.0
        %2664 = vmatpush2.xpose.msra.mxu0 0.0
        %2665 = vmatprep.subr.mxu0 0.0
        %2666 = vmatpush2.xpose.msra.mxu0 0.0
        %2667 = vmatprep.subr.mxu0 0.0
        %2668 = vmatpush2.xpose.msra.mxu0 0.0
        %2669 = vmatprep.subr.mxu0 0.0
        %2670 = vmatpush2.xpose.msra.mxu0 0.0
        %2671 = vmatprep.subr.mxu0 0.0
        %2672 = vmatpush2.xpose.msra.mxu0 0.0
        %2673 = vmatprep.subr.mxu0 0.0
        %2674 = vmatpush2.xpose.msra.mxu0 0.0
        %2675 = vmatprep.subr.mxu0 0.0
        %2676 = vmatpush2.xpose.msra.mxu0 0.0
        %2677 = vmatprep.subr.mxu0 0.0
        %2678 = vmatpush2.xpose.msra.mxu0 0.0
        %2679 = vmatprep.subr.mxu0 0.0
        %2680 = vmatpush2.xpose.msra.mxu0 0.0
        %2681 = vmatprep.subr.mxu0 0.0
        %2682 = vmatpush2.xpose.msra.mxu0 0.0
        %2683 = vmatprep.subr.mxu0 0.0
        %2684 = vmatpush2.xpose.msra.mxu0 0.0
        %2685 = vmatprep.subr.mxu0 0.0
        %2686 = vmatpush2.xpose.msra.mxu0 0.0
        %2687 = vmatprep.subr.mxu0 0.0
        %2688 = vmatpush2.xpose.msra.mxu0 0.0
        %2689 = vmatprep.mubr.f32.mxu0 0.0
        %2690 = vmatmul.mubr.f32.gmra.mxu0 %v1067
        %v2691 = vpop.f32.mrf.mxu0
        %v2692 = vadd.f32 0.0, %v2691
        %v2693 = vpop.f32.mrf.mxu0
        %2694 = vdwg.mxu0
        %2695 = vmatprep.subr.mxu0 0.0
        %2696 = vmatpush1.xpose.msra.mxu0 %v2484
        %2697 = vmatprep.subr.mxu0 0.0
        %2698 = vmatpush1.xpose.msra.mxu0 %v2483
        %2699 = vmatprep.subr.mxu0 0.0
        %2700 = vmatpush1.xpose.msra.mxu0 %v2482
        %2701 = vmatprep.subr.mxu0 0.0
        %2702 = vmatpush1.xpose.msra.mxu0 %v2481
        %2703 = vmatprep.subr.mxu0 0.0
        %2704 = vmatpush1.xpose.msra.mxu0 %v2480
        %2705 = vmatprep.subr.mxu0 0.0
        %2706 = vmatpush1.xpose.msra.mxu0 %v2479
        %2707 = vmatprep.subr.mxu0 0.0
        %2708 = vmatpush1.xpose.msra.mxu0 %v2478
        %2709 = vmatprep.subr.mxu0 0.0
        %2710 = vmatpush1.xpose.msra.mxu0 %v2477
        %2711 = vmatprep.subr.mxu0 0.0
        %2712 = vmatpush1.xpose.msra.mxu0 %v2476
        %2713 = vmatprep.subr.mxu0 0.0
        %2714 = vmatpush1.xpose.msra.mxu0 %v2475
        %2715 = vmatprep.subr.mxu0 0.0
        %2716 = vmatpush1.xpose.msra.mxu0 %v2474
        %2717 = vmatprep.subr.mxu0 0.0
        %2718 = vmatpush1.xpose.msra.mxu0 %v2473
        %2719 = vmatprep.subr.mxu0 0.0
        %2720 = vmatpush1.xpose.msra.mxu0 %v2472
        %2721 = vmatprep.subr.mxu0 0.0
        %2722 = vmatpush1.xpose.msra.mxu0 %v2471
        %2723 = vmatprep.subr.mxu0 0.0
        %2724 = vmatpush1.xpose.msra.mxu0 %v2470
        %2725 = vmatprep.subr.mxu0 0.0
        %2726 = vmatpush1.xpose.msra.mxu0 %v2469
        %2727 = vmatprep.subr.mxu0 0.0
        %2728 = vmatpush2.xpose.msra.mxu0 0.0
        %2729 = vmatprep.subr.mxu0 0.0
        %2730 = vmatpush2.xpose.msra.mxu0 0.0
        %2731 = vmatprep.subr.mxu0 0.0
        %2732 = vmatpush2.xpose.msra.mxu0 0.0
        %2733 = vmatprep.subr.mxu0 0.0
        %2734 = vmatpush2.xpose.msra.mxu0 0.0
        %2735 = vmatprep.subr.mxu0 0.0
        %2736 = vmatpush2.xpose.msra.mxu0 0.0
        %2737 = vmatprep.subr.mxu0 0.0
        %2738 = vmatpush2.xpose.msra.mxu0 0.0
        %2739 = vmatprep.subr.mxu0 0.0
        %2740 = vmatpush2.xpose.msra.mxu0 0.0
        %2741 = vmatprep.subr.mxu0 0.0
        %2742 = vmatpush2.xpose.msra.mxu0 0.0
        %2743 = vmatprep.subr.mxu0 0.0
        %2744 = vmatpush2.xpose.msra.mxu0 0.0
        %2745 = vmatprep.subr.mxu0 0.0
        %2746 = vmatpush2.xpose.msra.mxu0 0.0
        %2747 = vmatprep.subr.mxu0 0.0
        %2748 = vmatpush2.xpose.msra.mxu0 0.0
        %2749 = vmatprep.subr.mxu0 0.0
        %2750 = vmatpush2.xpose.msra.mxu0 0.0
        %2751 = vmatprep.subr.mxu0 0.0
        %2752 = vmatpush2.xpose.msra.mxu0 0.0
        %2753 = vmatprep.subr.mxu0 0.0
        %2754 = vmatpush2.xpose.msra.mxu0 0.0
        %2755 = vmatprep.subr.mxu0 0.0
        %2756 = vmatpush2.xpose.msra.mxu0 0.0
        %2757 = vmatprep.subr.mxu0 0.0
        %2758 = vmatpush2.xpose.msra.mxu0 0.0
        %2759 = vmatprep.mubr.f32.mxu0 0.0
        %2760 = vmatmul.mubr.f32.gmra.mxu0 %v1068
        %v2761 = vpop.f32.mrf.mxu0
        %v2762 = vadd.f32 0.0, %v2761
        %v2763 = vpop.f32.mrf.mxu0
        %2764 = vdwg.mxu0
        %v2765 = vld [vmem:[#allocation12] sm:$0xff]
        %v2766 = vld [vmem:[#allocation12 + $0x8] sm:$0xff]
        %v2767 = vld [vmem:[#allocation12 + $0x10] sm:$0xff]
        %v2768 = vld [vmem:[#allocation12 + $0x18] sm:$0xff]
        %v2769 = vld [vmem:[%s10] sm:$0xff]
        %v2770 = vld [vmem:[%s10 + $0x8] sm:$0xff]
        %v2771 = vld [vmem:[%s10 + $0x10] sm:$0xff]
        %v2772 = vld [vmem:[%s10 + $0x18] sm:$0xff]
        %2774 = vset.pattern.permute.xlu0 0
        %2775 = vperm.xlu0 %2774, %v2769
        %v2776 = vpop.permute.xlu0 %2775
        %2779 = vset.pattern.permute.xlu0 0
        %2780 = vperm.xlu0 %2779, %v2770
        %v2781 = vpop.permute.xlu0 %2780
        %2784 = vset.pattern.permute.xlu0 0
        %2785 = vperm.xlu0 %2784, %v2771
        %v2786 = vpop.permute.xlu0 %2785
        %2789 = vset.pattern.permute.xlu0 0
        %2790 = vperm.xlu0 %2789, %v2772
        %v2791 = vpop.permute.xlu0 %2790
        %v2794 = vsel %vm831, %v2765, 0
        %v2797 = vsel %vm831, %v2766, 0
        %v2800 = vsel %vm831, %v2767, 0
        %v2803 = vsel %vm831, %v2768, 0
        %2805 = vmatprep.subr.mxu0 0.0
        %2806 = vmatpush1.msra.mxu0 0.0
        %2807 = vmatprep.subr.mxu0 0.0
        %2808 = vmatpush1.msra.mxu0 0.0
        %2809 = vmatprep.subr.mxu0 0.0
        %2810 = vmatpush1.msra.mxu0 0.0
        %2811 = vmatprep.subr.mxu0 0.0
        %2812 = vmatpush1.msra.mxu0 0.0
        %2813 = vmatprep.subr.mxu0 0.0
        %2814 = vmatpush1.msra.mxu0 0.0
        %2815 = vmatprep.subr.mxu0 0.0
        %2816 = vmatpush1.msra.mxu0 0.0
        %2817 = vmatprep.subr.mxu0 0.0
        %2818 = vmatpush1.msra.mxu0 0.0
        %2819 = vmatprep.subr.mxu0 0.0
        %2820 = vmatpush1.msra.mxu0 0.0
        %2821 = vmatprep.subr.mxu0 0.0
        %2822 = vmatpush1.msra.mxu0 0.0
        %2823 = vmatprep.subr.mxu0 0.0
        %2824 = vmatpush1.msra.mxu0 0.0
        %2825 = vmatprep.subr.mxu0 0.0
        %2826 = vmatpush1.msra.mxu0 0.0
        %2827 = vmatprep.subr.mxu0 0.0
        %2828 = vmatpush1.msra.mxu0 0.0
        %2829 = vmatprep.subr.mxu0 0.0
        %2830 = vmatpush1.msra.mxu0 %v2762
        %2831 = vmatprep.subr.mxu0 0.0
        %2832 = vmatpush1.msra.mxu0 %v2692
        %2833 = vmatprep.subr.mxu0 0.0
        %2834 = vmatpush1.msra.mxu0 %v2622
        %2835 = vmatprep.subr.mxu0 0.0
        %2836 = vmatpush1.msra.mxu0 %v2552
        %2837 = vmatprep.subr.mxu0 0.0
        %2838 = vmatpush2.msra.mxu0 0.0
        %2839 = vmatprep.subr.mxu0 0.0
        %2840 = vmatpush2.msra.mxu0 0.0
        %2841 = vmatprep.subr.mxu0 0.0
        %2842 = vmatpush2.msra.mxu0 0.0
        %2843 = vmatprep.subr.mxu0 0.0
        %2844 = vmatpush2.msra.mxu0 0.0
        %2845 = vmatprep.subr.mxu0 0.0
        %2846 = vmatpush2.msra.mxu0 0.0
        %2847 = vmatprep.subr.mxu0 0.0
        %2848 = vmatpush2.msra.mxu0 0.0
        %2849 = vmatprep.subr.mxu0 0.0
        %2850 = vmatpush2.msra.mxu0 0.0
        %2851 = vmatprep.subr.mxu0 0.0
        %2852 = vmatpush2.msra.mxu0 0.0
        %2853 = vmatprep.subr.mxu0 0.0
        %2854 = vmatpush2.msra.mxu0 0.0
        %2855 = vmatprep.subr.mxu0 0.0
        %2856 = vmatpush2.msra.mxu0 0.0
        %2857 = vmatprep.subr.mxu0 0.0
        %2858 = vmatpush2.msra.mxu0 0.0
        %2859 = vmatprep.subr.mxu0 0.0
        %2860 = vmatpush2.msra.mxu0 0.0
        %2861 = vmatprep.subr.mxu0 0.0
        %2862 = vmatpush2.msra.mxu0 0.0
        %2863 = vmatprep.subr.mxu0 0.0
        %2864 = vmatpush2.msra.mxu0 0.0
        %2865 = vmatprep.subr.mxu0 0.0
        %2866 = vmatpush2.msra.mxu0 0.0
        %2867 = vmatprep.subr.mxu0 0.0
        %2868 = vmatpush2.msra.mxu0 0.0
        %2869 = vmatprep.mubr.f32.mxu0 0.0
        %2870 = vmatmul.mubr.f32.gmra.mxu0 %v2794
        %v2871 = vpop.f32.mrf.mxu0
        %v2872 = vadd.f32 %v2776, %v2871
        %v2873 = vpop.f32.mrf.mxu0
        %2874 = vmatprep.mubr.f32.mxu0 0.0
        %2875 = vmatmul.mubr.f32.gmra.mxu0 %v2797
        %v2876 = vpop.f32.mrf.mxu0
        %v2877 = vadd.f32 %v2781, %v2876
        %v2878 = vpop.f32.mrf.mxu0
        %2879 = vmatprep.mubr.f32.mxu0 0.0
        %2880 = vmatmul.mubr.f32.gmra.mxu0 %v2800
        %v2881 = vpop.f32.mrf.mxu0
        %v2882 = vadd.f32 %v2786, %v2881
        %v2883 = vpop.f32.mrf.mxu0
        %2884 = vmatprep.mubr.f32.mxu0 0.0
        %2885 = vmatmul.mubr.f32.gmra.mxu0 %v2803
        %v2886 = vpop.f32.mrf.mxu0
        %v2887 = vadd.f32 %v2791, %v2886
        %v2888 = vpop.f32.mrf.mxu0
        %2889 = vdwg.mxu0
        %2890 = vst [vmem:[%s514] sm:$0xff] %v2872
        %2891 = vst [vmem:[%s514 + $0x8] sm:$0xff] %v2877
        %2892 = vst [vmem:[%s514 + $0x10] sm:$0xff] %v2882
        %2893 = vst [vmem:[%s514 + $0x18] sm:$0xff] %v2887
        %s2894 = sand.u32 %s300, 1
        %s2895 = scalar_lea.sflag [#allocation6], %s2894
        %s2896 = sand.u32 %s300, 1
        %s2897 = smul.addr %s2896, 32
        %s2898 = scalar_lea.vmem [#allocation13], %s2897
        // Predicated region
        $region89: #{tpu_custom_call.1} parent=63 // pred_check
          %p2899 = pneg %p310
        $region90: #{tpu_custom_call.1} parent=63 // pred_check_branch
          %2901 = sbr.rel (%p2899) target = $region92
        $region91: #{tpu_custom_call.1} parent=63 // pred_region
          %s2903 = ssub.s32 512, 512
          %2904 = vsyncadd %s2895, %s2903
          %s2905 = smul.addr %s34, 4
          %s2906 = sadd.s32 %s35, %s2905
          %s2907 = smul.addr %s2906, 128
          %s2908 = scalar_lea.hbm %s11, %s2907
          %s2909 = sshll.u32 %s2898, 4
          %s2910 = int_to_ptr.vmem [resolvable:$true] %s2909
          %2915 = dma.vmem_to_hbm [thread:$0]  %s2910, 512, %s2908, %s2895, 128, 128, 8
        $region92: #{tpu_custom_call.1} parent=63 // pred_fallthru
          _
      $region64: #{tpu_custom_call.1} parent=5 // pred_fallthru
        _
      %p2916 = scmp.le.s32.totalorder 2, %s25
      // Predicated region
      $region93: #{tpu_custom_call.1} parent=5 // pred_check
        %p2917 = pneg %p2916
      $region94: #{tpu_custom_call.1} parent=5 // pred_check_branch
        %2919 = sbr.rel (%p2917) target = $region96
      $region95: #{tpu_custom_call.1} parent=5 // pred_region
        %s2920 = ssub.s32 %s25, 2
        // Predicated region
        $region97: #{tpu_custom_call.1} parent=95 // pred_check
          %p2921 = pneg %p316
        $region98: #{tpu_custom_call.1} parent=95 // pred_check_branch
          %2923 = sbr.rel (%p2921) target = $region100
        $region99: #{tpu_custom_call.1} parent=95 // pred_region
          %s2924 = sand.u32 %s301, 1
          %s2925 = scalar_lea.sflag [#allocation6], %s2924
          %s2926 = sand.u32 %s301, 1
          %s2927 = smul.addr %s2926, 32
          %s2928 = scalar_lea.vmem [#allocation13], %s2927
          %2929 = dma.done %s2925, 512
        $region100: #{tpu_custom_call.1} parent=95 // pred_fallthru
          _
      $region96: #{tpu_custom_call.1} parent=5 // pred_fallthru
        _
    $region6: #{tpu_custom_call.1} parent=1 // loop_footer
      %s29 = sadd.s32 1, %s25
    $region7: #{tpu_custom_call.1} parent=1 // loop_footer_branch
      %24 = sbr.rel target = $region3
    $region8: #{tpu_custom_call.1} parent=1 // loop_exit
      _
    %2930 = vsyncpa [#allocation5], 1
    %s2931 = scalar_lea.sflag [#allocation5], 1
    %2932 = vsyncpa %s2931, 1
    %2933 = vsyncpa [#allocation8], 1
    %2934 = vsyncpa [#allocation11], 1
    %2935 = vsyncpa [#allocation6], 1
    %s2936 = scalar_lea.sflag [#allocation6], 1
    %2937 = vsyncpa %s2936, 1

</llo_original>
